<compile_context>
chip_gen: v7x
topology: tpu7x:2x2x1
jax: 0.10.0
libtpu: 0.0.40
codegen_flags: <defaults>
</compile_context>

<pallas_src>
import functools

import jax
import jax.numpy as jnp
from jax.experimental import pallas as pl
from jax.experimental.pallas import tpu as pltpu


# ----------------------------------------------------------------------------
# helpers
# ----------------------------------------------------------------------------
def _round_up(v, m):
    return ((v + m - 1) // m) * m


def _pad_rows(a, rows):
    pad = rows - a.shape[0]
    if pad == 0:
        return a
    return jnp.pad(a, ((0, pad), (0, 0)))


# ----------------------------------------------------------------------------
# Fused NNConv kernel (edge_NN + message + scatter-add + root + bias [+ ReLU])
# grid = (N_tiles "parallel", E_tiles "arbitrary"); acc scratch resident per N tile.
# ----------------------------------------------------------------------------
def _nnconv_kernel(dst_ref, xsrc_ref, ea_ref, xn_ref,
                   w1_ref, b1_ref, w2_ref, b2_ref, rep_ref,
                   rootw_ref, bias_ref, o_ref, acc_ref,
                   *, c_in, c_out, relu):
    ni = pl.program_id(0)
    ei = pl.program_id(1)
    tN = acc_ref.shape[0]
    tE = dst_ref.shape[1]

    # init: root transform + bias (output tile is resident across the E axis)
    @pl.when(ei == 0)
    def _():
        acc_ref[...] = (
            jnp.dot(xn_ref[...], rootw_ref[...], preferred_element_type=jnp.float32)
            + bias_ref[...]
        )

    # edge_NN fused: h = relu(ea @ W1 + b1); wflat = relu(h @ W2 + b2)
    # (wflat [tE, c_in*c_out] lives only in VMEM — never written to HBM).
    # NOTE: recomputed once per N tile; acceptable while N_tiles is small.
    h = jnp.dot(ea_ref[...], w1_ref[...], preferred_element_type=jnp.float32) + b1_ref[...]
    h = jnp.maximum(h, 0.0)
    wflat = (jnp.dot(h.astype(jnp.bfloat16), w2_ref[...],
                     preferred_element_type=jnp.float32) + b2_ref[...])
    wflat = jnp.maximum(wflat, 0.0)

    # lane-dense per-edge message:
    #   xrep[e, i*c_out + o] = xsrc[e, i]   (replication done on the MXU via 0/1 matrix)
    xrep = jnp.dot(xsrc_ref[...], rep_ref[...], preferred_element_type=jnp.float32)
    prod = xrep * wflat                              # one wide f32 VPU multiply
    msg = prod[:, 0:c_out]
    for i in range(1, c_in):                         # c_in-1 strided lane adds
        msg = msg + prod[:, i * c_out:(i + 1) * c_out]

    # scatter-add to destination nodes: one-hot built on the fly from dst indices
    node_ids = ni * tN + jax.lax.broadcasted_iota(jnp.int32, (tN, tE), 0)
    scat = (dst_ref[...] == node_ids).astype(jnp.float32)          # [tN, tE] in VMEM only
    acc_ref[...] += jnp.dot(scat.astype(jnp.bfloat16), msg.astype(jnp.bfloat16),
                            preferred_element_type=jnp.float32)

    # finalize
    @pl.when(ei == pl.num_programs(1) - 1)
    def _():
        y = acc_ref[...]
        if relu:
            y = jnp.maximum(y, 0.0)
        o_ref[...] = y


def nnconv_layer(x, src, dst, edge_attr, params, c_in, c_out, relu):
    """One torch_geometric NNConv layer (+ optional trailing ReLU) as ONE pallas_call."""
    N = x.shape[0]
    E = edge_attr.shape[0]
    c_edge_in = edge_attr.shape[1]
    c_eh = params["enn_w1"].shape[1]

    tN = min(256, _round_up(N, 8))
    N_pad = _round_up(N, tN)
    tE = min(512, _round_up(E, 128))          # multiple of 128 -> lane-legal dst tile
    E_pad = _round_up(E, tE)

    xf = x.astype(jnp.float32)
    # x[src] gather kept as a cheap XLA gather (robust across Mosaic versions);
    # everything downstream of it is fused in-kernel.
    x_src = _pad_rows(jnp.take(xf, src, axis=0), E_pad).astype(jnp.bfloat16)
    xn = _pad_rows(xf, N_pad).astype(jnp.bfloat16)
    ea = _pad_rows(edge_attr.astype(jnp.float32), E_pad).astype(jnp.bfloat16)
    dst_p = jnp.pad(dst.astype(jnp.int32), (0, E_pad - E),
                    constant_values=-1).reshape(1, E_pad)       # -1 => padded edge

    # 0/1 replication matrix: rep[i, i*c_out + o] = 1
    rep = (jnp.arange(c_in * c_out, dtype=jnp.int32)[None, :] // c_out
           == jnp.arange(c_in, dtype=jnp.int32)[:, None]).astype(jnp.bfloat16)

    w1 = params["enn_w1"].astype(jnp.bfloat16)
    b1 = params["enn_b1"].reshape(1, -1).astype(jnp.float32)
    w2 = params["enn_w2"].astype(jnp.bfloat16)
    b2 = params["enn_b2"].reshape(1, -1).astype(jnp.float32)
    rootw = params["root_w"].astype(jnp.bfloat16)
    bias = params["bias"].reshape(1, -1).astype(jnp.float32)

    grid = (N_pad // tN, E_pad // tE)
    flops = (2 * E_pad * (c_edge_in * c_eh + c_eh * c_in * c_out + c_in * c_in * c_out)
             * grid[0]
             + 2 * N_pad * E_pad * c_out
             + 2 * N_pad * c_in * c_out
             + E_pad * c_in * c_out * grid[0])
    bytes_accessed = (2 * (x_src.size + ea.size + xn.size + w1.size + w2.size + rep.size
                           + rootw.size)
                      + 4 * (dst_p.size + b1.size + b2.size + bias.size + N_pad * c_out))

    out = pl.pallas_call(
        functools.partial(_nnconv_kernel, c_in=c_in, c_out=c_out, relu=relu),
        out_shape=jax.ShapeDtypeStruct((N_pad, c_out), jnp.float32),
        grid=grid,
        in_specs=[
            pl.BlockSpec((1, tE), lambda ni, ei: (0, ei)),          # dst indices
            pl.BlockSpec((tE, c_in), lambda ni, ei: (ei, 0)),       # x[src]
            pl.BlockSpec((tE, c_edge_in), lambda ni, ei: (ei, 0)),  # edge_attr
            pl.BlockSpec((tN, c_in), lambda ni, ei: (ni, 0)),       # node features
            pl.BlockSpec((c_edge_in, c_eh), lambda ni, ei: (0, 0)),
            pl.BlockSpec((1, c_eh), lambda ni, ei: (0, 0)),
            pl.BlockSpec((c_eh, c_in * c_out), lambda ni, ei: (0, 0)),
            pl.BlockSpec((1, c_in * c_out), lambda ni, ei: (0, 0)),
            pl.BlockSpec((c_in, c_in * c_out), lambda ni, ei: (0, 0)),
            pl.BlockSpec((c_in, c_out), lambda ni, ei: (0, 0)),
            pl.BlockSpec((1, c_out), lambda ni, ei: (0, 0)),
        ],
        out_specs=pl.BlockSpec((tN, c_out), lambda ni, ei: (ni, 0)),
        scratch_shapes=[pltpu.VMEM((tN, c_out), jnp.float32)],
        compiler_params=pltpu.CompilerParams(
            dimension_semantics=("parallel", "arbitrary")),
        cost_estimate=pl.CostEstimate(flops=int(flops), transcendentals=0,
                                      bytes_accessed=int(bytes_accessed)),
    )(dst_p, x_src, ea, xn, w1, b1, w2, b2, rep, rootw, bias)

    return out[:N]


# ----------------------------------------------------------------------------
# Fused global_mean_pool + 3x(Linear+ReLU) + head kernel
# grid = (N_tiles "arbitrary"); sum/count accumulators in VMEM; MLP on last step.
# ----------------------------------------------------------------------------
def _pool_mlp_kernel(bidx_ref, x_ref, w1_ref, b1_ref, w2_ref, b2_ref,
                     w3_ref, b3_ref, wh_ref, bh_ref, o_ref, sum_ref, cnt_ref):
    i = pl.program_id(0)
    B = sum_ref.shape[0]
    tN = x_ref.shape[0]

    @pl.when(i == 0)
    def _():
        sum_ref[...] = jnp.zeros_like(sum_ref)
        cnt_ref[...] = jnp.zeros_like(cnt_ref)

    gid = jax.lax.broadcasted_iota(jnp.int32, (B, tN), 0)
    onehot = (bidx_ref[...] == gid).astype(jnp.float32)            # [B, tN], VMEM only
    sum_ref[...] += jnp.dot(onehot.astype(jnp.bfloat16), x_ref[...],
                            preferred_element_type=jnp.float32)
    cnt_ref[...] += jnp.sum(onehot, axis=1, keepdims=True)

    @pl.when(i == pl.num_programs(0) - 1)
    def _():
        mean = sum_ref[...] / jnp.maximum(cnt_ref[...], 1.0)
        h = jnp.maximum(jnp.dot(mean.astype(jnp.bfloat16), w1_ref[...],
                                preferred_element_type=jnp.float32) + b1_ref[...], 0.0)
        h = jnp.maximum(jnp.dot(h.astype(jnp.bfloat16), w2_ref[...],
                                preferred_element_type=jnp.float32) + b2_ref[...], 0.0)
        h = jnp.maximum(jnp.dot(h.astype(jnp.bfloat16), w3_ref[...],
                                preferred_element_type=jnp.float32) + b3_ref[...], 0.0)
        o_ref[...] = (jnp.dot(h.astype(jnp.bfloat16), wh_ref[...],
                              preferred_element_type=jnp.float32) + bh_ref[...])


def pool_mlp_head(x, batch_idx, params, num_graphs):
    N, H = x.shape
    c_out = params["head_w"].shape[1]
    B_pad = _round_up(num_graphs, 8)

    if N <= 512:
        tN = _round_up(N, 8)
        N_pad = tN
    else:
        tN = 512
        N_pad = _round_up(N, tN)

    xp = _pad_rows(x.astype(jnp.float32), N_pad).astype(jnp.bfloat16)
    bp = jnp.pad(batch_idx.astype(jnp.int32), (0, N_pad - N),
                 constant_values=-1).reshape(1, N_pad)

    w1 = params["nn_w1"].astype(jnp.bfloat16)
    b1 = params["nn_b1"].reshape(1, -1).astype(jnp.float32)
    w2 = params["nn_w2"].astype(jnp.bfloat16)
    b2 = params["nn_b2"].reshape(1, -1).astype(jnp.float32)
    w3 = params["nn_w3"].astype(jnp.bfloat16)
    b3 = params["nn_b3"].reshape(1, -1).astype(jnp.float32)
    wh = params["head_w"].astype(jnp.bfloat16)
    bh = params["head_b"].reshape(1, -1).astype(jnp.float32)

    out = pl.pallas_call(
        _pool_mlp_kernel,
        out_shape=jax.ShapeDtypeStruct((B_pad, c_out), jnp.float32),
        grid=(N_pad // tN,),
        in_specs=[
            pl.BlockSpec((1, tN), lambda i: (0, i)),     # batch_idx
            pl.BlockSpec((tN, H), lambda i: (i, 0)),     # node features
            pl.BlockSpec((H, H), lambda i: (0, 0)),
            pl.BlockSpec((1, H), lambda i: (0, 0)),
            pl.BlockSpec((H, H), lambda i: (0, 0)),
            pl.BlockSpec((1, H), lambda i: (0, 0)),
            pl.BlockSpec((H, H), lambda i: (0, 0)),
            pl.BlockSpec((1, H), lambda i: (0, 0)),
            pl.BlockSpec((H, c_out), lambda i: (0, 0)),
            pl.BlockSpec((1, c_out), lambda i: (0, 0)),
        ],
        out_specs=pl.BlockSpec((B_pad, c_out), lambda i: (0, 0)),
        scratch_shapes=[pltpu.VMEM((B_pad, H), jnp.float32),
                        pltpu.VMEM((B_pad, H), jnp.float32)],
        compiler_params=pltpu.CompilerParams(dimension_semantics=("arbitrary",)),
    )(bp, xp, w1, b1, w2, b2, w3, b3, wh, bh)

    return out[:num_graphs]


# ----------------------------------------------------------------------------
# Full forward (Dropout layers are identity in eval mode)
# ----------------------------------------------------------------------------
def graph_gnn_model_forward(params, x, edge_index, edge_attr, batch_idx, num_graphs):
    c_in = x.shape[1]
    c_hidden = params["gnn0"]["root_w"].shape[1]
    src, dst = edge_index[0], edge_index[1]

    x = nnconv_layer(x, src, dst, edge_attr, params["gnn0"], c_in, c_hidden, relu=True)
    x = nnconv_layer(x, src, dst, edge_attr, params["gnn1"], c_hidden, c_hidden, relu=False)
    return pool_mlp_head(x, batch_idx, params, num_graphs)


# ----------------------------------------------------------------------------
# Deterministic parameter construction (PyTorch-Linear-style uniform init)
# ----------------------------------------------------------------------------
def _lin_init(key, fan_in, fan_out):
    kw, kb = jax.random.split(key)
    bound = 1.0 / jnp.sqrt(jnp.float32(fan_in))
    w = jax.random.uniform(kw, (fan_in, fan_out), jnp.float32, -bound, bound)
    b = jax.random.uniform(kb, (fan_out,), jnp.float32, -bound, bound)
    return w, b


def make_params(key, c_in, c_hidden, c_out, c_edge_in, c_edge_hidden):
    keys = jax.random.split(key, 12)

    def nnconv_params(k0, k1, k2, k3, in_ch, out_ch):
        enn_w1, enn_b1 = _lin_init(k0, c_edge_in, c_edge_hidden)
        enn_w2, enn_b2 = _lin_init(k1, c_edge_hidden, in_ch * out_ch)
        root_w, _ = _lin_init(k2, in_ch, out_ch)
        _, bias = _lin_init(k3, in_ch, out_ch)
        return dict(enn_w1=enn_w1, enn_b1=enn_b1, enn_w2=enn_w2, enn_b2=enn_b2,
                    root_w=root_w, bias=bias)

    params = {
        "gnn0": nnconv_params(keys[0], keys[1], keys[2], keys[3], c_in, c_hidden),
        "gnn1": nnconv_params(keys[4], keys[5], keys[6], keys[7], c_hidden, c_hidden),
    }
    params["nn_w1"], params["nn_b1"] = _lin_init(keys[8], c_hidden, c_hidden)
    params["nn_w2"], params["nn_b2"] = _lin_init(keys[9], c_hidden, c_hidden)
    params["nn_w3"], params["nn_b3"] = _lin_init(keys[10], c_hidden, c_hidden)
    params["head_w"], params["head_b"] = _lin_init(keys[11], c_hidden, c_out)
    return params


# ----------------------------------------------------------------------------
# Pure-JAX f32 reference (for a sanity check against the bf16 kernel path)
# ----------------------------------------------------------------------------
def _reference_forward(params, x, edge_index, edge_attr, batch_idx, num_graphs):
    def enn(p, ea):
        h = jnp.maximum(ea @ p["enn_w1"] + p["enn_b1"], 0.0)
        return jnp.maximum(h @ p["enn_w2"] + p["enn_b2"], 0.0)

    def nnconv(p, xx, src, dst, c_i, c_o, relu):
        wflat = enn(p, edge_attr)
        W = wflat.reshape(-1, c_i, c_o)
        msg = jnp.einsum("ei,eio->eo", xx[src], W)
        agg = jnp.zeros((xx.shape[0], c_o), jnp.float32).at[dst].add(msg)
        y = agg + xx @ p["root_w"] + p["bias"]
        return jnp.maximum(y, 0.0) if relu else y

    src, dst = edge_index[0], edge_index[1]
    c_in = x.shape[1]
    H = params["gnn0"]["root_w"].shape[1]
    h = nnconv(params["gnn0"], x, src, dst, c_in, H, True)
    h = nnconv(params["gnn1"], h, src, dst, H, H, False)
    onehot = (batch_idx[None, :] == jnp.arange(num_graphs)[:, None]).astype(jnp.float32)
    pooled = (onehot @ h) / jnp.maximum(onehot.sum(1, keepdims=True), 1.0)
    z = jnp.maximum(pooled @ params["nn_w1"] + params["nn_b1"], 0.0)
    z = jnp.maximum(z @ params["nn_w2"] + params["nn_b2"], 0.0)
    z = jnp.maximum(z @ params["nn_w3"] + params["nn_b3"], 0.0)
    return z @ params["head_w"] + params["head_b"]


# ----------------------------------------------------------------------------
# Example run
# ----------------------------------------------------------------------------
if __name__ == "__main__":
    c_in, c_hidden, c_out = 4, 32, 3
    c_edge_in, c_edge_hidden = 6, 16
    num_graphs = 2
    nodes_per_graph = 6
    N = num_graphs * nodes_per_graph  # 12 nodes

    key = jax.random.PRNGKey(0)
    k_par, k_x, k_e = jax.random.split(key, 3)
    params = make_params(k_par, c_in, c_hidden, c_out, c_edge_in, c_edge_hidden)

    # bidirectional ring inside each of the 2 graphs -> E = 24 edges
    src_list, dst_list, batch_list = [], [], []
    for g in range(num_graphs):
        base = g * nodes_per_graph
        for n in range(nodes_per_graph):
            a = base + n
            b = base + (n + 1) % nodes_per_graph
            src_list += [a, b]
            dst_list += [b, a]
        batch_list += [g] * nodes_per_graph
    edge_index = jnp.array([src_list, dst_list], dtype=jnp.int32)  # [2, 24]
    batch_idx = jnp.array(batch_list, dtype=jnp.int32)             # [12]

    x = jax.random.normal(k_x, (N, c_in), jnp.float32)
    edge_attr = jax.random.normal(k_e, (edge_index.shape[1], c_edge_in), jnp.float32)

    fwd = jax.jit(functools.partial(graph_gnn_model_forward, num_graphs=num_graphs))
    out = jax.block_until_ready(fwd(params, x, edge_index, edge_attr, batch_idx))

    assert out.shape == (num_graphs, c_out)
    assert bool(jnp.all(jnp.isfinite(out)))

    # sanity check against f32 reference (loose tolerance: kernels use bf16 MXU operands)
    ref = _reference_forward(params, x, edge_index, edge_attr, batch_idx, num_graphs)
    err = float(jnp.max(jnp.abs(out - ref)))
    tol = 0.1 * float(jnp.max(jnp.abs(ref))) + 0.05
    assert err < tol, f"mismatch: max abs err {err} (tol {tol})"

    print("KERNEL_OK")
</pallas_src>

<mosaic_0001>
module attributes {stable_mosaic.version = 11 : i64} {
  func.func @_nnconv_kernel(%arg0: i32, %arg1: i32, %arg2: memref<1x128xi32, #tpu.memory_space<vmem>>, %arg3: memref<128x4xbf16, #tpu.memory_space<vmem>>, %arg4: memref<128x6xbf16, #tpu.memory_space<vmem>>, %arg5: memref<16x4xbf16, #tpu.memory_space<vmem>>, %arg6: memref<6x16xbf16, #tpu.memory_space<vmem>>, %arg7: memref<1x16xf32, #tpu.memory_space<vmem>>, %arg8: memref<16x128xbf16, #tpu.memory_space<vmem>>, %arg9: memref<1x128xf32, #tpu.memory_space<vmem>>, %arg10: memref<4x128xbf16, #tpu.memory_space<vmem>>, %arg11: memref<4x32xbf16, #tpu.memory_space<vmem>>, %arg12: memref<1x32xf32, #tpu.memory_space<vmem>>, %arg13: memref<16x32xf32, #tpu.memory_space<vmem>>, %arg14: memref<16x32xf32, #tpu.memory_space<vmem>>) attributes {dimension_semantics = [#tpu.dimension_semantics<parallel>, #tpu.dimension_semantics<arbitrary>], iteration_bounds = array<i64: 1, 1>, scalar_prefetch = 0 : i64, scratch_operands = 1 : i64, tpu.core_type = #tpu.core_type<tc>, window_params = [{transform_indices = @transform_0, window_bounds = array<i64: 1, 128>}, {transform_indices = @transform_1, window_bounds = array<i64: 128, 4>}, {transform_indices = @transform_2, window_bounds = array<i64: 128, 6>}, {transform_indices = @transform_3, window_bounds = array<i64: 16, 4>}, {pipeline_mode = #tpu.pipeline_mode<synchronous>, transform_indices = @transform_4, window_bounds = array<i64: 6, 16>}, {pipeline_mode = #tpu.pipeline_mode<synchronous>, transform_indices = @transform_5, window_bounds = array<i64: 1, 16>}, {pipeline_mode = #tpu.pipeline_mode<synchronous>, transform_indices = @transform_6, window_bounds = array<i64: 16, 128>}, {pipeline_mode = #tpu.pipeline_mode<synchronous>, transform_indices = @transform_7, window_bounds = array<i64: 1, 128>}, {pipeline_mode = #tpu.pipeline_mode<synchronous>, transform_indices = @transform_8, window_bounds = array<i64: 4, 128>}, {pipeline_mode = #tpu.pipeline_mode<synchronous>, transform_indices = @transform_9, window_bounds = array<i64: 4, 32>}, {pipeline_mode = #tpu.pipeline_mode<synchronous>, transform_indices = @transform_10, window_bounds = array<i64: 1, 32>}, {transform_indices = @transform_11, window_bounds = array<i64: 16, 32>}]} {
    %c0_i32 = arith.constant 0 : i32
    %0 = arith.cmpi eq, %arg1, %c0_i32 : i32
    %1 = arith.extui %0 : i1 to i32
    %c0_i32_0 = arith.constant 0 : i32
    %2 = arith.cmpi ne, %1, %c0_i32_0 : i32
    scf.if %2 {
      %c0_27 = arith.constant 0 : index
      %c0_28 = arith.constant 0 : index
      %48 = vector.load %arg5[%c0_27, %c0_28] : memref<16x4xbf16, #tpu.memory_space<vmem>>, vector<16x4xbf16>
      %c0_29 = arith.constant 0 : index
      %c0_30 = arith.constant 0 : index
      %49 = vector.load %arg11[%c0_29, %c0_30] : memref<4x32xbf16, #tpu.memory_space<vmem>>, vector<4x32xbf16>
      %cst_31 = arith.constant dense<0.000000e+00> : vector<16x32xf32>
      %50 = tpu.matmul %48, %49, %cst_31 {dimension_numbers = #tpu.dot_dimension_numbers<[1], [0], [0], [1], [0, 0, 1, 1], [], []>} : vector<16x4xbf16>, vector<4x32xbf16>, vector<16x32xf32> -> vector<16x32xf32>
      %c0_32 = arith.constant 0 : index
      %c0_33 = arith.constant 0 : index
      %51 = vector.load %arg12[%c0_32, %c0_33] : memref<1x32xf32, #tpu.memory_space<vmem>>, vector<1x32xf32>
      %52 = vector.broadcast %51 : vector<1x32xf32> to vector<16x32xf32>
      %53 = arith.addf %50, %52 : vector<16x32xf32>
      %c0_34 = arith.constant 0 : index
      %c0_35 = arith.constant 0 : index
      %54 = vector.load %arg14[%c0_34, %c0_35] : memref<16x32xf32, #tpu.memory_space<vmem>>, vector<16x32xf32>
      tpu.vector_store %arg14[%c0_34, %c0_35], %53 {strides = array<i32>} : memref<16x32xf32, #tpu.memory_space<vmem>>, vector<16x32xf32>,
    } else {
    }
    %c0 = arith.constant 0 : index
    %c0_1 = arith.constant 0 : index
    %3 = vector.load %arg4[%c0, %c0_1] : memref<128x6xbf16, #tpu.memory_space<vmem>>, vector<128x6xbf16>
    %c0_2 = arith.constant 0 : index
    %c0_3 = arith.constant 0 : index
    %4 = vector.load %arg6[%c0_2, %c0_3] : memref<6x16xbf16, #tpu.memory_space<vmem>>, vector<6x16xbf16>
    %cst = arith.constant dense<0.000000e+00> : vector<128x16xf32>
    %5 = tpu.matmul %3, %4, %cst {dimension_numbers = #tpu.dot_dimension_numbers<[1], [0], [0], [1], [0, 0, 1, 1], [], []>} : vector<128x6xbf16>, vector<6x16xbf16>, vector<128x16xf32> -> vector<128x16xf32>
    %c0_4 = arith.constant 0 : index
    %c0_5 = arith.constant 0 : index
    %6 = vector.load %arg7[%c0_4, %c0_5] : memref<1x16xf32, #tpu.memory_space<vmem>>, vector<1x16xf32>
    %7 = vector.broadcast %6 : vector<1x16xf32> to vector<128x16xf32>
    %8 = arith.addf %5, %7 : vector<128x16xf32>
    %cst_6 = arith.constant 0.000000e+00 : f32
    %9 = vector.broadcast %cst_6 : f32 to vector<128x16xf32>
    %10 = arith.maximumf %8, %9 : vector<128x16xf32>
    %11 = arith.truncf %10 : vector<128x16xf32> to vector<128x16xbf16>
    %c0_7 = arith.constant 0 : index
    %c0_8 = arith.constant 0 : index
    %12 = vector.load %arg8[%c0_7, %c0_8] : memref<16x128xbf16, #tpu.memory_space<vmem>>, vector<16x128xbf16>
    %cst_9 = arith.constant dense<0.000000e+00> : vector<128x128xf32>
    %13 = tpu.matmul %11, %12, %cst_9 {dimension_numbers = #tpu.dot_dimension_numbers<[1], [0], [0], [1], [0, 0, 1, 1], [], []>} : vector<128x16xbf16>, vector<16x128xbf16>, vector<128x128xf32> -> vector<128x128xf32>
    %c0_10 = arith.constant 0 : index
    %c0_11 = arith.constant 0 : index
    %14 = vector.load %arg9[%c0_10, %c0_11] : memref<1x128xf32, #tpu.memory_space<vmem>>, vector<1x128xf32>
    %15 = vector.broadcast %14 : vector<1x128xf32> to vector<128x128xf32>
    %16 = arith.addf %13, %15 : vector<128x128xf32>
    %cst_12 = arith.constant 0.000000e+00 : f32
    %17 = vector.broadcast %cst_12 : f32 to vector<128x128xf32>
    %18 = arith.maximumf %16, %17 : vector<128x128xf32>
    %c0_13 = arith.constant 0 : index
    %c0_14 = arith.constant 0 : index
    %19 = vector.load %arg3[%c0_13, %c0_14] : memref<128x4xbf16, #tpu.memory_space<vmem>>, vector<128x4xbf16>
    %c0_15 = arith.constant 0 : index
    %c0_16 = arith.constant 0 : index
    %20 = vector.load %arg10[%c0_15, %c0_16] : memref<4x128xbf16, #tpu.memory_space<vmem>>, vector<4x128xbf16>
    %cst_17 = arith.constant dense<0.000000e+00> : vector<128x128xf32>
    %21 = tpu.matmul %19, %20, %cst_17 {dimension_numbers = #tpu.dot_dimension_numbers<[1], [0], [0], [1], [0, 0, 1, 1], [], []>} : vector<128x4xbf16>, vector<4x128xbf16>, vector<128x128xf32> -> vector<128x128xf32>
    %22 = arith.mulf %21, %18 : vector<128x128xf32>
    %23 = vector.extract_strided_slice %22 {offsets = [0, 0], sizes = [128, 32], strides = [1, 1]} : vector<128x128xf32> to vector<128x32xf32>
    %24 = vector.extract_strided_slice %22 {offsets = [0, 32], sizes = [128, 32], strides = [1, 1]} : vector<128x128xf32> to vector<128x32xf32>
    %25 = arith.addf %23, %24 : vector<128x32xf32>
    %26 = vector.extract_strided_slice %22 {offsets = [0, 64], sizes = [128, 32], strides = [1, 1]} : vector<128x128xf32> to vector<128x32xf32>
    %27 = arith.addf %25, %26 : vector<128x32xf32>
    %28 = vector.extract_strided_slice %22 {offsets = [0, 96], sizes = [128, 32], strides = [1, 1]} : vector<128x128xf32> to vector<128x32xf32>
    %29 = arith.addf %27, %28 : vector<128x32xf32>
    %c16_i32 = arith.constant 16 : i32
    %30 = arith.muli %arg0, %c16_i32 : i32
    %31 = tpu.iota {dimensions = array<i32: 0>} : vector<16x128xi32>
    %32 = vector.broadcast %30 : i32 to vector<16x128xi32>
    %33 = arith.addi %32, %31 : vector<16x128xi32>
    %c0_18 = arith.constant 0 : index
    %c0_19 = arith.constant 0 : index
    %34 = vector.load %arg2[%c0_18, %c0_19] : memref<1x128xi32, #tpu.memory_space<vmem>>, vector<1x128xi32>
    %35 = vector.broadcast %34 : vector<1x128xi32> to vector<16x128xi32>
    %36 = arith.cmpi eq, %35, %33 : vector<16x128xi32>
    %37 = arith.extui %36 : vector<16x128xi1> to vector<16x128xi32>
    %38 = arith.sitofp %37 : vector<16x128xi32> to vector<16x128xf32>
    %c0_20 = arith.constant 0 : index
    %c0_21 = arith.constant 0 : index
    %39 = vector.load %arg14[%c0_20, %c0_21] : memref<16x32xf32, #tpu.memory_space<vmem>>, vector<16x32xf32>
    %40 = arith.truncf %38 : vector<16x128xf32> to vector<16x128xbf16>
    %41 = arith.truncf %29 : vector<128x32xf32> to vector<128x32xbf16>
    %cst_22 = arith.constant dense<0.000000e+00> : vector<16x32xf32>
    %42 = tpu.matmul %40, %41, %cst_22 {dimension_numbers = #tpu.dot_dimension_numbers<[1], [0], [0], [1], [0, 0, 1, 1], [], []>} : vector<16x128xbf16>, vector<128x32xbf16>, vector<16x32xf32> -> vector<16x32xf32>
    %43 = arith.addf %39, %42 : vector<16x32xf32>
    %c0_23 = arith.constant 0 : index
    %c0_24 = arith.constant 0 : index
    %44 = vector.load %arg14[%c0_23, %c0_24] : memref<16x32xf32, #tpu.memory_space<vmem>>, vector<16x32xf32>
    tpu.vector_store %arg14[%c0_23, %c0_24], %43 {strides = array<i32>} : memref<16x32xf32, #tpu.memory_space<vmem>>, vector<16x32xf32>,
    %c0_i32_25 = arith.constant 0 : i32
    %45 = arith.cmpi eq, %arg1, %c0_i32_25 : i32
    %46 = arith.extui %45 : i1 to i32
    %c0_i32_26 = arith.constant 0 : i32
    %47 = arith.cmpi ne, %46, %c0_i32_26 : i32
    scf.if %47 {
      %c0_27 = arith.constant 0 : index
      %c0_28 = arith.constant 0 : index
      %48 = vector.load %arg14[%c0_27, %c0_28] : memref<16x32xf32, #tpu.memory_space<vmem>>, vector<16x32xf32>
      %cst_29 = arith.constant 0.000000e+00 : f32
      %49 = vector.broadcast %cst_29 : f32 to vector<16x32xf32>
      %50 = arith.maximumf %48, %49 : vector<16x32xf32>
      %c0_30 = arith.constant 0 : index
      %c0_31 = arith.constant 0 : index
      %51 = vector.load %arg13[%c0_30, %c0_31] : memref<16x32xf32, #tpu.memory_space<vmem>>, vector<16x32xf32>
      tpu.vector_store %arg13[%c0_30, %c0_31], %50 {strides = array<i32>} : memref<16x32xf32, #tpu.memory_space<vmem>>, vector<16x32xf32>,
    } else {
    }
    return
  }
  func.func @transform_0(%arg0: i32, %arg1: i32) -> (i32, i32) {
    %c0_i32 = arith.constant 0 : i32
    %c0_i32_0 = arith.constant 0 : i32
    return %c0_i32, %arg1 : i32, i32
  }
  func.func @transform_1(%arg0: i32, %arg1: i32) -> (i32, i32) {
    %c0_i32 = arith.constant 0 : i32
    %c0_i32_0 = arith.constant 0 : i32
    return %arg1, %c0_i32 : i32, i32
  }
  func.func @transform_2(%arg0: i32, %arg1: i32) -> (i32, i32) {
    %c0_i32 = arith.constant 0 : i32
    %c0_i32_0 = arith.constant 0 : i32
    return %arg1, %c0_i32 : i32, i32
  }
  func.func @transform_3(%arg0: i32, %arg1: i32) -> (i32, i32) {
    %c0_i32 = arith.constant 0 : i32
    %c0_i32_0 = arith.constant 0 : i32
    return %arg0, %c0_i32 : i32, i32
  }
  func.func @transform_4(%arg0: i32, %arg1: i32) -> (i32, i32) {
    %c0_i32 = arith.constant 0 : i32
    %c0_i32_0 = arith.constant 0 : i32
    %c0_i32_1 = arith.constant 0 : i32
    return %c0_i32, %c0_i32_0 : i32, i32
  }
  func.func @transform_5(%arg0: i32, %arg1: i32) -> (i32, i32) {
    %c0_i32 = arith.constant 0 : i32
    %c0_i32_0 = arith.constant 0 : i32
    %c0_i32_1 = arith.constant 0 : i32
    return %c0_i32, %c0_i32_0 : i32, i32
  }
  func.func @transform_6(%arg0: i32, %arg1: i32) -> (i32, i32) {
    %c0_i32 = arith.constant 0 : i32
    %c0_i32_0 = arith.constant 0 : i32
    %c0_i32_1 = arith.constant 0 : i32
    return %c0_i32, %c0_i32_0 : i32, i32
  }
  func.func @transform_7(%arg0: i32, %arg1: i32) -> (i32, i32) {
    %c0_i32 = arith.constant 0 : i32
    %c0_i32_0 = arith.constant 0 : i32
    %c0_i32_1 = arith.constant 0 : i32
    return %c0_i32, %c0_i32_0 : i32, i32
  }
  func.func @transform_8(%arg0: i32, %arg1: i32) -> (i32, i32) {
    %c0_i32 = arith.constant 0 : i32
    %c0_i32_0 = arith.constant 0 : i32
    %c0_i32_1 = arith.constant 0 : i32
    return %c0_i32, %c0_i32_0 : i32, i32
  }
  func.func @transform_9(%arg0: i32, %arg1: i32) -> (i32, i32) {
    %c0_i32 = arith.constant 0 : i32
    %c0_i32_0 = arith.constant 0 : i32
    %c0_i32_1 = arith.constant 0 : i32
    return %c0_i32, %c0_i32_0 : i32, i32
  }
  func.func @transform_10(%arg0: i32, %arg1: i32) -> (i32, i32) {
    %c0_i32 = arith.constant 0 : i32
    %c0_i32_0 = arith.constant 0 : i32
    %c0_i32_1 = arith.constant 0 : i32
    return %c0_i32, %c0_i32_0 : i32, i32
  }
  func.func @transform_11(%arg0: i32, %arg1: i32) -> (i32, i32) {
    %c0_i32 = arith.constant 0 : i32
    %c0_i32_0 = arith.constant 0 : i32
    return %arg0, %c0_i32 : i32, i32
  }
}

module attributes {stable_mosaic.version = 11 : i64} {
  func.func @_nnconv_kernel(%arg0: i32, %arg1: i32, %arg2: memref<1x128xi32, #tpu.memory_space<vmem>>, %arg3: memref<128x32xbf16, #tpu.memory_space<vmem>>, %arg4: memref<128x6xbf16, #tpu.memory_space<vmem>>, %arg5: memref<16x32xbf16, #tpu.memory_space<vmem>>, %arg6: memref<6x16xbf16, #tpu.memory_space<vmem>>, %arg7: memref<1x16xf32, #tpu.memory_space<vmem>>, %arg8: memref<16x1024xbf16, #tpu.memory_space<vmem>>, %arg9: memref<1x1024xf32, #tpu.memory_space<vmem>>, %arg10: memref<32x1024xbf16, #tpu.memory_space<vmem>>, %arg11: memref<32x32xbf16, #tpu.memory_space<vmem>>, %arg12: memref<1x32xf32, #tpu.memory_space<vmem>>, %arg13: memref<16x32xf32, #tpu.memory_space<vmem>>, %arg14: memref<16x32xf32, #tpu.memory_space<vmem>>) attributes {dimension_semantics = [#tpu.dimension_semantics<parallel>, #tpu.dimension_semantics<arbitrary>], iteration_bounds = array<i64: 1, 1>, scalar_prefetch = 0 : i64, scratch_operands = 1 : i64, tpu.core_type = #tpu.core_type<tc>, window_params = [{transform_indices = @transform_0, window_bounds = array<i64: 1, 128>}, {transform_indices = @transform_1, window_bounds = array<i64: 128, 32>}, {transform_indices = @transform_2, window_bounds = array<i64: 128, 6>}, {transform_indices = @transform_3, window_bounds = array<i64: 16, 32>}, {pipeline_mode = #tpu.pipeline_mode<synchronous>, transform_indices = @transform_4, window_bounds = array<i64: 6, 16>}, {pipeline_mode = #tpu.pipeline_mode<synchronous>, transform_indices = @transform_5, window_bounds = array<i64: 1, 16>}, {pipeline_mode = #tpu.pipeline_mode<synchronous>, transform_indices = @transform_6, window_bounds = array<i64: 16, 1024>}, {pipeline_mode = #tpu.pipeline_mode<synchronous>, transform_indices = @transform_7, window_bounds = array<i64: 1, 1024>}, {pipeline_mode = #tpu.pipeline_mode<synchronous>, transform_indices = @transform_8, window_bounds = array<i64: 32, 1024>}, {pipeline_mode = #tpu.pipeline_mode<synchronous>, transform_indices = @transform_9, window_bounds = array<i64: 32, 32>}, {pipeline_mode = #tpu.pipeline_mode<synchronous>, transform_indices = @transform_10, window_bounds = array<i64: 1, 32>}, {transform_indices = @transform_11, window_bounds = array<i64: 16, 32>}]} {
    %c0_i32 = arith.constant 0 : i32
    %0 = arith.cmpi eq, %arg1, %c0_i32 : i32
    %1 = arith.extui %0 : i1 to i32
    %c0_i32_0 = arith.constant 0 : i32
    %2 = arith.cmpi ne, %1, %c0_i32_0 : i32
    scf.if %2 {
      %c0_27 = arith.constant 0 : index
      %c0_28 = arith.constant 0 : index
      %104 = vector.load %arg5[%c0_27, %c0_28] : memref<16x32xbf16, #tpu.memory_space<vmem>>, vector<16x32xbf16>
      %c0_29 = arith.constant 0 : index
      %c0_30 = arith.constant 0 : index
      %105 = vector.load %arg11[%c0_29, %c0_30] : memref<32x32xbf16, #tpu.memory_space<vmem>>, vector<32x32xbf16>
      %cst_31 = arith.constant dense<0.000000e+00> : vector<16x32xf32>
      %106 = tpu.matmul %104, %105, %cst_31 {dimension_numbers = #tpu.dot_dimension_numbers<[1], [0], [0], [1], [0, 0, 1, 1], [], []>} : vector<16x32xbf16>, vector<32x32xbf16>, vector<16x32xf32> -> vector<16x32xf32>
      %c0_32 = arith.constant 0 : index
      %c0_33 = arith.constant 0 : index
      %107 = vector.load %arg12[%c0_32, %c0_33] : memref<1x32xf32, #tpu.memory_space<vmem>>, vector<1x32xf32>
      %108 = vector.broadcast %107 : vector<1x32xf32> to vector<16x32xf32>
      %109 = arith.addf %106, %108 : vector<16x32xf32>
      %c0_34 = arith.constant 0 : index
      %c0_35 = arith.constant 0 : index
      %110 = vector.load %arg14[%c0_34, %c0_35] : memref<16x32xf32, #tpu.memory_space<vmem>>, vector<16x32xf32>
      tpu.vector_store %arg14[%c0_34, %c0_35], %109 {strides = array<i32>} : memref<16x32xf32, #tpu.memory_space<vmem>>, vector<16x32xf32>,
    } else {
    }
    %c0 = arith.constant 0 : index
    %c0_1 = arith.constant 0 : index
    %3 = vector.load %arg4[%c0, %c0_1] : memref<128x6xbf16, #tpu.memory_space<vmem>>, vector<128x6xbf16>
    %c0_2 = arith.constant 0 : index
    %c0_3 = arith.constant 0 : index
    %4 = vector.load %arg6[%c0_2, %c0_3] : memref<6x16xbf16, #tpu.memory_space<vmem>>, vector<6x16xbf16>
    %cst = arith.constant dense<0.000000e+00> : vector<128x16xf32>
    %5 = tpu.matmul %3, %4, %cst {dimension_numbers = #tpu.dot_dimension_numbers<[1], [0], [0], [1], [0, 0, 1, 1], [], []>} : vector<128x6xbf16>, vector<6x16xbf16>, vector<128x16xf32> -> vector<128x16xf32>
    %c0_4 = arith.constant 0 : index
    %c0_5 = arith.constant 0 : index
    %6 = vector.load %arg7[%c0_4, %c0_5] : memref<1x16xf32, #tpu.memory_space<vmem>>, vector<1x16xf32>
    %7 = vector.broadcast %6 : vector<1x16xf32> to vector<128x16xf32>
    %8 = arith.addf %5, %7 : vector<128x16xf32>
    %cst_6 = arith.constant 0.000000e+00 : f32
    %9 = vector.broadcast %cst_6 : f32 to vector<128x16xf32>
    %10 = arith.maximumf %8, %9 : vector<128x16xf32>
    %11 = arith.truncf %10 : vector<128x16xf32> to vector<128x16xbf16>
    %c0_7 = arith.constant 0 : index
    %c0_8 = arith.constant 0 : index
    %12 = vector.load %arg8[%c0_7, %c0_8] : memref<16x1024xbf16, #tpu.memory_space<vmem>>, vector<16x1024xbf16>
    %cst_9 = arith.constant dense<0.000000e+00> : vector<128x1024xf32>
    %13 = tpu.matmul %11, %12, %cst_9 {dimension_numbers = #tpu.dot_dimension_numbers<[1], [0], [0], [1], [0, 0, 1, 1], [], []>} : vector<128x16xbf16>, vector<16x1024xbf16>, vector<128x1024xf32> -> vector<128x1024xf32>
    %c0_10 = arith.constant 0 : index
    %c0_11 = arith.constant 0 : index
    %14 = vector.load %arg9[%c0_10, %c0_11] : memref<1x1024xf32, #tpu.memory_space<vmem>>, vector<1x1024xf32>
    %15 = vector.broadcast %14 : vector<1x1024xf32> to vector<128x1024xf32>
    %16 = arith.addf %13, %15 : vector<128x1024xf32>
    %cst_12 = arith.constant 0.000000e+00 : f32
    %17 = vector.broadcast %cst_12 : f32 to vector<128x1024xf32>
    %18 = arith.maximumf %16, %17 : vector<128x1024xf32>
    %c0_13 = arith.constant 0 : index
    %c0_14 = arith.constant 0 : index
    %19 = vector.load %arg3[%c0_13, %c0_14] : memref<128x32xbf16, #tpu.memory_space<vmem>>, vector<128x32xbf16>
    %c0_15 = arith.constant 0 : index
    %c0_16 = arith.constant 0 : index
    %20 = vector.load %arg10[%c0_15, %c0_16] : memref<32x1024xbf16, #tpu.memory_space<vmem>>, vector<32x1024xbf16>
    %cst_17 = arith.constant dense<0.000000e+00> : vector<128x1024xf32>
    %21 = tpu.matmul %19, %20, %cst_17 {dimension_numbers = #tpu.dot_dimension_numbers<[1], [0], [0], [1], [0, 0, 1, 1], [], []>} : vector<128x32xbf16>, vector<32x1024xbf16>, vector<128x1024xf32> -> vector<128x1024xf32>
    %22 = arith.mulf %21, %18 : vector<128x1024xf32>
    %23 = vector.extract_strided_slice %22 {offsets = [0, 0], sizes = [128, 32], strides = [1, 1]} : vector<128x1024xf32> to vector<128x32xf32>
    %24 = vector.extract_strided_slice %22 {offsets = [0, 32], sizes = [128, 32], strides = [1, 1]} : vector<128x1024xf32> to vector<128x32xf32>
    %25 = arith.addf %23, %24 : vector<128x32xf32>
    %26 = vector.extract_strided_slice %22 {offsets = [0, 64], sizes = [128, 32], strides = [1, 1]} : vector<128x1024xf32> to vector<128x32xf32>
    %27 = arith.addf %25, %26 : vector<128x32xf32>
    %28 = vector.extract_strided_slice %22 {offsets = [0, 96], sizes = [128, 32], strides = [1, 1]} : vector<128x1024xf32> to vector<128x32xf32>
    %29 = arith.addf %27, %28 : vector<128x32xf32>
    %30 = vector.extract_strided_slice %22 {offsets = [0, 128], sizes = [128, 32], strides = [1, 1]} : vector<128x1024xf32> to vector<128x32xf32>
    %31 = arith.addf %29, %30 : vector<128x32xf32>
    %32 = vector.extract_strided_slice %22 {offsets = [0, 160], sizes = [128, 32], strides = [1, 1]} : vector<128x1024xf32> to vector<128x32xf32>
    %33 = arith.addf %31, %32 : vector<128x32xf32>
    %34 = vector.extract_strided_slice %22 {offsets = [0, 192], sizes = [128, 32], strides = [1, 1]} : vector<128x1024xf32> to vector<128x32xf32>
    %35 = arith.addf %33, %34 : vector<128x32xf32>
    %36 = vector.extract_strided_slice %22 {offsets = [0, 224], sizes = [128, 32], strides = [1, 1]} : vector<128x1024xf32> to vector<128x32xf32>
    %37 = arith.addf %35, %36 : vector<128x32xf32>
    %38 = vector.extract_strided_slice %22 {offsets = [0, 256], sizes = [128, 32], strides = [1, 1]} : vector<128x1024xf32> to vector<128x32xf32>
    %39 = arith.addf %37, %38 : vector<128x32xf32>
    %40 = vector.extract_strided_slice %22 {offsets = [0, 288], sizes = [128, 32], strides = [1, 1]} : vector<128x1024xf32> to vector<128x32xf32>
    %41 = arith.addf %39, %40 : vector<128x32xf32>
    %42 = vector.extract_strided_slice %22 {offsets = [0, 320], sizes = [128, 32], strides = [1, 1]} : vector<128x1024xf32> to vector<128x32xf32>
    %43 = arith.addf %41, %42 : vector<128x32xf32>
    %44 = vector.extract_strided_slice %22 {offsets = [0, 352], sizes = [128, 32], strides = [1, 1]} : vector<128x1024xf32> to vector<128x32xf32>
    %45 = arith.addf %43, %44 : vector<128x32xf32>
    %46 = vector.extract_strided_slice %22 {offsets = [0, 384], sizes = [128, 32], strides = [1, 1]} : vector<128x1024xf32> to vector<128x32xf32>
    %47 = arith.addf %45, %46 : vector<128x32xf32>
    %48 = vector.extract_strided_slice %22 {offsets = [0, 416], sizes = [128, 32], strides = [1, 1]} : vector<128x1024xf32> to vector<128x32xf32>
    %49 = arith.addf %47, %48 : vector<128x32xf32>
    %50 = vector.extract_strided_slice %22 {offsets = [0, 448], sizes = [128, 32], strides = [1, 1]} : vector<128x1024xf32> to vector<128x32xf32>
    %51 = arith.addf %49, %50 : vector<128x32xf32>
    %52 = vector.extract_strided_slice %22 {offsets = [0, 480], sizes = [128, 32], strides = [1, 1]} : vector<128x1024xf32> to vector<128x32xf32>
    %53 = arith.addf %51, %52 : vector<128x32xf32>
    %54 = vector.extract_strided_slice %22 {offsets = [0, 512], sizes = [128, 32], strides = [1, 1]} : vector<128x1024xf32> to vector<128x32xf32>
    %55 = arith.addf %53, %54 : vector<128x32xf32>
    %56 = vector.extract_strided_slice %22 {offsets = [0, 544], sizes = [128, 32], strides = [1, 1]} : vector<128x1024xf32> to vector<128x32xf32>
    %57 = arith.addf %55, %56 : vector<128x32xf32>
    %58 = vector.extract_strided_slice %22 {offsets = [0, 576], sizes = [128, 32], strides = [1, 1]} : vector<128x1024xf32> to vector<128x32xf32>
    %59 = arith.addf %57, %58 : vector<128x32xf32>
    %60 = vector.extract_strided_slice %22 {offsets = [0, 608], sizes = [128, 32], strides = [1, 1]} : vector<128x1024xf32> to vector<128x32xf32>
    %61 = arith.addf %59, %60 : vector<128x32xf32>
    %62 = vector.extract_strided_slice %22 {offsets = [0, 640], sizes = [128, 32], strides = [1, 1]} : vector<128x1024xf32> to vector<128x32xf32>
    %63 = arith.addf %61, %62 : vector<128x32xf32>
    %64 = vector.extract_strided_slice %22 {offsets = [0, 672], sizes = [128, 32], strides = [1, 1]} : vector<128x1024xf32> to vector<128x32xf32>
    %65 = arith.addf %63, %64 : vector<128x32xf32>
    %66 = vector.extract_strided_slice %22 {offsets = [0, 704], sizes = [128, 32], strides = [1, 1]} : vector<128x1024xf32> to vector<128x32xf32>
    %67 = arith.addf %65, %66 : vector<128x32xf32>
    %68 = vector.extract_strided_slice %22 {offsets = [0, 736], sizes = [128, 32], strides = [1, 1]} : vector<128x1024xf32> to vector<128x32xf32>
    %69 = arith.addf %67, %68 : vector<128x32xf32>
    %70 = vector.extract_strided_slice %22 {offsets = [0, 768], sizes = [128, 32], strides = [1, 1]} : vector<128x1024xf32> to vector<128x32xf32>
    %71 = arith.addf %69, %70 : vector<128x32xf32>
    %72 = vector.extract_strided_slice %22 {offsets = [0, 800], sizes = [128, 32], strides = [1, 1]} : vector<128x1024xf32> to vector<128x32xf32>
    %73 = arith.addf %71, %72 : vector<128x32xf32>
    %74 = vector.extract_strided_slice %22 {offsets = [0, 832], sizes = [128, 32], strides = [1, 1]} : vector<128x1024xf32> to vector<128x32xf32>
    %75 = arith.addf %73, %74 : vector<128x32xf32>
    %76 = vector.extract_strided_slice %22 {offsets = [0, 864], sizes = [128, 32], strides = [1, 1]} : vector<128x1024xf32> to vector<128x32xf32>
    %77 = arith.addf %75, %76 : vector<128x32xf32>
    %78 = vector.extract_strided_slice %22 {offsets = [0, 896], sizes = [128, 32], strides = [1, 1]} : vector<128x1024xf32> to vector<128x32xf32>
    %79 = arith.addf %77, %78 : vector<128x32xf32>
    %80 = vector.extract_strided_slice %22 {offsets = [0, 928], sizes = [128, 32], strides = [1, 1]} : vector<128x1024xf32> to vector<128x32xf32>
    %81 = arith.addf %79, %80 : vector<128x32xf32>
    %82 = vector.extract_strided_slice %22 {offsets = [0, 960], sizes = [128, 32], strides = [1, 1]} : vector<128x1024xf32> to vector<128x32xf32>
    %83 = arith.addf %81, %82 : vector<128x32xf32>
    %84 = vector.extract_strided_slice %22 {offsets = [0, 992], sizes = [128, 32], strides = [1, 1]} : vector<128x1024xf32> to vector<128x32xf32>
    %85 = arith.addf %83, %84 : vector<128x32xf32>
    %c16_i32 = arith.constant 16 : i32
    %86 = arith.muli %arg0, %c16_i32 : i32
    %87 = tpu.iota {dimensions = array<i32: 0>} : vector<16x128xi32>
    %88 = vector.broadcast %86 : i32 to vector<16x128xi32>
    %89 = arith.addi %88, %87 : vector<16x128xi32>
    %c0_18 = arith.constant 0 : index
    %c0_19 = arith.constant 0 : index
    %90 = vector.load %arg2[%c0_18, %c0_19] : memref<1x128xi32, #tpu.memory_space<vmem>>, vector<1x128xi32>
    %91 = vector.broadcast %90 : vector<1x128xi32> to vector<16x128xi32>
    %92 = arith.cmpi eq, %91, %89 : vector<16x128xi32>
    %93 = arith.extui %92 : vector<16x128xi1> to vector<16x128xi32>
    %94 = arith.sitofp %93 : vector<16x128xi32> to vector<16x128xf32>
    %c0_20 = arith.constant 0 : index
    %c0_21 = arith.constant 0 : index
    %95 = vector.load %arg14[%c0_20, %c0_21] : memref<16x32xf32, #tpu.memory_space<vmem>>, vector<16x32xf32>
    %96 = arith.truncf %94 : vector<16x128xf32> to vector<16x128xbf16>
    %97 = arith.truncf %85 : vector<128x32xf32> to vector<128x32xbf16>
    %cst_22 = arith.constant dense<0.000000e+00> : vector<16x32xf32>
    %98 = tpu.matmul %96, %97, %cst_22 {dimension_numbers = #tpu.dot_dimension_numbers<[1], [0], [0], [1], [0, 0, 1, 1], [], []>} : vector<16x128xbf16>, vector<128x32xbf16>, vector<16x32xf32> -> vector<16x32xf32>
    %99 = arith.addf %95, %98 : vector<16x32xf32>
    %c0_23 = arith.constant 0 : index
    %c0_24 = arith.constant 0 : index
    %100 = vector.load %arg14[%c0_23, %c0_24] : memref<16x32xf32, #tpu.memory_space<vmem>>, vector<16x32xf32>
    tpu.vector_store %arg14[%c0_23, %c0_24], %99 {strides = array<i32>} : memref<16x32xf32, #tpu.memory_space<vmem>>, vector<16x32xf32>,
    %c0_i32_25 = arith.constant 0 : i32
    %101 = arith.cmpi eq, %arg1, %c0_i32_25 : i32
    %102 = arith.extui %101 : i1 to i32
    %c0_i32_26 = arith.constant 0 : i32
    %103 = arith.cmpi ne, %102, %c0_i32_26 : i32
    scf.if %103 {
      %c0_27 = arith.constant 0 : index
      %c0_28 = arith.constant 0 : index
      %104 = vector.load %arg14[%c0_27, %c0_28] : memref<16x32xf32, #tpu.memory_space<vmem>>, vector<16x32xf32>
      %c0_29 = arith.constant 0 : index
      %c0_30 = arith.constant 0 : index
      %105 = vector.load %arg13[%c0_29, %c0_30] : memref<16x32xf32, #tpu.memory_space<vmem>>, vector<16x32xf32>
      tpu.vector_store %arg13[%c0_29, %c0_30], %104 {strides = array<i32>} : memref<16x32xf32, #tpu.memory_space<vmem>>, vector<16x32xf32>,
    } else {
    }
    return
  }
  func.func @transform_0(%arg0: i32, %arg1: i32) -> (i32, i32) {
    %c0_i32 = arith.constant 0 : i32
    %c0_i32_0 = arith.constant 0 : i32
    return %c0_i32, %arg1 : i32, i32
  }
  func.func @transform_1(%arg0: i32, %arg1: i32) -> (i32, i32) {
    %c0_i32 = arith.constant 0 : i32
    %c0_i32_0 = arith.constant 0 : i32
    return %arg1, %c0_i32 : i32, i32
  }
  func.func @transform_2(%arg0: i32, %arg1: i32) -> (i32, i32) {
    %c0_i32 = arith.constant 0 : i32
    %c0_i32_0 = arith.constant 0 : i32
    return %arg1, %c0_i32 : i32, i32
  }
  func.func @transform_3(%arg0: i32, %arg1: i32) -> (i32, i32) {
    %c0_i32 = arith.constant 0 : i32
    %c0_i32_0 = arith.constant 0 : i32
    return %arg0, %c0_i32 : i32, i32
  }
  func.func @transform_4(%arg0: i32, %arg1: i32) -> (i32, i32) {
    %c0_i32 = arith.constant 0 : i32
    %c0_i32_0 = arith.constant 0 : i32
    %c0_i32_1 = arith.constant 0 : i32
    return %c0_i32, %c0_i32_0 : i32, i32
  }
  func.func @transform_5(%arg0: i32, %arg1: i32) -> (i32, i32) {
    %c0_i32 = arith.constant 0 : i32
    %c0_i32_0 = arith.constant 0 : i32
    %c0_i32_1 = arith.constant 0 : i32
    return %c0_i32, %c0_i32_0 : i32, i32
  }
  func.func @transform_6(%arg0: i32, %arg1: i32) -> (i32, i32) {
    %c0_i32 = arith.constant 0 : i32
    %c0_i32_0 = arith.constant 0 : i32
    %c0_i32_1 = arith.constant 0 : i32
    return %c0_i32, %c0_i32_0 : i32, i32
  }
  func.func @transform_7(%arg0: i32, %arg1: i32) -> (i32, i32) {
    %c0_i32 = arith.constant 0 : i32
    %c0_i32_0 = arith.constant 0 : i32
    %c0_i32_1 = arith.constant 0 : i32
    return %c0_i32, %c0_i32_0 : i32, i32
  }
  func.func @transform_8(%arg0: i32, %arg1: i32) -> (i32, i32) {
    %c0_i32 = arith.constant 0 : i32
    %c0_i32_0 = arith.constant 0 : i32
    %c0_i32_1 = arith.constant 0 : i32
    return %c0_i32, %c0_i32_0 : i32, i32
  }
  func.func @transform_9(%arg0: i32, %arg1: i32) -> (i32, i32) {
    %c0_i32 = arith.constant 0 : i32
    %c0_i32_0 = arith.constant 0 : i32
    %c0_i32_1 = arith.constant 0 : i32
    return %c0_i32, %c0_i32_0 : i32, i32
  }
  func.func @transform_10(%arg0: i32, %arg1: i32) -> (i32, i32) {
    %c0_i32 = arith.constant 0 : i32
    %c0_i32_0 = arith.constant 0 : i32
    %c0_i32_1 = arith.constant 0 : i32
    return %c0_i32, %c0_i32_0 : i32, i32
  }
  func.func @transform_11(%arg0: i32, %arg1: i32) -> (i32, i32) {
    %c0_i32 = arith.constant 0 : i32
    %c0_i32_0 = arith.constant 0 : i32
    return %arg0, %c0_i32 : i32, i32
  }
}

module attributes {stable_mosaic.version = 11 : i64} {
  func.func @_pool_mlp_kernel(%arg0: i32, %arg1: memref<1x16xi32, #tpu.memory_space<vmem>>, %arg2: memref<16x32xbf16, #tpu.memory_space<vmem>>, %arg3: memref<32x32xbf16, #tpu.memory_space<vmem>>, %arg4: memref<1x32xf32, #tpu.memory_space<vmem>>, %arg5: memref<32x32xbf16, #tpu.memory_space<vmem>>, %arg6: memref<1x32xf32, #tpu.memory_space<vmem>>, %arg7: memref<32x32xbf16, #tpu.memory_space<vmem>>, %arg8: memref<1x32xf32, #tpu.memory_space<vmem>>, %arg9: memref<32x3xbf16, #tpu.memory_space<vmem>>, %arg10: memref<1x3xf32, #tpu.memory_space<vmem>>, %arg11: memref<8x3xf32, #tpu.memory_space<vmem>>, %arg12: memref<8x32xf32, #tpu.memory_space<vmem>>, %arg13: memref<8x32xf32, #tpu.memory_space<vmem>>) attributes {dimension_semantics = [#tpu.dimension_semantics<arbitrary>], iteration_bounds = array<i64: 1>, scalar_prefetch = 0 : i64, scratch_operands = 2 : i64, tpu.core_type = #tpu.core_type<tc>, window_params = [{transform_indices = @transform_0, window_bounds = array<i64: 1, 16>}, {transform_indices = @transform_1, window_bounds = array<i64: 16, 32>}, {pipeline_mode = #tpu.pipeline_mode<synchronous>, transform_indices = @transform_2, window_bounds = array<i64: 32, 32>}, {pipeline_mode = #tpu.pipeline_mode<synchronous>, transform_indices = @transform_3, window_bounds = array<i64: 1, 32>}, {pipeline_mode = #tpu.pipeline_mode<synchronous>, transform_indices = @transform_4, window_bounds = array<i64: 32, 32>}, {pipeline_mode = #tpu.pipeline_mode<synchronous>, transform_indices = @transform_5, window_bounds = array<i64: 1, 32>}, {pipeline_mode = #tpu.pipeline_mode<synchronous>, transform_indices = @transform_6, window_bounds = array<i64: 32, 32>}, {pipeline_mode = #tpu.pipeline_mode<synchronous>, transform_indices = @transform_7, window_bounds = array<i64: 1, 32>}, {pipeline_mode = #tpu.pipeline_mode<synchronous>, transform_indices = @transform_8, window_bounds = array<i64: 32, 3>}, {pipeline_mode = #tpu.pipeline_mode<synchronous>, transform_indices = @transform_9, window_bounds = array<i64: 1, 3>}, {pipeline_mode = #tpu.pipeline_mode<synchronous>, transform_indices = @transform_10, window_bounds = array<i64: 8, 3>}]} {
    %c0_i32 = arith.constant 0 : i32
    %0 = arith.cmpi eq, %arg0, %c0_i32 : i32
    %1 = arith.extui %0 : i1 to i32
    %c0_i32_0 = arith.constant 0 : i32
    %2 = arith.cmpi ne, %1, %c0_i32_0 : i32
    scf.if %2 {
      %cst_15 = arith.constant 0.000000e+00 : f32
      %24 = vector.broadcast %cst_15 : f32 to vector<8x32xf32>
      %c0_16 = arith.constant 0 : index
      %c0_17 = arith.constant 0 : index
      %25 = vector.load %arg12[%c0_16, %c0_17] : memref<8x32xf32, #tpu.memory_space<vmem>>, vector<8x32xf32>
      tpu.vector_store %arg12[%c0_16, %c0_17], %24 {strides = array<i32>} : memref<8x32xf32, #tpu.memory_space<vmem>>, vector<8x32xf32>,
      %cst_18 = arith.constant 0.000000e+00 : f32
      %26 = vector.broadcast %cst_18 : f32 to vector<8x32xf32>
      %c0_19 = arith.constant 0 : index
      %c0_20 = arith.constant 0 : index
      %27 = vector.load %arg13[%c0_19, %c0_20] : memref<8x32xf32, #tpu.memory_space<vmem>>, vector<8x32xf32>
      tpu.vector_store %arg13[%c0_19, %c0_20], %26 {strides = array<i32>} : memref<8x32xf32, #tpu.memory_space<vmem>>, vector<8x32xf32>,
    } else {
    }
    %3 = tpu.iota {dimensions = array<i32: 0>} : vector<8x16xi32>
    %c0 = arith.constant 0 : index
    %c0_1 = arith.constant 0 : index
    %4 = vector.load %arg1[%c0, %c0_1] : memref<1x16xi32, #tpu.memory_space<vmem>>, vector<1x16xi32>
    %5 = vector.broadcast %4 : vector<1x16xi32> to vector<8x16xi32>
    %6 = arith.cmpi eq, %5, %3 : vector<8x16xi32>
    %7 = arith.extui %6 : vector<8x16xi1> to vector<8x16xi32>
    %8 = arith.sitofp %7 : vector<8x16xi32> to vector<8x16xf32>
    %c0_2 = arith.constant 0 : index
    %c0_3 = arith.constant 0 : index
    %9 = vector.load %arg12[%c0_2, %c0_3] : memref<8x32xf32, #tpu.memory_space<vmem>>, vector<8x32xf32>
    %10 = arith.truncf %8 : vector<8x16xf32> to vector<8x16xbf16>
    %c0_4 = arith.constant 0 : index
    %c0_5 = arith.constant 0 : index
    %11 = vector.load %arg2[%c0_4, %c0_5] : memref<16x32xbf16, #tpu.memory_space<vmem>>, vector<16x32xbf16>
    %cst = arith.constant dense<0.000000e+00> : vector<8x32xf32>
    %12 = tpu.matmul %10, %11, %cst {dimension_numbers = #tpu.dot_dimension_numbers<[1], [0], [0], [1], [0, 0, 1, 1], [], []>} : vector<8x16xbf16>, vector<16x32xbf16>, vector<8x32xf32> -> vector<8x32xf32>
    %13 = arith.addf %9, %12 : vector<8x32xf32>
    %c0_6 = arith.constant 0 : index
    %c0_7 = arith.constant 0 : index
    %14 = vector.load %arg12[%c0_6, %c0_7] : memref<8x32xf32, #tpu.memory_space<vmem>>, vector<8x32xf32>
    tpu.vector_store %arg12[%c0_6, %c0_7], %13 {strides = array<i32>} : memref<8x32xf32, #tpu.memory_space<vmem>>, vector<8x32xf32>,
    %c0_8 = arith.constant 0 : index
    %c0_9 = arith.constant 0 : index
    %15 = vector.load %arg13[%c0_8, %c0_9] : memref<8x32xf32, #tpu.memory_space<vmem>>, vector<8x32xf32>
    %cst_10 = arith.constant dense<0.000000e+00> : vector<8xf32>
    %16 = vector.multi_reduction <add>, %8, %cst_10 [1] : vector<8x16xf32> to vector<8xf32>
    %17 = vector.shape_cast %16 : vector<8xf32> to vector<8x1xf32>
    %18 = vector.broadcast %17 : vector<8x1xf32> to vector<8x32xf32>
    %19 = arith.addf %15, %18 : vector<8x32xf32>
    %c0_11 = arith.constant 0 : index
    %c0_12 = arith.constant 0 : index
    %20 = vector.load %arg13[%c0_11, %c0_12] : memref<8x32xf32, #tpu.memory_space<vmem>>, vector<8x32xf32>
    tpu.vector_store %arg13[%c0_11, %c0_12], %19 {strides = array<i32>} : memref<8x32xf32, #tpu.memory_space<vmem>>, vector<8x32xf32>,
    %c0_i32_13 = arith.constant 0 : i32
    %21 = arith.cmpi eq, %arg0, %c0_i32_13 : i32
    %22 = arith.extui %21 : i1 to i32
    %c0_i32_14 = arith.constant 0 : i32
    %23 = arith.cmpi ne, %22, %c0_i32_14 : i32
    scf.if %23 {
      %c0_15 = arith.constant 0 : index
      %c0_16 = arith.constant 0 : index
      %24 = vector.load %arg12[%c0_15, %c0_16] : memref<8x32xf32, #tpu.memory_space<vmem>>, vector<8x32xf32>
      %c0_17 = arith.constant 0 : index
      %c0_18 = arith.constant 0 : index
      %25 = vector.load %arg13[%c0_17, %c0_18] : memref<8x32xf32, #tpu.memory_space<vmem>>, vector<8x32xf32>
      %cst_19 = arith.constant 1.000000e+00 : f32
      %26 = vector.broadcast %cst_19 : f32 to vector<8x32xf32>
      %27 = arith.maximumf %25, %26 : vector<8x32xf32>
      %28 = arith.divf %24, %27 : vector<8x32xf32>
      %29 = arith.truncf %28 : vector<8x32xf32> to vector<8x32xbf16>
      %c0_20 = arith.constant 0 : index
      %c0_21 = arith.constant 0 : index
      %30 = vector.load %arg3[%c0_20, %c0_21] : memref<32x32xbf16, #tpu.memory_space<vmem>>, vector<32x32xbf16>
      %cst_22 = arith.constant dense<0.000000e+00> : vector<8x32xf32>
      %31 = tpu.matmul %29, %30, %cst_22 {dimension_numbers = #tpu.dot_dimension_numbers<[1], [0], [0], [1], [0, 0, 1, 1], [], []>} : vector<8x32xbf16>, vector<32x32xbf16>, vector<8x32xf32> -> vector<8x32xf32>
      %c0_23 = arith.constant 0 : index
      %c0_24 = arith.constant 0 : index
      %32 = vector.load %arg4[%c0_23, %c0_24] : memref<1x32xf32, #tpu.memory_space<vmem>>, vector<1x32xf32>
      %33 = vector.broadcast %32 : vector<1x32xf32> to vector<8x32xf32>
      %34 = arith.addf %31, %33 : vector<8x32xf32>
      %cst_25 = arith.constant 0.000000e+00 : f32
      %35 = vector.broadcast %cst_25 : f32 to vector<8x32xf32>
      %36 = arith.maximumf %34, %35 : vector<8x32xf32>
      %37 = arith.truncf %36 : vector<8x32xf32> to vector<8x32xbf16>
      %c0_26 = arith.constant 0 : index
      %c0_27 = arith.constant 0 : index
      %38 = vector.load %arg5[%c0_26, %c0_27] : memref<32x32xbf16, #tpu.memory_space<vmem>>, vector<32x32xbf16>
      %cst_28 = arith.constant dense<0.000000e+00> : vector<8x32xf32>
      %39 = tpu.matmul %37, %38, %cst_28 {dimension_numbers = #tpu.dot_dimension_numbers<[1], [0], [0], [1], [0, 0, 1, 1], [], []>} : vector<8x32xbf16>, vector<32x32xbf16>, vector<8x32xf32> -> vector<8x32xf32>
      %c0_29 = arith.constant 0 : index
      %c0_30 = arith.constant 0 : index
      %40 = vector.load %arg6[%c0_29, %c0_30] : memref<1x32xf32, #tpu.memory_space<vmem>>, vector<1x32xf32>
      %41 = vector.broadcast %40 : vector<1x32xf32> to vector<8x32xf32>
      %42 = arith.addf %39, %41 : vector<8x32xf32>
      %cst_31 = arith.constant 0.000000e+00 : f32
      %43 = vector.broadcast %cst_31 : f32 to vector<8x32xf32>
      %44 = arith.maximumf %42, %43 : vector<8x32xf32>
      %45 = arith.truncf %44 : vector<8x32xf32> to vector<8x32xbf16>
      %c0_32 = arith.constant 0 : index
      %c0_33 = arith.constant 0 : index
      %46 = vector.load %arg7[%c0_32, %c0_33] : memref<32x32xbf16, #tpu.memory_space<vmem>>, vector<32x32xbf16>
      %cst_34 = arith.constant dense<0.000000e+00> : vector<8x32xf32>
      %47 = tpu.matmul %45, %46, %cst_34 {dimension_numbers = #tpu.dot_dimension_numbers<[1], [0], [0], [1], [0, 0, 1, 1], [], []>} : vector<8x32xbf16>, vector<32x32xbf16>, vector<8x32xf32> -> vector<8x32xf32>
      %c0_35 = arith.constant 0 : index
      %c0_36 = arith.constant 0 : index
      %48 = vector.load %arg8[%c0_35, %c0_36] : memref<1x32xf32, #tpu.memory_space<vmem>>, vector<1x32xf32>
      %49 = vector.broadcast %48 : vector<1x32xf32> to vector<8x32xf32>
      %50 = arith.addf %47, %49 : vector<8x32xf32>
      %cst_37 = arith.constant 0.000000e+00 : f32
      %51 = vector.broadcast %cst_37 : f32 to vector<8x32xf32>
      %52 = arith.maximumf %50, %51 : vector<8x32xf32>
      %53 = arith.truncf %52 : vector<8x32xf32> to vector<8x32xbf16>
      %c0_38 = arith.constant 0 : index
      %c0_39 = arith.constant 0 : index
      %54 = vector.load %arg9[%c0_38, %c0_39] : memref<32x3xbf16, #tpu.memory_space<vmem>>, vector<32x3xbf16>
      %cst_40 = arith.constant dense<0.000000e+00> : vector<8x3xf32>
      %55 = tpu.matmul %53, %54, %cst_40 {dimension_numbers = #tpu.dot_dimension_numbers<[1], [0], [0], [1], [0, 0, 1, 1], [], []>} : vector<8x32xbf16>, vector<32x3xbf16>, vector<8x3xf32> -> vector<8x3xf32>
      %c0_41 = arith.constant 0 : index
      %c0_42 = arith.constant 0 : index
      %56 = vector.load %arg10[%c0_41, %c0_42] : memref<1x3xf32, #tpu.memory_space<vmem>>, vector<1x3xf32>
      %57 = vector.broadcast %56 : vector<1x3xf32> to vector<8x3xf32>
      %58 = arith.addf %55, %57 : vector<8x3xf32>
      %c0_43 = arith.constant 0 : index
      %c0_44 = arith.constant 0 : index
      %59 = vector.load %arg11[%c0_43, %c0_44] : memref<8x3xf32, #tpu.memory_space<vmem>>, vector<8x3xf32>
      tpu.vector_store %arg11[%c0_43, %c0_44], %58 {strides = array<i32>} : memref<8x3xf32, #tpu.memory_space<vmem>>, vector<8x3xf32>,
    } else {
    }
    return
  }
  func.func @transform_0(%arg0: i32) -> (i32, i32) {
    %c0_i32 = arith.constant 0 : i32
    %c0_i32_0 = arith.constant 0 : i32
    return %c0_i32, %arg0 : i32, i32
  }
  func.func @transform_1(%arg0: i32) -> (i32, i32) {
    %c0_i32 = arith.constant 0 : i32
    %c0_i32_0 = arith.constant 0 : i32
    return %arg0, %c0_i32 : i32, i32
  }
  func.func @transform_2(%arg0: i32) -> (i32, i32) {
    %c0_i32 = arith.constant 0 : i32
    %c0_i32_0 = arith.constant 0 : i32
    %c0_i32_1 = arith.constant 0 : i32
    return %c0_i32, %c0_i32_0 : i32, i32
  }
  func.func @transform_3(%arg0: i32) -> (i32, i32) {
    %c0_i32 = arith.constant 0 : i32
    %c0_i32_0 = arith.constant 0 : i32
    %c0_i32_1 = arith.constant 0 : i32
    return %c0_i32, %c0_i32_0 : i32, i32
  }
  func.func @transform_4(%arg0: i32) -> (i32, i32) {
    %c0_i32 = arith.constant 0 : i32
    %c0_i32_0 = arith.constant 0 : i32
    %c0_i32_1 = arith.constant 0 : i32
    return %c0_i32, %c0_i32_0 : i32, i32
  }
  func.func @transform_5(%arg0: i32) -> (i32, i32) {
    %c0_i32 = arith.constant 0 : i32
    %c0_i32_0 = arith.constant 0 : i32
    %c0_i32_1 = arith.constant 0 : i32
    return %c0_i32, %c0_i32_0 : i32, i32
  }
  func.func @transform_6(%arg0: i32) -> (i32, i32) {
    %c0_i32 = arith.constant 0 : i32
    %c0_i32_0 = arith.constant 0 : i32
    %c0_i32_1 = arith.constant 0 : i32
    return %c0_i32, %c0_i32_0 : i32, i32
  }
  func.func @transform_7(%arg0: i32) -> (i32, i32) {
    %c0_i32 = arith.constant 0 : i32
    %c0_i32_0 = arith.constant 0 : i32
    %c0_i32_1 = arith.constant 0 : i32
    return %c0_i32, %c0_i32_0 : i32, i32
  }
  func.func @transform_8(%arg0: i32) -> (i32, i32) {
    %c0_i32 = arith.constant 0 : i32
    %c0_i32_0 = arith.constant 0 : i32
    %c0_i32_1 = arith.constant 0 : i32
    return %c0_i32, %c0_i32_0 : i32, i32
  }
  func.func @transform_9(%arg0: i32) -> (i32, i32) {
    %c0_i32 = arith.constant 0 : i32
    %c0_i32_0 = arith.constant 0 : i32
    %c0_i32_1 = arith.constant 0 : i32
    return %c0_i32, %c0_i32_0 : i32, i32
  }
  func.func @transform_10(%arg0: i32) -> (i32, i32) {
    %c0_i32 = arith.constant 0 : i32
    %c0_i32_0 = arith.constant 0 : i32
    %c0_i32_1 = arith.constant 0 : i32
    return %c0_i32, %c0_i32_0 : i32, i32
  }
}

</mosaic_0001>

<llo_original>
// kernel: graph_gnn_model_forward.5
$region0: #{graph_gnn_model_forward.5}
  #allocation0 [shape = 'u32[]', space=smem, size = 0x4, offset = 0x4, fixed_abs, tag = 'smem constant byte address 0x4 - core index']
  #allocation1 [shape = 'u32[144,128]{1,0:T(1,128)}', space=vmem, size = 0x12000, scoped, tag = 'internal scratch']
  #allocation2 [shape = 'f32[8,32]{1,0:T(8,128)}', space=vmem, size = 0x1000, scoped, tag = 'scratch operand']
  #allocation3 [shape = 'f32[8,32]{1,0:T(8,128)}', space=vmem, size = 0x1000, scoped, tag = 'scratch operand']
  %s0 = inlined_call_operand.vmem [shape: s32[1,16], index: 0, kind: input, shape index: {}]
  %s1 = inlined_call_operand.vmem [shape: bf16[16,32], index: 1, kind: input, shape index: {}]
  %s2 = inlined_call_operand.vmem [shape: bf16[32,32], index: 2, kind: input, shape index: {}]
  %s3 = inlined_call_operand.vmem [shape: f32[1,32], index: 3, kind: input, shape index: {}]
  %s4 = inlined_call_operand.vmem [shape: bf16[32,32], index: 4, kind: input, shape index: {}]
  %s5 = inlined_call_operand.vmem [shape: f32[1,32], index: 5, kind: input, shape index: {}]
  %s6 = inlined_call_operand.vmem [shape: bf16[32,32], index: 6, kind: input, shape index: {}]
  %s7 = inlined_call_operand.vmem [shape: f32[1,32], index: 7, kind: input, shape index: {}]
  %s8 = inlined_call_operand.vmem [shape: bf16[32,3], index: 8, kind: input, shape index: {}]
  %s9 = inlined_call_operand.vmem [shape: f32[1,3], index: 9, kind: input, shape index: {}]
  %s10 = inlined_call_operand.vmem [shape: f32[8,3], index: 10, kind: output, shape index: {}]
  %s11 = sld [smem:[#allocation0]]
  $region58: #{graph_gnn_model_forward.5} parent=0
    _
  %s13 = ssub.s32 1, %s11
  %s14 = scalar_select 0, %s13, %s11
  // Predicated region
  $region2: #{graph_gnn_model_forward.5} parent=0 // pred_check
    _
  $region3: #{graph_gnn_model_forward.5} parent=0 // pred_check_branch
    %16 = sbr.rel (0) target = $region5
  $region4: #{graph_gnn_model_forward.5} parent=0 // pred_region
    _
  $region5: #{graph_gnn_model_forward.5} parent=0 // pred_fallthru
    _
  // Predicated region
  $region6: #{graph_gnn_model_forward.5} parent=0 // pred_check
    _
  $region7: #{graph_gnn_model_forward.5} parent=0 // pred_check_branch
    %18 = sbr.rel (0) target = $region9
  $region8: #{graph_gnn_model_forward.5} parent=0 // pred_region
    _
  $region9: #{graph_gnn_model_forward.5} parent=0 // pred_fallthru
    _
  // Predicated region
  $region10: #{graph_gnn_model_forward.5} parent=0 // pred_check
    _
  $region11: #{graph_gnn_model_forward.5} parent=0 // pred_check_branch
    %20 = sbr.rel (0) target = $region13
  $region12: #{graph_gnn_model_forward.5} parent=0 // pred_region
    _
  $region13: #{graph_gnn_model_forward.5} parent=0 // pred_fallthru
    _
  // Predicated region
  $region14: #{graph_gnn_model_forward.5} parent=0 // pred_check
    _
  $region15: #{graph_gnn_model_forward.5} parent=0 // pred_check_branch
    %22 = sbr.rel (0) target = $region17
  $region16: #{graph_gnn_model_forward.5} parent=0 // pred_region
    _
  $region17: #{graph_gnn_model_forward.5} parent=0 // pred_fallthru
    _
  // Predicated region
  $region18: #{graph_gnn_model_forward.5} parent=0 // pred_check
    _
  $region19: #{graph_gnn_model_forward.5} parent=0 // pred_check_branch
    %24 = sbr.rel (0) target = $region21
  $region20: #{graph_gnn_model_forward.5} parent=0 // pred_region
    _
  $region21: #{graph_gnn_model_forward.5} parent=0 // pred_fallthru
    _
  // Predicated region
  $region22: #{graph_gnn_model_forward.5} parent=0 // pred_check
    _
  $region23: #{graph_gnn_model_forward.5} parent=0 // pred_check_branch
    %26 = sbr.rel (0) target = $region25
  $region24: #{graph_gnn_model_forward.5} parent=0 // pred_region
    _
  $region25: #{graph_gnn_model_forward.5} parent=0 // pred_fallthru
    _
  // Predicated region
  $region26: #{graph_gnn_model_forward.5} parent=0 // pred_check
    _
  $region27: #{graph_gnn_model_forward.5} parent=0 // pred_check_branch
    %28 = sbr.rel (0) target = $region29
  $region28: #{graph_gnn_model_forward.5} parent=0 // pred_region
    _
  $region29: #{graph_gnn_model_forward.5} parent=0 // pred_fallthru
    _
  // Predicated region
  $region30: #{graph_gnn_model_forward.5} parent=0 // pred_check
    _
  $region31: #{graph_gnn_model_forward.5} parent=0 // pred_check_branch
    %30 = sbr.rel (0) target = $region33
  $region32: #{graph_gnn_model_forward.5} parent=0 // pred_region
    _
  $region33: #{graph_gnn_model_forward.5} parent=0 // pred_fallthru
    _
  // Predicated region
  $region34: #{graph_gnn_model_forward.5} parent=0 // pred_check
    _
  $region35: #{graph_gnn_model_forward.5} parent=0 // pred_check_branch
    %32 = sbr.rel (0) target = $region37
  $region36: #{graph_gnn_model_forward.5} parent=0 // pred_region
    _
  $region37: #{graph_gnn_model_forward.5} parent=0 // pred_fallthru
    _
  // Predicated region
  $region38: #{graph_gnn_model_forward.5} parent=0 // pred_check
    _
  $region39: #{graph_gnn_model_forward.5} parent=0 // pred_check_branch
    %34 = sbr.rel (0) target = $region41
  $region40: #{graph_gnn_model_forward.5} parent=0 // pred_region
    _
  $region41: #{graph_gnn_model_forward.5} parent=0 // pred_fallthru
    _
  %p36 = scmp.eq.s32.totalorder 0, 0
  // Predicated region
  $region42: #{graph_gnn_model_forward.5} parent=0 // pred_check
    %p37 = pneg %p36
  $region43: #{graph_gnn_model_forward.5} parent=0 // pred_check_branch
    %39 = sbr.rel (%p37) target = $region45
  $region44: #{graph_gnn_model_forward.5} parent=0 // pred_region
    %vm40 = vcmask 261120
    %41 = vst.msk [vmem:[#allocation2] sm:$0xff] %vm40, 0.0
    %42 = vst.msk [vmem:[#allocation3] sm:$0xff] %vm40, 0.0
  $region45: #{graph_gnn_model_forward.5} parent=0 // pred_fallthru
    _
  %v43 = vlaneseq
  %v44 = vshrl.u32 %v43, 7
  %v45 = vld [vmem:[%s0] sm:$0x1]
  %v46 = vlaneseq
  %v47 = vshrl.u32 %v46, 7
  %v48 = vsub.s32 0, %v47
  %v49 = vrot.slane %v45, %v48
  %vm50 = vcmp.eq.s32.totalorder %v49, %v44
  %v51 = vsel %vm50, 1, 0
  %v52 = vcvt.s32.f32 %v51
  %v53 = vld [vmem:[#allocation2] sm:$0xff]
  %v54 = vpack.c.bf16 %v52, %v52
  %v55 = vld [vmem:[%s1] sm:$0xf]
  %v56 = vld [vmem:[%s1 + $0x4] sm:$0xf]
  %v59 = vunpack.c.l.b16 %v55
  %v60 = vunpack.c.l.b16 %v56
  %v61 = vpack.c.b16 %v60, %v59
  %vm63 = vcmask 130048
  %v65 = vsel %vm63, %v54, 0
  %67 = vmatprep.subr.bf16.mxu0 0
  %68 = vmatpush1.bf16.msra.mxu0 %v61
  %69 = vmatprep.subr.bf16.mxu0 0
  %70 = vmatpush1.bf16.msra.mxu0 0
  %71 = vmatprep.subr.bf16.mxu0 0
  %72 = vmatpush1.bf16.msra.mxu0 0
  %73 = vmatprep.subr.bf16.mxu0 0
  %74 = vmatpush1.bf16.msra.mxu0 0
  %75 = vmatprep.subr.bf16.mxu0 0
  %76 = vmatpush1.bf16.msra.mxu0 0
  %77 = vmatprep.subr.bf16.mxu0 0
  %78 = vmatpush1.bf16.msra.mxu0 0
  %79 = vmatprep.subr.bf16.mxu0 0
  %80 = vmatpush1.bf16.msra.mxu0 0
  %81 = vmatprep.subr.bf16.mxu0 0
  %82 = vmatpush1.bf16.msra.mxu0 0
  %83 = vmatprep.subr.bf16.mxu0 0
  %84 = vmatpush1.bf16.msra.mxu0 0
  %85 = vmatprep.subr.bf16.mxu0 0
  %86 = vmatpush1.bf16.msra.mxu0 0
  %87 = vmatprep.subr.bf16.mxu0 0
  %88 = vmatpush1.bf16.msra.mxu0 0
  %89 = vmatprep.subr.bf16.mxu0 0
  %90 = vmatpush1.bf16.msra.mxu0 0
  %91 = vmatprep.subr.bf16.mxu0 0
  %92 = vmatpush1.bf16.msra.mxu0 0
  %93 = vmatprep.subr.bf16.mxu0 0
  %94 = vmatpush1.bf16.msra.mxu0 0
  %95 = vmatprep.subr.bf16.mxu0 0
  %96 = vmatpush1.bf16.msra.mxu0 0
  %97 = vmatprep.subr.bf16.mxu0 0
  %98 = vmatpush1.bf16.msra.mxu0 0
  %99 = vmatprep.mubr.bf16.mxu0 0
  %100 = vmatmul.mubr.bf16.gmra.mrb[0].mxu0 %v65
  %v101 = vpop.f32.mrb[0].mxu0
  %v102 = vadd.f32 0.0, %v101
  %v103 = vpop.f32.mrb[0].mxu0
  %v104 = vpop.f32.mrb[0].mxu0
  %v105 = vpop.f32.mrb[0].mxu0
  %106 = vdwg.mxu0
  %v107 = vadd.f32 %v53, %v102
  %vm108 = vcmask 261120
  %109 = vst.msk [vmem:[#allocation2] sm:$0xff] %vm108, %v107
  %v110 = vld [vmem:[#allocation3] sm:$0xff]
  %v111 = vsel %vm63, %v52, 0.0
  %112 = vadd.xlane.f32.xlu0 %v111
  %v113 = vpop.xlane.xlu0 %112
  %v114 = vadd.f32 %v110, %v113
  %115 = vst.msk [vmem:[#allocation3] sm:$0xff] %vm108, %v114
  // Predicated region
  $region46: #{graph_gnn_model_forward.5} parent=0 // pred_check
    %p116 = pneg %p36
  $region47: #{graph_gnn_model_forward.5} parent=0 // pred_check_branch
    %118 = sbr.rel (%p116) target = $region49
  $region48: #{graph_gnn_model_forward.5} parent=0 // pred_region
    %v119 = vld [vmem:[#allocation2] sm:$0xff]
    %v120 = vld [vmem:[#allocation3] sm:$0xff]
    %v121 = vmax.f32 %v120, 1.0
    %v122 = vrcp.pop %v121
    %v123 = vmul.f32 %v119, %v122
    %v124 = vpack.c.bf16 %v123, %v123
    %v125 = vld [vmem:[%s2] sm:$0xf]
    %v126 = vld [vmem:[%s2 + $0x4] sm:$0xf]
    %v127 = vld [vmem:[%s2 + $0x8] sm:$0xf]
    %v128 = vld [vmem:[%s2 + $0xc] sm:$0xf]
    %v129 = vld [vmem:[%s3] sm:$0x1]
    %v131 = vlaneseq
    %v132 = vshrl.u32 %v131, 7
    %v133 = vsub.s32 0, %v132
    %v134 = vrot.slane %v129, %v133
    %v140 = vunpack.c.l.b16 %v125
    %v141 = vunpack.c.l.b16 %v126
    %v142 = vunpack.c.l.b16 %v127
    %v143 = vunpack.c.l.b16 %v128
    %v144 = vpack.c.b16 %v141, %v140
    %v145 = vpack.c.b16 %v143, %v142
    %v149 = vsel %vm108, %v124, 0
    %151 = vmatprep.subr.bf16.mxu0 0
    %152 = vmatpush1.bf16.msra.mxu0 %v144
    %153 = vmatprep.subr.bf16.mxu0 0
    %154 = vmatpush1.bf16.msra.mxu0 %v145
    %155 = vmatprep.subr.bf16.mxu0 0
    %156 = vmatpush1.bf16.msra.mxu0 0
    %157 = vmatprep.subr.bf16.mxu0 0
    %158 = vmatpush1.bf16.msra.mxu0 0
    %159 = vmatprep.subr.bf16.mxu0 0
    %160 = vmatpush1.bf16.msra.mxu0 0
    %161 = vmatprep.subr.bf16.mxu0 0
    %162 = vmatpush1.bf16.msra.mxu0 0
    %163 = vmatprep.subr.bf16.mxu0 0
    %164 = vmatpush1.bf16.msra.mxu0 0
    %165 = vmatprep.subr.bf16.mxu0 0
    %166 = vmatpush1.bf16.msra.mxu0 0
    %167 = vmatprep.subr.bf16.mxu0 0
    %168 = vmatpush1.bf16.msra.mxu0 0
    %169 = vmatprep.subr.bf16.mxu0 0
    %170 = vmatpush1.bf16.msra.mxu0 0
    %171 = vmatprep.subr.bf16.mxu0 0
    %172 = vmatpush1.bf16.msra.mxu0 0
    %173 = vmatprep.subr.bf16.mxu0 0
    %174 = vmatpush1.bf16.msra.mxu0 0
    %175 = vmatprep.subr.bf16.mxu0 0
    %176 = vmatpush1.bf16.msra.mxu0 0
    %177 = vmatprep.subr.bf16.mxu0 0
    %178 = vmatpush1.bf16.msra.mxu0 0
    %179 = vmatprep.subr.bf16.mxu0 0
    %180 = vmatpush1.bf16.msra.mxu0 0
    %181 = vmatprep.subr.bf16.mxu0 0
    %182 = vmatpush1.bf16.msra.mxu0 0
    %183 = vmatprep.mubr.bf16.mxu0 0
    %184 = vmatmul.mubr.bf16.gmra.mrb[0].mxu0 %v149
    %v185 = vpop.f32.mrb[0].mxu0
    %v186 = vadd.f32 %v134, %v185
    %v187 = vpop.f32.mrb[0].mxu0
    %v188 = vpop.f32.mrb[0].mxu0
    %v189 = vpop.f32.mrb[0].mxu0
    %190 = vdwg.mxu0
    %v191 = vmax.f32 %v186, 0.0
    %v192 = vpack.c.bf16 %v191, %v191
    %v193 = vld [vmem:[%s4] sm:$0xf]
    %v194 = vld [vmem:[%s4 + $0x4] sm:$0xf]
    %v195 = vld [vmem:[%s4 + $0x8] sm:$0xf]
    %v196 = vld [vmem:[%s4 + $0xc] sm:$0xf]
    %v197 = vld [vmem:[%s5] sm:$0x1]
    %v199 = vlaneseq
    %v200 = vshrl.u32 %v199, 7
    %v201 = vsub.s32 0, %v200
    %v202 = vrot.slane %v197, %v201
    %v208 = vunpack.c.l.b16 %v193
    %v209 = vunpack.c.l.b16 %v194
    %v210 = vunpack.c.l.b16 %v195
    %v211 = vunpack.c.l.b16 %v196
    %v212 = vpack.c.b16 %v209, %v208
    %v213 = vpack.c.b16 %v211, %v210
    %v217 = vsel %vm108, %v192, 0
    %219 = vmatprep.subr.bf16.mxu0 0
    %220 = vmatpush1.bf16.msra.mxu0 %v212
    %221 = vmatprep.subr.bf16.mxu0 0
    %222 = vmatpush1.bf16.msra.mxu0 %v213
    %223 = vmatprep.subr.bf16.mxu0 0
    %224 = vmatpush1.bf16.msra.mxu0 0
    %225 = vmatprep.subr.bf16.mxu0 0
    %226 = vmatpush1.bf16.msra.mxu0 0
    %227 = vmatprep.subr.bf16.mxu0 0
    %228 = vmatpush1.bf16.msra.mxu0 0
    %229 = vmatprep.subr.bf16.mxu0 0
    %230 = vmatpush1.bf16.msra.mxu0 0
    %231 = vmatprep.subr.bf16.mxu0 0
    %232 = vmatpush1.bf16.msra.mxu0 0
    %233 = vmatprep.subr.bf16.mxu0 0
    %234 = vmatpush1.bf16.msra.mxu0 0
    %235 = vmatprep.subr.bf16.mxu0 0
    %236 = vmatpush1.bf16.msra.mxu0 0
    %237 = vmatprep.subr.bf16.mxu0 0
    %238 = vmatpush1.bf16.msra.mxu0 0
    %239 = vmatprep.subr.bf16.mxu0 0
    %240 = vmatpush1.bf16.msra.mxu0 0
    %241 = vmatprep.subr.bf16.mxu0 0
    %242 = vmatpush1.bf16.msra.mxu0 0
    %243 = vmatprep.subr.bf16.mxu0 0
    %244 = vmatpush1.bf16.msra.mxu0 0
    %245 = vmatprep.subr.bf16.mxu0 0
    %246 = vmatpush1.bf16.msra.mxu0 0
    %247 = vmatprep.subr.bf16.mxu0 0
    %248 = vmatpush1.bf16.msra.mxu0 0
    %249 = vmatprep.subr.bf16.mxu0 0
    %250 = vmatpush1.bf16.msra.mxu0 0
    %251 = vmatprep.mubr.bf16.mxu0 0
    %252 = vmatmul.mubr.bf16.gmra.mrb[0].mxu0 %v217
    %v253 = vpop.f32.mrb[0].mxu0
    %v254 = vadd.f32 %v202, %v253
    %v255 = vpop.f32.mrb[0].mxu0
    %v256 = vpop.f32.mrb[0].mxu0
    %v257 = vpop.f32.mrb[0].mxu0
    %258 = vdwg.mxu0
    %v259 = vmax.f32 %v254, 0.0
    %v260 = vpack.c.bf16 %v259, %v259
    %v261 = vld [vmem:[%s6] sm:$0xf]
    %v262 = vld [vmem:[%s6 + $0x4] sm:$0xf]
    %v263 = vld [vmem:[%s6 + $0x8] sm:$0xf]
    %v264 = vld [vmem:[%s6 + $0xc] sm:$0xf]
    %v265 = vld [vmem:[%s7] sm:$0x1]
    %v267 = vlaneseq
    %v268 = vshrl.u32 %v267, 7
    %v269 = vsub.s32 0, %v268
    %v270 = vrot.slane %v265, %v269
    %v276 = vunpack.c.l.b16 %v261
    %v277 = vunpack.c.l.b16 %v262
    %v278 = vunpack.c.l.b16 %v263
    %v279 = vunpack.c.l.b16 %v264
    %v280 = vpack.c.b16 %v277, %v276
    %v281 = vpack.c.b16 %v279, %v278
    %v285 = vsel %vm108, %v260, 0
    %287 = vmatprep.subr.bf16.mxu0 0
    %288 = vmatpush1.bf16.msra.mxu0 %v280
    %289 = vmatprep.subr.bf16.mxu0 0
    %290 = vmatpush1.bf16.msra.mxu0 %v281
    %291 = vmatprep.subr.bf16.mxu0 0
    %292 = vmatpush1.bf16.msra.mxu0 0
    %293 = vmatprep.subr.bf16.mxu0 0
    %294 = vmatpush1.bf16.msra.mxu0 0
    %295 = vmatprep.subr.bf16.mxu0 0
    %296 = vmatpush1.bf16.msra.mxu0 0
    %297 = vmatprep.subr.bf16.mxu0 0
    %298 = vmatpush1.bf16.msra.mxu0 0
    %299 = vmatprep.subr.bf16.mxu0 0
    %300 = vmatpush1.bf16.msra.mxu0 0
    %301 = vmatprep.subr.bf16.mxu0 0
    %302 = vmatpush1.bf16.msra.mxu0 0
    %303 = vmatprep.subr.bf16.mxu0 0
    %304 = vmatpush1.bf16.msra.mxu0 0
    %305 = vmatprep.subr.bf16.mxu0 0
    %306 = vmatpush1.bf16.msra.mxu0 0
    %307 = vmatprep.subr.bf16.mxu0 0
    %308 = vmatpush1.bf16.msra.mxu0 0
    %309 = vmatprep.subr.bf16.mxu0 0
    %310 = vmatpush1.bf16.msra.mxu0 0
    %311 = vmatprep.subr.bf16.mxu0 0
    %312 = vmatpush1.bf16.msra.mxu0 0
    %313 = vmatprep.subr.bf16.mxu0 0
    %314 = vmatpush1.bf16.msra.mxu0 0
    %315 = vmatprep.subr.bf16.mxu0 0
    %316 = vmatpush1.bf16.msra.mxu0 0
    %317 = vmatprep.subr.bf16.mxu0 0
    %318 = vmatpush1.bf16.msra.mxu0 0
    %319 = vmatprep.mubr.bf16.mxu0 0
    %320 = vmatmul.mubr.bf16.gmra.mrb[0].mxu0 %v285
    %v321 = vpop.f32.mrb[0].mxu0
    %v322 = vadd.f32 %v270, %v321
    %v323 = vpop.f32.mrb[0].mxu0
    %v324 = vpop.f32.mrb[0].mxu0
    %v325 = vpop.f32.mrb[0].mxu0
    %326 = vdwg.mxu0
    %v327 = vmax.f32 %v322, 0.0
    %v328 = vpack.c.bf16 %v327, %v327
    %v329 = vld [vmem:[%s8] sm:$0xf]
    %v330 = vld [vmem:[%s8 + $0x4] sm:$0xf]
    %v331 = vld [vmem:[%s8 + $0x8] sm:$0xf]
    %v332 = vld [vmem:[%s8 + $0xc] sm:$0xf]
    %v333 = vld [vmem:[%s9] sm:$0x1]
    %v335 = vlaneseq
    %v336 = vshrl.u32 %v335, 7
    %v337 = vsub.s32 0, %v336
    %v338 = vrot.slane %v333, %v337
    %v344 = vunpack.c.l.b16 %v329
    %v345 = vunpack.c.l.b16 %v330
    %v346 = vunpack.c.l.b16 %v331
    %v347 = vunpack.c.l.b16 %v332
    %v348 = vpack.c.b16 %v345, %v344
    %v349 = vpack.c.b16 %v347, %v346
    %v353 = vsel %vm108, %v328, 0
    %355 = vmatprep.subr.bf16.mxu0 0
    %356 = vmatpush1.bf16.msra.mxu0 %v348
    %357 = vmatprep.subr.bf16.mxu0 0
    %358 = vmatpush1.bf16.msra.mxu0 %v349
    %359 = vmatprep.subr.bf16.mxu0 0
    %360 = vmatpush1.bf16.msra.mxu0 0
    %361 = vmatprep.subr.bf16.mxu0 0
    %362 = vmatpush1.bf16.msra.mxu0 0
    %363 = vmatprep.subr.bf16.mxu0 0
    %364 = vmatpush1.bf16.msra.mxu0 0
    %365 = vmatprep.subr.bf16.mxu0 0
    %366 = vmatpush1.bf16.msra.mxu0 0
    %367 = vmatprep.subr.bf16.mxu0 0
    %368 = vmatpush1.bf16.msra.mxu0 0
    %369 = vmatprep.subr.bf16.mxu0 0
    %370 = vmatpush1.bf16.msra.mxu0 0
    %371 = vmatprep.subr.bf16.mxu0 0
    %372 = vmatpush1.bf16.msra.mxu0 0
    %373 = vmatprep.subr.bf16.mxu0 0
    %374 = vmatpush1.bf16.msra.mxu0 0
    %375 = vmatprep.subr.bf16.mxu0 0
    %376 = vmatpush1.bf16.msra.mxu0 0
    %377 = vmatprep.subr.bf16.mxu0 0
    %378 = vmatpush1.bf16.msra.mxu0 0
    %379 = vmatprep.subr.bf16.mxu0 0
    %380 = vmatpush1.bf16.msra.mxu0 0
    %381 = vmatprep.subr.bf16.mxu0 0
    %382 = vmatpush1.bf16.msra.mxu0 0
    %383 = vmatprep.subr.bf16.mxu0 0
    %384 = vmatpush1.bf16.msra.mxu0 0
    %385 = vmatprep.subr.bf16.mxu0 0
    %386 = vmatpush1.bf16.msra.mxu0 0
    %387 = vmatprep.mubr.bf16.mxu0 0
    %388 = vmatmul.mubr.bf16.gmra.mrb[0].mxu0 %v353
    %v389 = vpop.f32.mrb[0].mxu0
    %v390 = vadd.f32 %v338, %v389
    %v391 = vpop.f32.mrb[0].mxu0
    %v392 = vpop.f32.mrb[0].mxu0
    %v393 = vpop.f32.mrb[0].mxu0
    %394 = vdwg.mxu0
    %vm395 = vcmask 23552
    %396 = vst.msk [vmem:[%s10] sm:$0xff] %vm395, %v390
  $region49: #{graph_gnn_model_forward.5} parent=0 // pred_fallthru
    _
  // Predicated region
  $region50: #{graph_gnn_model_forward.5} parent=0 // pred_check
    _
  $region51: #{graph_gnn_model_forward.5} parent=0 // pred_check_branch
    %398 = sbr.rel (0) target = $region53
  $region52: #{graph_gnn_model_forward.5} parent=0 // pred_region
    _
  $region53: #{graph_gnn_model_forward.5} parent=0 // pred_fallthru
    _
  // Predicated region
  $region54: #{graph_gnn_model_forward.5} parent=0 // pred_check
    _
  $region55: #{graph_gnn_model_forward.5} parent=0 // pred_check_branch
    %400 = sbr.rel (0) target = $region57
  $region56: #{graph_gnn_model_forward.5} parent=0 // pred_region
    _
  $region57: #{graph_gnn_model_forward.5} parent=0 // pred_fallthru
    _

// kernel: graph_gnn_model_forward.3
$region0: #{graph_gnn_model_forward.3}
  #allocation0 [shape = 'u32[]', space=smem, size = 0x4, offset = 0x4, fixed_abs, tag = 'smem constant byte address 0x4 - core index']
  #allocation1 [shape = 'u32[144,128]{1,0:T(1,128)}', space=vmem, size = 0x12000, scoped, tag = 'internal scratch']
  #allocation2 [shape = 'f32[16,32]{1,0:T(8,128)}', space=vmem, size = 0x2000, scoped, tag = 'scratch operand']
  %s0 = inlined_call_operand.vmem [shape: s32[1,128], index: 0, kind: input, shape index: {}]
  %s1 = inlined_call_operand.vmem [shape: bf16[128,4], index: 1, kind: input, shape index: {}]
  %s2 = inlined_call_operand.vmem [shape: bf16[128,6], index: 2, kind: input, shape index: {}]
  %s3 = inlined_call_operand.vmem [shape: bf16[16,4], index: 3, kind: input, shape index: {}]
  %s4 = inlined_call_operand.vmem [shape: bf16[6,16], index: 4, kind: input, shape index: {}]
  %s5 = inlined_call_operand.vmem [shape: f32[1,16], index: 5, kind: input, shape index: {}]
  %s6 = inlined_call_operand.vmem [shape: bf16[16,128], index: 6, kind: input, shape index: {}]
  %s7 = inlined_call_operand.vmem [shape: f32[1,128], index: 7, kind: input, shape index: {}]
  %s8 = inlined_call_operand.vmem [shape: bf16[4,128], index: 8, kind: input, shape index: {}]
  %s9 = inlined_call_operand.vmem [shape: bf16[4,32], index: 9, kind: input, shape index: {}]
  %s10 = inlined_call_operand.vmem [shape: f32[1,32], index: 10, kind: input, shape index: {}]
  %s11 = inlined_call_operand.vmem [shape: f32[16,32], index: 11, kind: output, shape index: {}]
  %s12 = sld [smem:[#allocation0]]
  $region62: #{graph_gnn_model_forward.3} parent=0
    _
  %s14 = ssub.s32 1, %s12
  %s15 = scalar_select 0, %s14, %s12
  // Predicated region
  $region2: #{graph_gnn_model_forward.3} parent=0 // pred_check
    _
  $region3: #{graph_gnn_model_forward.3} parent=0 // pred_check_branch
    %17 = sbr.rel (0) target = $region5
  $region4: #{graph_gnn_model_forward.3} parent=0 // pred_region
    _
  $region5: #{graph_gnn_model_forward.3} parent=0 // pred_fallthru
    _
  // Predicated region
  $region6: #{graph_gnn_model_forward.3} parent=0 // pred_check
    _
  $region7: #{graph_gnn_model_forward.3} parent=0 // pred_check_branch
    %19 = sbr.rel (0) target = $region9
  $region8: #{graph_gnn_model_forward.3} parent=0 // pred_region
    _
  $region9: #{graph_gnn_model_forward.3} parent=0 // pred_fallthru
    _
  // Predicated region
  $region10: #{graph_gnn_model_forward.3} parent=0 // pred_check
    _
  $region11: #{graph_gnn_model_forward.3} parent=0 // pred_check_branch
    %21 = sbr.rel (0) target = $region13
  $region12: #{graph_gnn_model_forward.3} parent=0 // pred_region
    _
  $region13: #{graph_gnn_model_forward.3} parent=0 // pred_fallthru
    _
  // Predicated region
  $region14: #{graph_gnn_model_forward.3} parent=0 // pred_check
    _
  $region15: #{graph_gnn_model_forward.3} parent=0 // pred_check_branch
    %23 = sbr.rel (0) target = $region17
  $region16: #{graph_gnn_model_forward.3} parent=0 // pred_region
    _
  $region17: #{graph_gnn_model_forward.3} parent=0 // pred_fallthru
    _
  // Predicated region
  $region18: #{graph_gnn_model_forward.3} parent=0 // pred_check
    _
  $region19: #{graph_gnn_model_forward.3} parent=0 // pred_check_branch
    %25 = sbr.rel (0) target = $region21
  $region20: #{graph_gnn_model_forward.3} parent=0 // pred_region
    _
  $region21: #{graph_gnn_model_forward.3} parent=0 // pred_fallthru
    _
  // Predicated region
  $region22: #{graph_gnn_model_forward.3} parent=0 // pred_check
    _
  $region23: #{graph_gnn_model_forward.3} parent=0 // pred_check_branch
    %27 = sbr.rel (0) target = $region25
  $region24: #{graph_gnn_model_forward.3} parent=0 // pred_region
    _
  $region25: #{graph_gnn_model_forward.3} parent=0 // pred_fallthru
    _
  // Predicated region
  $region26: #{graph_gnn_model_forward.3} parent=0 // pred_check
    _
  $region27: #{graph_gnn_model_forward.3} parent=0 // pred_check_branch
    %29 = sbr.rel (0) target = $region29
  $region28: #{graph_gnn_model_forward.3} parent=0 // pred_region
    _
  $region29: #{graph_gnn_model_forward.3} parent=0 // pred_fallthru
    _
  // Predicated region
  $region30: #{graph_gnn_model_forward.3} parent=0 // pred_check
    _
  $region31: #{graph_gnn_model_forward.3} parent=0 // pred_check_branch
    %31 = sbr.rel (0) target = $region33
  $region32: #{graph_gnn_model_forward.3} parent=0 // pred_region
    _
  $region33: #{graph_gnn_model_forward.3} parent=0 // pred_fallthru
    _
  // Predicated region
  $region34: #{graph_gnn_model_forward.3} parent=0 // pred_check
    _
  $region35: #{graph_gnn_model_forward.3} parent=0 // pred_check_branch
    %33 = sbr.rel (0) target = $region37
  $region36: #{graph_gnn_model_forward.3} parent=0 // pred_region
    _
  $region37: #{graph_gnn_model_forward.3} parent=0 // pred_fallthru
    _
  // Predicated region
  $region38: #{graph_gnn_model_forward.3} parent=0 // pred_check
    _
  $region39: #{graph_gnn_model_forward.3} parent=0 // pred_check_branch
    %35 = sbr.rel (0) target = $region41
  $region40: #{graph_gnn_model_forward.3} parent=0 // pred_region
    _
  $region41: #{graph_gnn_model_forward.3} parent=0 // pred_fallthru
    _
  // Predicated region
  $region42: #{graph_gnn_model_forward.3} parent=0 // pred_check
    _
  $region43: #{graph_gnn_model_forward.3} parent=0 // pred_check_branch
    %37 = sbr.rel (0) target = $region45
  $region44: #{graph_gnn_model_forward.3} parent=0 // pred_region
    _
  $region45: #{graph_gnn_model_forward.3} parent=0 // pred_fallthru
    _
  %p39 = scmp.eq.s32.totalorder 0, 0
  // Predicated region
  $region46: #{graph_gnn_model_forward.3} parent=0 // pred_check
    %p40 = pneg %p39
  $region47: #{graph_gnn_model_forward.3} parent=0 // pred_check_branch
    %42 = sbr.rel (%p40) target = $region49
  $region48: #{graph_gnn_model_forward.3} parent=0 // pred_region
    %v43 = vld [vmem:[%s3] sm:$0xf]
    %v44 = vld [vmem:[%s3 + $0x4] sm:$0xf]
    %v45 = vld [vmem:[%s9] sm:$0x3]
    %v46 = vld [vmem:[%s10] sm:$0x1]
    %v48 = vlaneseq
    %v49 = vshrl.u32 %v48, 7
    %v50 = vsub.s32 0, %v49
    %v51 = vrot.slane %v46, %v50
    %v55 = vunpack.c.l.b16 %v43
    %v56 = vunpack.c.l.b16 %v44
    %v57 = vpack.c.b16 %v56, %v55
    %vm58 = vcmask 31744
    %v60 = vsel %vm58, %v57, 0
    %vm62 = vcmask 1041408
    %v64 = vsel %vm62, %v45, 0
    %66 = vmatprep.subr.bf16.mxu0 0
    %67 = vmatpush1.bf16.msra.mxu0 %v64
    %68 = vmatprep.subr.bf16.mxu0 0
    %69 = vmatpush1.bf16.msra.mxu0 0
    %70 = vmatprep.subr.bf16.mxu0 0
    %71 = vmatpush1.bf16.msra.mxu0 0
    %72 = vmatprep.subr.bf16.mxu0 0
    %73 = vmatpush1.bf16.msra.mxu0 0
    %74 = vmatprep.subr.bf16.mxu0 0
    %75 = vmatpush1.bf16.msra.mxu0 0
    %76 = vmatprep.subr.bf16.mxu0 0
    %77 = vmatpush1.bf16.msra.mxu0 0
    %78 = vmatprep.subr.bf16.mxu0 0
    %79 = vmatpush1.bf16.msra.mxu0 0
    %80 = vmatprep.subr.bf16.mxu0 0
    %81 = vmatpush1.bf16.msra.mxu0 0
    %82 = vmatprep.subr.bf16.mxu0 0
    %83 = vmatpush1.bf16.msra.mxu0 0
    %84 = vmatprep.subr.bf16.mxu0 0
    %85 = vmatpush1.bf16.msra.mxu0 0
    %86 = vmatprep.subr.bf16.mxu0 0
    %87 = vmatpush1.bf16.msra.mxu0 0
    %88 = vmatprep.subr.bf16.mxu0 0
    %89 = vmatpush1.bf16.msra.mxu0 0
    %90 = vmatprep.subr.bf16.mxu0 0
    %91 = vmatpush1.bf16.msra.mxu0 0
    %92 = vmatprep.subr.bf16.mxu0 0
    %93 = vmatpush1.bf16.msra.mxu0 0
    %94 = vmatprep.subr.bf16.mxu0 0
    %95 = vmatpush1.bf16.msra.mxu0 0
    %96 = vmatprep.subr.bf16.mxu0 0
    %97 = vmatpush1.bf16.msra.mxu0 0
    %98 = vmatprep.mubr.bf16.mxu0 0
    %99 = vmatmul.mubr.bf16.gmra.mrb[0].mxu0 %v60
    %v100 = vpop.f32.mrb[0].mxu0
    %v101 = vadd.f32 %v51, %v100
    %v102 = vpop.f32.mrb[0].mxu0
    %v103 = vpop.f32.mrb[0].mxu0
    %v104 = vadd.f32 %v51, %v103
    %v105 = vpop.f32.mrb[0].mxu0
    %106 = vdwg.mxu0
    %vm107 = vcmask 261120
    %108 = vst.msk [vmem:[#allocation2] sm:$0xff] %vm107, %v101
    %109 = vst.msk [vmem:[#allocation2 + $0x8] sm:$0xff] %vm107, %v104
  $region49: #{graph_gnn_model_forward.3} parent=0 // pred_fallthru
    _
  %v110 = vld [vmem:[%s2] sm:$0xf]
  %v111 = vld [vmem:[%s2 + $0x4] sm:$0xf]
  %v112 = vld [vmem:[%s2 + $0x8] sm:$0xf]
  %v113 = vld [vmem:[%s2 + $0xc] sm:$0xf]
  %v114 = vld [vmem:[%s2 + $0x10] sm:$0xf]
  %v115 = vld [vmem:[%s2 + $0x14] sm:$0xf]
  %v116 = vld [vmem:[%s2 + $0x18] sm:$0xf]
  %v117 = vld [vmem:[%s2 + $0x1c] sm:$0xf]
  %v118 = vld [vmem:[%s2 + $0x20] sm:$0xf]
  %v119 = vld [vmem:[%s2 + $0x24] sm:$0xf]
  %v120 = vld [vmem:[%s2 + $0x28] sm:$0xf]
  %v121 = vld [vmem:[%s2 + $0x2c] sm:$0xf]
  %v122 = vld [vmem:[%s2 + $0x30] sm:$0xf]
  %v123 = vld [vmem:[%s2 + $0x34] sm:$0xf]
  %v124 = vld [vmem:[%s2 + $0x38] sm:$0xf]
  %v125 = vld [vmem:[%s2 + $0x3c] sm:$0xf]
  %v126 = vld [vmem:[%s4] sm:$0x7]
  %v127 = vld [vmem:[%s5] sm:$0x1]
  %v129 = vlaneseq
  %v130 = vshrl.u32 %v129, 7
  %v131 = vsub.s32 0, %v130
  %v132 = vrot.slane %v127, %v131
  %v150 = vunpack.c.l.b16 %v110
  %v151 = vunpack.c.l.b16 %v111
  %v152 = vunpack.c.l.b16 %v112
  %v153 = vunpack.c.l.b16 %v113
  %v154 = vunpack.c.l.b16 %v114
  %v155 = vunpack.c.l.b16 %v115
  %v156 = vunpack.c.l.b16 %v116
  %v157 = vunpack.c.l.b16 %v117
  %v158 = vunpack.c.l.b16 %v118
  %v159 = vunpack.c.l.b16 %v119
  %v160 = vunpack.c.l.b16 %v120
  %v161 = vunpack.c.l.b16 %v121
  %v162 = vunpack.c.l.b16 %v122
  %v163 = vunpack.c.l.b16 %v123
  %v164 = vunpack.c.l.b16 %v124
  %v165 = vunpack.c.l.b16 %v125
  %v166 = vpack.c.b16 %v151, %v150
  %v167 = vpack.c.b16 %v153, %v152
  %v168 = vpack.c.b16 %v155, %v154
  %v169 = vpack.c.b16 %v157, %v156
  %v170 = vpack.c.b16 %v159, %v158
  %v171 = vpack.c.b16 %v161, %v160
  %v172 = vpack.c.b16 %v163, %v162
  %v173 = vpack.c.b16 %v165, %v164
  %vm174 = vcmask 48128
  %v176 = vsel %vm174, %v166, 0
  %v179 = vsel %vm174, %v167, 0
  %v182 = vsel %vm174, %v168, 0
  %v185 = vsel %vm174, %v169, 0
  %v188 = vsel %vm174, %v170, 0
  %v191 = vsel %vm174, %v171, 0
  %v194 = vsel %vm174, %v172, 0
  %v197 = vsel %vm174, %v173, 0
  %vm199 = vcmask 1042432
  %v201 = vsel %vm199, %v126, 0
  %203 = vmatprep.subr.bf16.mxu0 0
  %204 = vmatpush1.bf16.msra.mxu0 %v201
  %205 = vmatprep.subr.bf16.mxu0 0
  %206 = vmatpush1.bf16.msra.mxu0 0
  %207 = vmatprep.subr.bf16.mxu0 0
  %208 = vmatpush1.bf16.msra.mxu0 0
  %209 = vmatprep.subr.bf16.mxu0 0
  %210 = vmatpush1.bf16.msra.mxu0 0
  %211 = vmatprep.subr.bf16.mxu0 0
  %212 = vmatpush1.bf16.msra.mxu0 0
  %213 = vmatprep.subr.bf16.mxu0 0
  %214 = vmatpush1.bf16.msra.mxu0 0
  %215 = vmatprep.subr.bf16.mxu0 0
  %216 = vmatpush1.bf16.msra.mxu0 0
  %217 = vmatprep.subr.bf16.mxu0 0
  %218 = vmatpush1.bf16.msra.mxu0 0
  %219 = vmatprep.subr.bf16.mxu0 0
  %220 = vmatpush1.bf16.msra.mxu0 0
  %221 = vmatprep.subr.bf16.mxu0 0
  %222 = vmatpush1.bf16.msra.mxu0 0
  %223 = vmatprep.subr.bf16.mxu0 0
  %224 = vmatpush1.bf16.msra.mxu0 0
  %225 = vmatprep.subr.bf16.mxu0 0
  %226 = vmatpush1.bf16.msra.mxu0 0
  %227 = vmatprep.subr.bf16.mxu0 0
  %228 = vmatpush1.bf16.msra.mxu0 0
  %229 = vmatprep.subr.bf16.mxu0 0
  %230 = vmatpush1.bf16.msra.mxu0 0
  %231 = vmatprep.subr.bf16.mxu0 0
  %232 = vmatpush1.bf16.msra.mxu0 0
  %233 = vmatprep.subr.bf16.mxu0 0
  %234 = vmatpush1.bf16.msra.mxu0 0
  %235 = vmatprep.mubr.bf16.mxu0 0
  %236 = vmatmul.mubr.bf16.gmra.mrb[0].mxu0 %v176
  %v237 = vpop.f32.mrb[0].mxu0
  %v238 = vadd.f32 %v132, %v237
  %v239 = vpop.f32.mrb[0].mxu0
  %v240 = vpop.f32.mrb[0].mxu0
  %v241 = vadd.f32 %v132, %v240
  %v242 = vpop.f32.mrb[0].mxu0
  %243 = vmatprep.mubr.bf16.mxu0 0
  %244 = vmatmul.mubr.bf16.gmra.mrb[0].mxu0 %v179
  %v245 = vpop.f32.mrb[0].mxu0
  %v246 = vadd.f32 %v132, %v245
  %v247 = vpop.f32.mrb[0].mxu0
  %v248 = vpop.f32.mrb[0].mxu0
  %v249 = vadd.f32 %v132, %v248
  %v250 = vpop.f32.mrb[0].mxu0
  %251 = vmatprep.mubr.bf16.mxu0 0
  %252 = vmatmul.mubr.bf16.gmra.mrb[0].mxu0 %v182
  %v253 = vpop.f32.mrb[0].mxu0
  %v254 = vadd.f32 %v132, %v253
  %v255 = vpop.f32.mrb[0].mxu0
  %v256 = vpop.f32.mrb[0].mxu0
  %v257 = vadd.f32 %v132, %v256
  %v258 = vpop.f32.mrb[0].mxu0
  %259 = vmatprep.mubr.bf16.mxu0 0
  %260 = vmatmul.mubr.bf16.gmra.mrb[0].mxu0 %v185
  %v261 = vpop.f32.mrb[0].mxu0
  %v262 = vadd.f32 %v132, %v261
  %v263 = vpop.f32.mrb[0].mxu0
  %v264 = vpop.f32.mrb[0].mxu0
  %v265 = vadd.f32 %v132, %v264
  %v266 = vpop.f32.mrb[0].mxu0
  %267 = vmatprep.mubr.bf16.mxu0 0
  %268 = vmatmul.mubr.bf16.gmra.mrb[0].mxu0 %v188
  %v269 = vpop.f32.mrb[0].mxu0
  %v270 = vadd.f32 %v132, %v269
  %v271 = vpop.f32.mrb[0].mxu0
  %v272 = vpop.f32.mrb[0].mxu0
  %v273 = vadd.f32 %v132, %v272
  %v274 = vpop.f32.mrb[0].mxu0
  %275 = vmatprep.mubr.bf16.mxu0 0
  %276 = vmatmul.mubr.bf16.gmra.mrb[0].mxu0 %v191
  %v277 = vpop.f32.mrb[0].mxu0
  %v278 = vadd.f32 %v132, %v277
  %v279 = vpop.f32.mrb[0].mxu0
  %v280 = vpop.f32.mrb[0].mxu0
  %v281 = vadd.f32 %v132, %v280
  %v282 = vpop.f32.mrb[0].mxu0
  %283 = vmatprep.mubr.bf16.mxu0 0
  %284 = vmatmul.mubr.bf16.gmra.mrb[0].mxu0 %v194
  %v285 = vpop.f32.mrb[0].mxu0
  %v286 = vadd.f32 %v132, %v285
  %v287 = vpop.f32.mrb[0].mxu0
  %v288 = vpop.f32.mrb[0].mxu0
  %v289 = vadd.f32 %v132, %v288
  %v290 = vpop.f32.mrb[0].mxu0
  %291 = vmatprep.mubr.bf16.mxu0 0
  %292 = vmatmul.mubr.bf16.gmra.mrb[0].mxu0 %v197
  %v293 = vpop.f32.mrb[0].mxu0
  %v294 = vadd.f32 %v132, %v293
  %v295 = vpop.f32.mrb[0].mxu0
  %v296 = vpop.f32.mrb[0].mxu0
  %v297 = vadd.f32 %v132, %v296
  %v298 = vpop.f32.mrb[0].mxu0
  %299 = vdwg.mxu0
  %v300 = vmax.f32 %v238, 0.0
  %v301 = vmax.f32 %v241, 0.0
  %v302 = vmax.f32 %v246, 0.0
  %v303 = vmax.f32 %v249, 0.0
  %v304 = vmax.f32 %v254, 0.0
  %v305 = vmax.f32 %v257, 0.0
  %v306 = vmax.f32 %v262, 0.0
  %v307 = vmax.f32 %v265, 0.0
  %v308 = vmax.f32 %v270, 0.0
  %v309 = vmax.f32 %v273, 0.0
  %v310 = vmax.f32 %v278, 0.0
  %v311 = vmax.f32 %v281, 0.0
  %v312 = vmax.f32 %v286, 0.0
  %v313 = vmax.f32 %v289, 0.0
  %v314 = vmax.f32 %v294, 0.0
  %v315 = vmax.f32 %v297, 0.0
  %v316 = vpack.c.bf16 %v301, %v300
  %v317 = vpack.c.bf16 %v303, %v302
  %v318 = vpack.c.bf16 %v305, %v304
  %v319 = vpack.c.bf16 %v307, %v306
  %v320 = vpack.c.bf16 %v309, %v308
  %v321 = vpack.c.bf16 %v311, %v310
  %v322 = vpack.c.bf16 %v313, %v312
  %v323 = vpack.c.bf16 %v315, %v314
  %v324 = vld [vmem:[%s6] sm:$0xf]
  %v325 = vld [vmem:[%s6 + $0x4] sm:$0xf]
  %v326 = vld [vmem:[%s7] sm:$0x1]
  %v328 = vlaneseq
  %v329 = vshrl.u32 %v328, 7
  %v330 = vsub.s32 0, %v329
  %v331 = vrot.slane %v326, %v330
  %v335 = vunpack.c.l.b16 %v324
  %v336 = vunpack.c.l.b16 %v325
  %v337 = vpack.c.b16 %v336, %v335
  %vm339 = vcmask 130048
  %v341 = vsel %vm339, %v316, 0
  %v344 = vsel %vm339, %v317, 0
  %v347 = vsel %vm339, %v318, 0
  %v350 = vsel %vm339, %v319, 0
  %v353 = vsel %vm339, %v320, 0
  %v356 = vsel %vm339, %v321, 0
  %v359 = vsel %vm339, %v322, 0
  %v362 = vsel %vm339, %v323, 0
  %364 = vmatprep.subr.bf16.mxu0 0
  %365 = vmatpush1.bf16.msra.mxu0 %v337
  %366 = vmatprep.subr.bf16.mxu0 0
  %367 = vmatpush1.bf16.msra.mxu0 0
  %368 = vmatprep.subr.bf16.mxu0 0
  %369 = vmatpush1.bf16.msra.mxu0 0
  %370 = vmatprep.subr.bf16.mxu0 0
  %371 = vmatpush1.bf16.msra.mxu0 0
  %372 = vmatprep.subr.bf16.mxu0 0
  %373 = vmatpush1.bf16.msra.mxu0 0
  %374 = vmatprep.subr.bf16.mxu0 0
  %375 = vmatpush1.bf16.msra.mxu0 0
  %376 = vmatprep.subr.bf16.mxu0 0
  %377 = vmatpush1.bf16.msra.mxu0 0
  %378 = vmatprep.subr.bf16.mxu0 0
  %379 = vmatpush1.bf16.msra.mxu0 0
  %380 = vmatprep.subr.bf16.mxu0 0
  %381 = vmatpush1.bf16.msra.mxu0 0
  %382 = vmatprep.subr.bf16.mxu0 0
  %383 = vmatpush1.bf16.msra.mxu0 0
  %384 = vmatprep.subr.bf16.mxu0 0
  %385 = vmatpush1.bf16.msra.mxu0 0
  %386 = vmatprep.subr.bf16.mxu0 0
  %387 = vmatpush1.bf16.msra.mxu0 0
  %388 = vmatprep.subr.bf16.mxu0 0
  %389 = vmatpush1.bf16.msra.mxu0 0
  %390 = vmatprep.subr.bf16.mxu0 0
  %391 = vmatpush1.bf16.msra.mxu0 0
  %392 = vmatprep.subr.bf16.mxu0 0
  %393 = vmatpush1.bf16.msra.mxu0 0
  %394 = vmatprep.subr.bf16.mxu0 0
  %395 = vmatpush1.bf16.msra.mxu0 0
  %396 = vmatprep.mubr.bf16.mxu0 0
  %397 = vmatmul.mubr.bf16.gmra.mrb[0].mxu0 %v341
  %v398 = vpop.f32.mrb[0].mxu0
  %v399 = vadd.f32 %v331, %v398
  %v400 = vpop.f32.mrb[0].mxu0
  %v401 = vpop.f32.mrb[0].mxu0
  %v402 = vadd.f32 %v331, %v401
  %v403 = vpop.f32.mrb[0].mxu0
  %404 = vmatprep.mubr.bf16.mxu0 0
  %405 = vmatmul.mubr.bf16.gmra.mrb[0].mxu0 %v344
  %v406 = vpop.f32.mrb[0].mxu0
  %v407 = vadd.f32 %v331, %v406
  %v408 = vpop.f32.mrb[0].mxu0
  %v409 = vpop.f32.mrb[0].mxu0
  %v410 = vadd.f32 %v331, %v409
  %v411 = vpop.f32.mrb[0].mxu0
  %412 = vmatprep.mubr.bf16.mxu0 0
  %413 = vmatmul.mubr.bf16.gmra.mrb[0].mxu0 %v347
  %v414 = vpop.f32.mrb[0].mxu0
  %v415 = vadd.f32 %v331, %v414
  %v416 = vpop.f32.mrb[0].mxu0
  %v417 = vpop.f32.mrb[0].mxu0
  %v418 = vadd.f32 %v331, %v417
  %v419 = vpop.f32.mrb[0].mxu0
  %420 = vmatprep.mubr.bf16.mxu0 0
  %421 = vmatmul.mubr.bf16.gmra.mrb[0].mxu0 %v350
  %v422 = vpop.f32.mrb[0].mxu0
  %v423 = vadd.f32 %v331, %v422
  %v424 = vpop.f32.mrb[0].mxu0
  %v425 = vpop.f32.mrb[0].mxu0
  %v426 = vadd.f32 %v331, %v425
  %v427 = vpop.f32.mrb[0].mxu0
  %428 = vmatprep.mubr.bf16.mxu0 0
  %429 = vmatmul.mubr.bf16.gmra.mrb[0].mxu0 %v353
  %v430 = vpop.f32.mrb[0].mxu0
  %v431 = vadd.f32 %v331, %v430
  %v432 = vpop.f32.mrb[0].mxu0
  %v433 = vpop.f32.mrb[0].mxu0
  %v434 = vadd.f32 %v331, %v433
  %v435 = vpop.f32.mrb[0].mxu0
  %436 = vmatprep.mubr.bf16.mxu0 0
  %437 = vmatmul.mubr.bf16.gmra.mrb[0].mxu0 %v356
  %v438 = vpop.f32.mrb[0].mxu0
  %v439 = vadd.f32 %v331, %v438
  %v440 = vpop.f32.mrb[0].mxu0
  %v441 = vpop.f32.mrb[0].mxu0
  %v442 = vadd.f32 %v331, %v441
  %v443 = vpop.f32.mrb[0].mxu0
  %444 = vmatprep.mubr.bf16.mxu0 0
  %445 = vmatmul.mubr.bf16.gmra.mrb[0].mxu0 %v359
  %v446 = vpop.f32.mrb[0].mxu0
  %v447 = vadd.f32 %v331, %v446
  %v448 = vpop.f32.mrb[0].mxu0
  %v449 = vpop.f32.mrb[0].mxu0
  %v450 = vadd.f32 %v331, %v449
  %v451 = vpop.f32.mrb[0].mxu0
  %452 = vmatprep.mubr.bf16.mxu0 0
  %453 = vmatmul.mubr.bf16.gmra.mrb[0].mxu0 %v362
  %v454 = vpop.f32.mrb[0].mxu0
  %v455 = vadd.f32 %v331, %v454
  %v456 = vpop.f32.mrb[0].mxu0
  %v457 = vpop.f32.mrb[0].mxu0
  %v458 = vadd.f32 %v331, %v457
  %v459 = vpop.f32.mrb[0].mxu0
  %460 = vdwg.mxu0
  %v461 = vmax.f32 %v399, 0.0
  %v462 = vmax.f32 %v402, 0.0
  %v463 = vmax.f32 %v407, 0.0
  %v464 = vmax.f32 %v410, 0.0
  %v465 = vmax.f32 %v415, 0.0
  %v466 = vmax.f32 %v418, 0.0
  %v467 = vmax.f32 %v423, 0.0
  %v468 = vmax.f32 %v426, 0.0
  %v469 = vmax.f32 %v431, 0.0
  %v470 = vmax.f32 %v434, 0.0
  %v471 = vmax.f32 %v439, 0.0
  %v472 = vmax.f32 %v442, 0.0
  %v473 = vmax.f32 %v447, 0.0
  %v474 = vmax.f32 %v450, 0.0
  %v475 = vmax.f32 %v455, 0.0
  %v476 = vmax.f32 %v458, 0.0
  %v477 = vld [vmem:[%s1] sm:$0xf]
  %v478 = vld [vmem:[%s1 + $0x4] sm:$0xf]
  %v479 = vld [vmem:[%s1 + $0x8] sm:$0xf]
  %v480 = vld [vmem:[%s1 + $0xc] sm:$0xf]
  %v481 = vld [vmem:[%s1 + $0x10] sm:$0xf]
  %v482 = vld [vmem:[%s1 + $0x14] sm:$0xf]
  %v483 = vld [vmem:[%s1 + $0x18] sm:$0xf]
  %v484 = vld [vmem:[%s1 + $0x1c] sm:$0xf]
  %v485 = vld [vmem:[%s1 + $0x20] sm:$0xf]
  %v486 = vld [vmem:[%s1 + $0x24] sm:$0xf]
  %v487 = vld [vmem:[%s1 + $0x28] sm:$0xf]
  %v488 = vld [vmem:[%s1 + $0x2c] sm:$0xf]
  %v489 = vld [vmem:[%s1 + $0x30] sm:$0xf]
  %v490 = vld [vmem:[%s1 + $0x34] sm:$0xf]
  %v491 = vld [vmem:[%s1 + $0x38] sm:$0xf]
  %v492 = vld [vmem:[%s1 + $0x3c] sm:$0xf]
  %v493 = vld [vmem:[%s8] sm:$0x3]
  %v510 = vunpack.c.l.b16 %v477
  %v511 = vunpack.c.l.b16 %v478
  %v512 = vunpack.c.l.b16 %v479
  %v513 = vunpack.c.l.b16 %v480
  %v514 = vunpack.c.l.b16 %v481
  %v515 = vunpack.c.l.b16 %v482
  %v516 = vunpack.c.l.b16 %v483
  %v517 = vunpack.c.l.b16 %v484
  %v518 = vunpack.c.l.b16 %v485
  %v519 = vunpack.c.l.b16 %v486
  %v520 = vunpack.c.l.b16 %v487
  %v521 = vunpack.c.l.b16 %v488
  %v522 = vunpack.c.l.b16 %v489
  %v523 = vunpack.c.l.b16 %v490
  %v524 = vunpack.c.l.b16 %v491
  %v525 = vunpack.c.l.b16 %v492
  %v526 = vpack.c.b16 %v511, %v510
  %v527 = vpack.c.b16 %v513, %v512
  %v528 = vpack.c.b16 %v515, %v514
  %v529 = vpack.c.b16 %v517, %v516
  %v530 = vpack.c.b16 %v519, %v518
  %v531 = vpack.c.b16 %v521, %v520
  %v532 = vpack.c.b16 %v523, %v522
  %v533 = vpack.c.b16 %v525, %v524
  %vm534 = vcmask 31744
  %v536 = vsel %vm534, %v526, 0
  %v539 = vsel %vm534, %v527, 0
  %v542 = vsel %vm534, %v528, 0
  %v545 = vsel %vm534, %v529, 0
  %v548 = vsel %vm534, %v530, 0
  %v551 = vsel %vm534, %v531, 0
  %v554 = vsel %vm534, %v532, 0
  %v557 = vsel %vm534, %v533, 0
  %vm559 = vcmask 1041408
  %v561 = vsel %vm559, %v493, 0
  %563 = vmatprep.subr.bf16.mxu0 0
  %564 = vmatpush1.bf16.msra.mxu0 %v561
  %565 = vmatprep.subr.bf16.mxu0 0
  %566 = vmatpush1.bf16.msra.mxu0 0
  %567 = vmatprep.subr.bf16.mxu0 0
  %568 = vmatpush1.bf16.msra.mxu0 0
  %569 = vmatprep.subr.bf16.mxu0 0
  %570 = vmatpush1.bf16.msra.mxu0 0
  %571 = vmatprep.subr.bf16.mxu0 0
  %572 = vmatpush1.bf16.msra.mxu0 0
  %573 = vmatprep.subr.bf16.mxu0 0
  %574 = vmatpush1.bf16.msra.mxu0 0
  %575 = vmatprep.subr.bf16.mxu0 0
  %576 = vmatpush1.bf16.msra.mxu0 0
  %577 = vmatprep.subr.bf16.mxu0 0
  %578 = vmatpush1.bf16.msra.mxu0 0
  %579 = vmatprep.subr.bf16.mxu0 0
  %580 = vmatpush1.bf16.msra.mxu0 0
  %581 = vmatprep.subr.bf16.mxu0 0
  %582 = vmatpush1.bf16.msra.mxu0 0
  %583 = vmatprep.subr.bf16.mxu0 0
  %584 = vmatpush1.bf16.msra.mxu0 0
  %585 = vmatprep.subr.bf16.mxu0 0
  %586 = vmatpush1.bf16.msra.mxu0 0
  %587 = vmatprep.subr.bf16.mxu0 0
  %588 = vmatpush1.bf16.msra.mxu0 0
  %589 = vmatprep.subr.bf16.mxu0 0
  %590 = vmatpush1.bf16.msra.mxu0 0
  %591 = vmatprep.subr.bf16.mxu0 0
  %592 = vmatpush1.bf16.msra.mxu0 0
  %593 = vmatprep.subr.bf16.mxu0 0
  %594 = vmatpush1.bf16.msra.mxu0 0
  %595 = vmatprep.mubr.bf16.mxu0 0
  %596 = vmatmul.mubr.bf16.gmra.mrb[0].mxu0 %v536
  %v597 = vpop.f32.mrb[0].mxu0
  %v598 = vadd.f32 0.0, %v597
  %v599 = vpop.f32.mrb[0].mxu0
  %v600 = vpop.f32.mrb[0].mxu0
  %v601 = vadd.f32 0.0, %v600
  %v602 = vpop.f32.mrb[0].mxu0
  %603 = vmatprep.mubr.bf16.mxu0 0
  %604 = vmatmul.mubr.bf16.gmra.mrb[0].mxu0 %v539
  %v605 = vpop.f32.mrb[0].mxu0
  %v606 = vadd.f32 0.0, %v605
  %v607 = vpop.f32.mrb[0].mxu0
  %v608 = vpop.f32.mrb[0].mxu0
  %v609 = vadd.f32 0.0, %v608
  %v610 = vpop.f32.mrb[0].mxu0
  %611 = vmatprep.mubr.bf16.mxu0 0
  %612 = vmatmul.mubr.bf16.gmra.mrb[0].mxu0 %v542
  %v613 = vpop.f32.mrb[0].mxu0
  %v614 = vadd.f32 0.0, %v613
  %v615 = vpop.f32.mrb[0].mxu0
  %v616 = vpop.f32.mrb[0].mxu0
  %v617 = vadd.f32 0.0, %v616
  %v618 = vpop.f32.mrb[0].mxu0
  %619 = vmatprep.mubr.bf16.mxu0 0
  %620 = vmatmul.mubr.bf16.gmra.mrb[0].mxu0 %v545
  %v621 = vpop.f32.mrb[0].mxu0
  %v622 = vadd.f32 0.0, %v621
  %v623 = vpop.f32.mrb[0].mxu0
  %v624 = vpop.f32.mrb[0].mxu0
  %v625 = vadd.f32 0.0, %v624
  %v626 = vpop.f32.mrb[0].mxu0
  %627 = vmatprep.mubr.bf16.mxu0 0
  %628 = vmatmul.mubr.bf16.gmra.mrb[0].mxu0 %v548
  %v629 = vpop.f32.mrb[0].mxu0
  %v630 = vadd.f32 0.0, %v629
  %v631 = vpop.f32.mrb[0].mxu0
  %v632 = vpop.f32.mrb[0].mxu0
  %v633 = vadd.f32 0.0, %v632
  %v634 = vpop.f32.mrb[0].mxu0
  %635 = vmatprep.mubr.bf16.mxu0 0
  %636 = vmatmul.mubr.bf16.gmra.mrb[0].mxu0 %v551
  %v637 = vpop.f32.mrb[0].mxu0
  %v638 = vadd.f32 0.0, %v637
  %v639 = vpop.f32.mrb[0].mxu0
  %v640 = vpop.f32.mrb[0].mxu0
  %v641 = vadd.f32 0.0, %v640
  %v642 = vpop.f32.mrb[0].mxu0
  %643 = vmatprep.mubr.bf16.mxu0 0
  %644 = vmatmul.mubr.bf16.gmra.mrb[0].mxu0 %v554
  %v645 = vpop.f32.mrb[0].mxu0
  %v646 = vadd.f32 0.0, %v645
  %v647 = vpop.f32.mrb[0].mxu0
  %v648 = vpop.f32.mrb[0].mxu0
  %v649 = vadd.f32 0.0, %v648
  %v650 = vpop.f32.mrb[0].mxu0
  %651 = vmatprep.mubr.bf16.mxu0 0
  %652 = vmatmul.mubr.bf16.gmra.mrb[0].mxu0 %v557
  %v653 = vpop.f32.mrb[0].mxu0
  %v654 = vadd.f32 0.0, %v653
  %v655 = vpop.f32.mrb[0].mxu0
  %v656 = vpop.f32.mrb[0].mxu0
  %v657 = vadd.f32 0.0, %v656
  %v658 = vpop.f32.mrb[0].mxu0
  %659 = vdwg.mxu0
  %v660 = vmul.f32 %v598, %v461
  %v661 = vmul.f32 %v601, %v462
  %v662 = vmul.f32 %v606, %v463
  %v663 = vmul.f32 %v609, %v464
  %v664 = vmul.f32 %v614, %v465
  %v665 = vmul.f32 %v617, %v466
  %v666 = vmul.f32 %v622, %v467
  %v667 = vmul.f32 %v625, %v468
  %v668 = vmul.f32 %v630, %v469
  %v669 = vmul.f32 %v633, %v470
  %v670 = vmul.f32 %v638, %v471
  %v671 = vmul.f32 %v641, %v472
  %v672 = vmul.f32 %v646, %v473
  %v673 = vmul.f32 %v649, %v474
  %v674 = vmul.f32 %v654, %v475
  %v675 = vmul.f32 %v657, %v476
  %692 = vrot.lane.b32.xlu0 %v660, 96
  %v693 = vpop.permute.xlu0 %692
  %694 = vrot.lane.b32.xlu0 %v661, 96
  %v695 = vpop.permute.xlu0 %694
  %696 = vrot.lane.b32.xlu0 %v662, 96
  %v697 = vpop.permute.xlu0 %696
  %698 = vrot.lane.b32.xlu0 %v663, 96
  %v699 = vpop.permute.xlu0 %698
  %700 = vrot.lane.b32.xlu0 %v664, 96
  %v701 = vpop.permute.xlu0 %700
  %702 = vrot.lane.b32.xlu0 %v665, 96
  %v703 = vpop.permute.xlu0 %702
  %704 = vrot.lane.b32.xlu0 %v666, 96
  %v705 = vpop.permute.xlu0 %704
  %706 = vrot.lane.b32.xlu0 %v667, 96
  %v707 = vpop.permute.xlu0 %706
  %708 = vrot.lane.b32.xlu0 %v668, 96
  %v709 = vpop.permute.xlu0 %708
  %710 = vrot.lane.b32.xlu0 %v669, 96
  %v711 = vpop.permute.xlu0 %710
  %712 = vrot.lane.b32.xlu0 %v670, 96
  %v713 = vpop.permute.xlu0 %712
  %714 = vrot.lane.b32.xlu0 %v671, 96
  %v715 = vpop.permute.xlu0 %714
  %716 = vrot.lane.b32.xlu0 %v672, 96
  %v717 = vpop.permute.xlu0 %716
  %718 = vrot.lane.b32.xlu0 %v673, 96
  %v719 = vpop.permute.xlu0 %718
  %720 = vrot.lane.b32.xlu0 %v674, 96
  %v721 = vpop.permute.xlu0 %720
  %722 = vrot.lane.b32.xlu0 %v675, 96
  %v723 = vpop.permute.xlu0 %722
  %v740 = vadd.f32 %v660, %v693
  %v741 = vadd.f32 %v661, %v695
  %v742 = vadd.f32 %v662, %v697
  %v743 = vadd.f32 %v663, %v699
  %v744 = vadd.f32 %v664, %v701
  %v745 = vadd.f32 %v665, %v703
  %v746 = vadd.f32 %v666, %v705
  %v747 = vadd.f32 %v667, %v707
  %v748 = vadd.f32 %v668, %v709
  %v749 = vadd.f32 %v669, %v711
  %v750 = vadd.f32 %v670, %v713
  %v751 = vadd.f32 %v671, %v715
  %v752 = vadd.f32 %v672, %v717
  %v753 = vadd.f32 %v673, %v719
  %v754 = vadd.f32 %v674, %v721
  %v755 = vadd.f32 %v675, %v723
  %756 = vrot.lane.b32.xlu0 %v660, 64
  %v757 = vpop.permute.xlu0 %756
  %758 = vrot.lane.b32.xlu0 %v661, 64
  %v759 = vpop.permute.xlu0 %758
  %760 = vrot.lane.b32.xlu0 %v662, 64
  %v761 = vpop.permute.xlu0 %760
  %762 = vrot.lane.b32.xlu0 %v663, 64
  %v763 = vpop.permute.xlu0 %762
  %764 = vrot.lane.b32.xlu0 %v664, 64
  %v765 = vpop.permute.xlu0 %764
  %766 = vrot.lane.b32.xlu0 %v665, 64
  %v767 = vpop.permute.xlu0 %766
  %768 = vrot.lane.b32.xlu0 %v666, 64
  %v769 = vpop.permute.xlu0 %768
  %770 = vrot.lane.b32.xlu0 %v667, 64
  %v771 = vpop.permute.xlu0 %770
  %772 = vrot.lane.b32.xlu0 %v668, 64
  %v773 = vpop.permute.xlu0 %772
  %774 = vrot.lane.b32.xlu0 %v669, 64
  %v775 = vpop.permute.xlu0 %774
  %776 = vrot.lane.b32.xlu0 %v670, 64
  %v777 = vpop.permute.xlu0 %776
  %778 = vrot.lane.b32.xlu0 %v671, 64
  %v779 = vpop.permute.xlu0 %778
  %780 = vrot.lane.b32.xlu0 %v672, 64
  %v781 = vpop.permute.xlu0 %780
  %782 = vrot.lane.b32.xlu0 %v673, 64
  %v783 = vpop.permute.xlu0 %782
  %784 = vrot.lane.b32.xlu0 %v674, 64
  %v785 = vpop.permute.xlu0 %784
  %786 = vrot.lane.b32.xlu0 %v675, 64
  %v787 = vpop.permute.xlu0 %786
  %v804 = vadd.f32 %v740, %v757
  %v805 = vadd.f32 %v741, %v759
  %v806 = vadd.f32 %v742, %v761
  %v807 = vadd.f32 %v743, %v763
  %v808 = vadd.f32 %v744, %v765
  %v809 = vadd.f32 %v745, %v767
  %v810 = vadd.f32 %v746, %v769
  %v811 = vadd.f32 %v747, %v771
  %v812 = vadd.f32 %v748, %v773
  %v813 = vadd.f32 %v749, %v775
  %v814 = vadd.f32 %v750, %v777
  %v815 = vadd.f32 %v751, %v779
  %v816 = vadd.f32 %v752, %v781
  %v817 = vadd.f32 %v753, %v783
  %v818 = vadd.f32 %v754, %v785
  %v819 = vadd.f32 %v755, %v787
  %820 = vrot.lane.b32.xlu0 %v660, 32
  %v821 = vpop.permute.xlu0 %820
  %822 = vrot.lane.b32.xlu0 %v661, 32
  %v823 = vpop.permute.xlu0 %822
  %824 = vrot.lane.b32.xlu0 %v662, 32
  %v825 = vpop.permute.xlu0 %824
  %826 = vrot.lane.b32.xlu0 %v663, 32
  %v827 = vpop.permute.xlu0 %826
  %828 = vrot.lane.b32.xlu0 %v664, 32
  %v829 = vpop.permute.xlu0 %828
  %830 = vrot.lane.b32.xlu0 %v665, 32
  %v831 = vpop.permute.xlu0 %830
  %832 = vrot.lane.b32.xlu0 %v666, 32
  %v833 = vpop.permute.xlu0 %832
  %834 = vrot.lane.b32.xlu0 %v667, 32
  %v835 = vpop.permute.xlu0 %834
  %836 = vrot.lane.b32.xlu0 %v668, 32
  %v837 = vpop.permute.xlu0 %836
  %838 = vrot.lane.b32.xlu0 %v669, 32
  %v839 = vpop.permute.xlu0 %838
  %840 = vrot.lane.b32.xlu0 %v670, 32
  %v841 = vpop.permute.xlu0 %840
  %842 = vrot.lane.b32.xlu0 %v671, 32
  %v843 = vpop.permute.xlu0 %842
  %844 = vrot.lane.b32.xlu0 %v672, 32
  %v845 = vpop.permute.xlu0 %844
  %846 = vrot.lane.b32.xlu0 %v673, 32
  %v847 = vpop.permute.xlu0 %846
  %848 = vrot.lane.b32.xlu0 %v674, 32
  %v849 = vpop.permute.xlu0 %848
  %850 = vrot.lane.b32.xlu0 %v675, 32
  %v851 = vpop.permute.xlu0 %850
  %v868 = vadd.f32 %v804, %v821
  %v869 = vadd.f32 %v805, %v823
  %v870 = vadd.f32 %v806, %v825
  %v871 = vadd.f32 %v807, %v827
  %v872 = vadd.f32 %v808, %v829
  %v873 = vadd.f32 %v809, %v831
  %v874 = vadd.f32 %v810, %v833
  %v875 = vadd.f32 %v811, %v835
  %v876 = vadd.f32 %v812, %v837
  %v877 = vadd.f32 %v813, %v839
  %v878 = vadd.f32 %v814, %v841
  %v879 = vadd.f32 %v815, %v843
  %v880 = vadd.f32 %v816, %v845
  %v881 = vadd.f32 %v817, %v847
  %v882 = vadd.f32 %v818, %v849
  %v883 = vadd.f32 %v819, %v851
  %s884 = smul.u32 0, 16
  %v885 = vlaneseq
  %v886 = vshrl.u32 %v885, 7
  %v887 = vadd.s32 %v886, 8
  %v888 = vstv %s884
  %v889 = vadd.s32 %v888, %v886
  %v890 = vadd.s32 %v888, %v887
  %v891 = vld [vmem:[%s0] sm:$0x1]
  %v892 = vlaneseq
  %v893 = vshrl.u32 %v892, 7
  %v894 = vsub.s32 0, %v893
  %v895 = vrot.slane %v891, %v894
  %vm896 = vcmp.eq.s32.totalorder %v895, %v889
  %vm897 = vcmp.eq.s32.totalorder %v895, %v890
  %v898 = vld [vmem:[#allocation2] sm:$0xff]
  %v899 = vld [vmem:[#allocation2 + $0x8] sm:$0xff]
  %v900 = vsel %vm896, 1, 0
  %v901 = vsel %vm897, 1, 0
  %v902 = vcvt.s32.f32 %v900
  %v903 = vcvt.s32.f32 %v901
  %v904 = vpack.c.bf16 %v903, %v902
  %v905 = vpack.c.bf16 %v869, %v868
  %v906 = vpack.c.bf16 %v871, %v870
  %v907 = vpack.c.bf16 %v873, %v872
  %v908 = vpack.c.bf16 %v875, %v874
  %v909 = vpack.c.bf16 %v877, %v876
  %v910 = vpack.c.bf16 %v879, %v878
  %v911 = vpack.c.bf16 %v881, %v880
  %v912 = vpack.c.bf16 %v883, %v882
  %913 = vmatprep.subr.bf16.mxu0 0
  %914 = vmatpush1.bf16.msra.mxu0 %v905
  %915 = vmatprep.subr.bf16.mxu0 0
  %916 = vmatpush1.bf16.msra.mxu0 %v906
  %917 = vmatprep.subr.bf16.mxu0 0
  %918 = vmatpush1.bf16.msra.mxu0 %v907
  %919 = vmatprep.subr.bf16.mxu0 0
  %920 = vmatpush1.bf16.msra.mxu0 %v908
  %921 = vmatprep.subr.bf16.mxu0 0
  %922 = vmatpush1.bf16.msra.mxu0 %v909
  %923 = vmatprep.subr.bf16.mxu0 0
  %924 = vmatpush1.bf16.msra.mxu0 %v910
  %925 = vmatprep.subr.bf16.mxu0 0
  %926 = vmatpush1.bf16.msra.mxu0 %v911
  %927 = vmatprep.subr.bf16.mxu0 0
  %928 = vmatpush1.bf16.msra.mxu0 %v912
  %929 = vmatprep.subr.bf16.mxu0 0
  %930 = vmatpush1.bf16.msra.mxu0 0
  %931 = vmatprep.subr.bf16.mxu0 0
  %932 = vmatpush1.bf16.msra.mxu0 0
  %933 = vmatprep.subr.bf16.mxu0 0
  %934 = vmatpush1.bf16.msra.mxu0 0
  %935 = vmatprep.subr.bf16.mxu0 0
  %936 = vmatpush1.bf16.msra.mxu0 0
  %937 = vmatprep.subr.bf16.mxu0 0
  %938 = vmatpush1.bf16.msra.mxu0 0
  %939 = vmatprep.subr.bf16.mxu0 0
  %940 = vmatpush1.bf16.msra.mxu0 0
  %941 = vmatprep.subr.bf16.mxu0 0
  %942 = vmatpush1.bf16.msra.mxu0 0
  %943 = vmatprep.subr.bf16.mxu0 0
  %944 = vmatpush1.bf16.msra.mxu0 0
  %945 = vmatprep.mubr.bf16.mxu0 0
  %946 = vmatmul.mubr.bf16.gmra.mrb[0].mxu0 %v904
  %v947 = vpop.f32.mrb[0].mxu0
  %v948 = vadd.f32 0.0, %v947
  %v949 = vpop.f32.mrb[0].mxu0
  %v950 = vpop.f32.mrb[0].mxu0
  %v951 = vadd.f32 0.0, %v950
  %v952 = vpop.f32.mrb[0].mxu0
  %953 = vdwg.mxu0
  %v954 = vadd.f32 %v898, %v948
  %v955 = vadd.f32 %v899, %v951
  %vm956 = vcmask 261120
  %957 = vst.msk [vmem:[#allocation2] sm:$0xff] %vm956, %v954
  %958 = vst.msk [vmem:[#allocation2 + $0x8] sm:$0xff] %vm956, %v955
  // Predicated region
  $region50: #{graph_gnn_model_forward.3} parent=0 // pred_check
    %p959 = pneg %p39
  $region51: #{graph_gnn_model_forward.3} parent=0 // pred_check_branch
    %961 = sbr.rel (%p959) target = $region53
  $region52: #{graph_gnn_model_forward.3} parent=0 // pred_region
    %v962 = vld [vmem:[#allocation2] sm:$0xff]
    %v963 = vld [vmem:[#allocation2 + $0x8] sm:$0xff]
    %v964 = vmax.f32 %v962, 0.0
    %v965 = vmax.f32 %v963, 0.0
    %966 = vst.msk [vmem:[%s11] sm:$0xff] %vm956, %v964
    %967 = vst.msk [vmem:[%s11 + $0x8] sm:$0xff] %vm956, %v965
  $region53: #{graph_gnn_model_forward.3} parent=0 // pred_fallthru
    _
  // Predicated region
  $region54: #{graph_gnn_model_forward.3} parent=0 // pred_check
    _
  $region55: #{graph_gnn_model_forward.3} parent=0 // pred_check_branch
    %969 = sbr.rel (0) target = $region57
  $region56: #{graph_gnn_model_forward.3} parent=0 // pred_region
    _
  $region57: #{graph_gnn_model_forward.3} parent=0 // pred_fallthru
    _
  // Predicated region
  $region58: #{graph_gnn_model_forward.3} parent=0 // pred_check
    _
  $region59: #{graph_gnn_model_forward.3} parent=0 // pred_check_branch
    %971 = sbr.rel (0) target = $region61
  $region60: #{graph_gnn_model_forward.3} parent=0 // pred_region
    _
  $region61: #{graph_gnn_model_forward.3} parent=0 // pred_fallthru
    _

// kernel: graph_gnn_model_forward.4
$region0: #{graph_gnn_model_forward.4}
  #allocation0 [shape = 'u32[]', space=smem, size = 0x4, offset = 0x4, fixed_abs, tag = 'smem constant byte address 0x4 - core index']
  #allocation1 [shape = 'u32[144,128]{1,0:T(1,128)}', space=vmem, size = 0x12000, scoped, tag = 'internal scratch']
  #allocation2 [shape = 'f32[16,32]{1,0:T(8,128)}', space=vmem, size = 0x2000, scoped, tag = 'scratch operand']
  %s0 = inlined_call_operand.vmem [shape: s32[1,128], index: 0, kind: input, shape index: {}]
  %s1 = inlined_call_operand.vmem [shape: bf16[128,32], index: 1, kind: input, shape index: {}]
  %s2 = inlined_call_operand.vmem [shape: bf16[128,6], index: 2, kind: input, shape index: {}]
  %s3 = inlined_call_operand.vmem [shape: bf16[16,32], index: 3, kind: input, shape index: {}]
  %s4 = inlined_call_operand.vmem [shape: bf16[6,16], index: 4, kind: input, shape index: {}]
  %s5 = inlined_call_operand.vmem [shape: f32[1,16], index: 5, kind: input, shape index: {}]
  %s6 = inlined_call_operand.vmem [shape: bf16[16,1024], index: 6, kind: input, shape index: {}]
  %s7 = inlined_call_operand.vmem [shape: f32[1,1024], index: 7, kind: input, shape index: {}]
  %s8 = inlined_call_operand.vmem [shape: bf16[32,1024], index: 8, kind: input, shape index: {}]
  %s9 = inlined_call_operand.vmem [shape: bf16[32,32], index: 9, kind: input, shape index: {}]
  %s10 = inlined_call_operand.vmem [shape: f32[1,32], index: 10, kind: input, shape index: {}]
  %s11 = inlined_call_operand.vmem [shape: f32[16,32], index: 11, kind: output, shape index: {}]
  %s12 = sld [smem:[#allocation0]]
  $region62: #{graph_gnn_model_forward.4} parent=0
    _
  %s14 = ssub.s32 1, %s12
  %s15 = scalar_select 0, %s14, %s12
  // Predicated region
  $region2: #{graph_gnn_model_forward.4} parent=0 // pred_check
    _
  $region3: #{graph_gnn_model_forward.4} parent=0 // pred_check_branch
    %17 = sbr.rel (0) target = $region5
  $region4: #{graph_gnn_model_forward.4} parent=0 // pred_region
    _
  $region5: #{graph_gnn_model_forward.4} parent=0 // pred_fallthru
    _
  // Predicated region
  $region6: #{graph_gnn_model_forward.4} parent=0 // pred_check
    _
  $region7: #{graph_gnn_model_forward.4} parent=0 // pred_check_branch
    %19 = sbr.rel (0) target = $region9
  $region8: #{graph_gnn_model_forward.4} parent=0 // pred_region
    _
  $region9: #{graph_gnn_model_forward.4} parent=0 // pred_fallthru
    _
  // Predicated region
  $region10: #{graph_gnn_model_forward.4} parent=0 // pred_check
    _
  $region11: #{graph_gnn_model_forward.4} parent=0 // pred_check_branch
    %21 = sbr.rel (0) target = $region13
  $region12: #{graph_gnn_model_forward.4} parent=0 // pred_region
    _
  $region13: #{graph_gnn_model_forward.4} parent=0 // pred_fallthru
    _
  // Predicated region
  $region14: #{graph_gnn_model_forward.4} parent=0 // pred_check
    _
  $region15: #{graph_gnn_model_forward.4} parent=0 // pred_check_branch
    %23 = sbr.rel (0) target = $region17
  $region16: #{graph_gnn_model_forward.4} parent=0 // pred_region
    _
  $region17: #{graph_gnn_model_forward.4} parent=0 // pred_fallthru
    _
  // Predicated region
  $region18: #{graph_gnn_model_forward.4} parent=0 // pred_check
    _
  $region19: #{graph_gnn_model_forward.4} parent=0 // pred_check_branch
    %25 = sbr.rel (0) target = $region21
  $region20: #{graph_gnn_model_forward.4} parent=0 // pred_region
    _
  $region21: #{graph_gnn_model_forward.4} parent=0 // pred_fallthru
    _
  // Predicated region
  $region22: #{graph_gnn_model_forward.4} parent=0 // pred_check
    _
  $region23: #{graph_gnn_model_forward.4} parent=0 // pred_check_branch
    %27 = sbr.rel (0) target = $region25
  $region24: #{graph_gnn_model_forward.4} parent=0 // pred_region
    _
  $region25: #{graph_gnn_model_forward.4} parent=0 // pred_fallthru
    _
  // Predicated region
  $region26: #{graph_gnn_model_forward.4} parent=0 // pred_check
    _
  $region27: #{graph_gnn_model_forward.4} parent=0 // pred_check_branch
    %29 = sbr.rel (0) target = $region29
  $region28: #{graph_gnn_model_forward.4} parent=0 // pred_region
    _
  $region29: #{graph_gnn_model_forward.4} parent=0 // pred_fallthru
    _
  // Predicated region
  $region30: #{graph_gnn_model_forward.4} parent=0 // pred_check
    _
  $region31: #{graph_gnn_model_forward.4} parent=0 // pred_check_branch
    %31 = sbr.rel (0) target = $region33
  $region32: #{graph_gnn_model_forward.4} parent=0 // pred_region
    _
  $region33: #{graph_gnn_model_forward.4} parent=0 // pred_fallthru
    _
  // Predicated region
  $region34: #{graph_gnn_model_forward.4} parent=0 // pred_check
    _
  $region35: #{graph_gnn_model_forward.4} parent=0 // pred_check_branch
    %33 = sbr.rel (0) target = $region37
  $region36: #{graph_gnn_model_forward.4} parent=0 // pred_region
    _
  $region37: #{graph_gnn_model_forward.4} parent=0 // pred_fallthru
    _
  // Predicated region
  $region38: #{graph_gnn_model_forward.4} parent=0 // pred_check
    _
  $region39: #{graph_gnn_model_forward.4} parent=0 // pred_check_branch
    %35 = sbr.rel (0) target = $region41
  $region40: #{graph_gnn_model_forward.4} parent=0 // pred_region
    _
  $region41: #{graph_gnn_model_forward.4} parent=0 // pred_fallthru
    _
  // Predicated region
  $region42: #{graph_gnn_model_forward.4} parent=0 // pred_check
    _
  $region43: #{graph_gnn_model_forward.4} parent=0 // pred_check_branch
    %37 = sbr.rel (0) target = $region45
  $region44: #{graph_gnn_model_forward.4} parent=0 // pred_region
    _
  $region45: #{graph_gnn_model_forward.4} parent=0 // pred_fallthru
    _
  %p39 = scmp.eq.s32.totalorder 0, 0
  // Predicated region
  $region46: #{graph_gnn_model_forward.4} parent=0 // pred_check
    %p40 = pneg %p39
  $region47: #{graph_gnn_model_forward.4} parent=0 // pred_check_branch
    %42 = sbr.rel (%p40) target = $region49
  $region48: #{graph_gnn_model_forward.4} parent=0 // pred_region
    %v43 = vld [vmem:[%s3] sm:$0xf]
    %v44 = vld [vmem:[%s3 + $0x4] sm:$0xf]
    %v45 = vld [vmem:[%s9] sm:$0xf]
    %v46 = vld [vmem:[%s9 + $0x4] sm:$0xf]
    %v47 = vld [vmem:[%s9 + $0x8] sm:$0xf]
    %v48 = vld [vmem:[%s9 + $0xc] sm:$0xf]
    %v49 = vld [vmem:[%s10] sm:$0x1]
    %v51 = vlaneseq
    %v52 = vshrl.u32 %v51, 7
    %v53 = vsub.s32 0, %v52
    %v54 = vrot.slane %v49, %v53
    %v58 = vunpack.c.l.b16 %v43
    %v59 = vunpack.c.l.b16 %v44
    %v60 = vpack.c.b16 %v59, %v58
    %v65 = vunpack.c.l.b16 %v45
    %v66 = vunpack.c.l.b16 %v46
    %v67 = vunpack.c.l.b16 %v47
    %v68 = vunpack.c.l.b16 %v48
    %v69 = vpack.c.b16 %v66, %v65
    %v70 = vpack.c.b16 %v68, %v67
    %vm73 = vcmask 261120
    %v75 = vsel %vm73, %v60, 0
    %77 = vmatprep.subr.bf16.mxu0 0
    %78 = vmatpush1.bf16.msra.mxu0 %v69
    %79 = vmatprep.subr.bf16.mxu0 0
    %80 = vmatpush1.bf16.msra.mxu0 %v70
    %81 = vmatprep.subr.bf16.mxu0 0
    %82 = vmatpush1.bf16.msra.mxu0 0
    %83 = vmatprep.subr.bf16.mxu0 0
    %84 = vmatpush1.bf16.msra.mxu0 0
    %85 = vmatprep.subr.bf16.mxu0 0
    %86 = vmatpush1.bf16.msra.mxu0 0
    %87 = vmatprep.subr.bf16.mxu0 0
    %88 = vmatpush1.bf16.msra.mxu0 0
    %89 = vmatprep.subr.bf16.mxu0 0
    %90 = vmatpush1.bf16.msra.mxu0 0
    %91 = vmatprep.subr.bf16.mxu0 0
    %92 = vmatpush1.bf16.msra.mxu0 0
    %93 = vmatprep.subr.bf16.mxu0 0
    %94 = vmatpush1.bf16.msra.mxu0 0
    %95 = vmatprep.subr.bf16.mxu0 0
    %96 = vmatpush1.bf16.msra.mxu0 0
    %97 = vmatprep.subr.bf16.mxu0 0
    %98 = vmatpush1.bf16.msra.mxu0 0
    %99 = vmatprep.subr.bf16.mxu0 0
    %100 = vmatpush1.bf16.msra.mxu0 0
    %101 = vmatprep.subr.bf16.mxu0 0
    %102 = vmatpush1.bf16.msra.mxu0 0
    %103 = vmatprep.subr.bf16.mxu0 0
    %104 = vmatpush1.bf16.msra.mxu0 0
    %105 = vmatprep.subr.bf16.mxu0 0
    %106 = vmatpush1.bf16.msra.mxu0 0
    %107 = vmatprep.subr.bf16.mxu0 0
    %108 = vmatpush1.bf16.msra.mxu0 0
    %109 = vmatprep.mubr.bf16.mxu0 0
    %110 = vmatmul.mubr.bf16.gmra.mrb[0].mxu0 %v75
    %v111 = vpop.f32.mrb[0].mxu0
    %v112 = vadd.f32 %v54, %v111
    %v113 = vpop.f32.mrb[0].mxu0
    %v114 = vpop.f32.mrb[0].mxu0
    %v115 = vadd.f32 %v54, %v114
    %v116 = vpop.f32.mrb[0].mxu0
    %117 = vdwg.mxu0
    %118 = vst.msk [vmem:[#allocation2] sm:$0xff] %vm73, %v112
    %119 = vst.msk [vmem:[#allocation2 + $0x8] sm:$0xff] %vm73, %v115
  $region49: #{graph_gnn_model_forward.4} parent=0 // pred_fallthru
    _
  %v120 = vld [vmem:[%s2] sm:$0xf]
  %v121 = vld [vmem:[%s2 + $0x4] sm:$0xf]
  %v122 = vld [vmem:[%s2 + $0x8] sm:$0xf]
  %v123 = vld [vmem:[%s2 + $0xc] sm:$0xf]
  %v124 = vld [vmem:[%s2 + $0x10] sm:$0xf]
  %v125 = vld [vmem:[%s2 + $0x14] sm:$0xf]
  %v126 = vld [vmem:[%s2 + $0x18] sm:$0xf]
  %v127 = vld [vmem:[%s2 + $0x1c] sm:$0xf]
  %v128 = vld [vmem:[%s2 + $0x20] sm:$0xf]
  %v129 = vld [vmem:[%s2 + $0x24] sm:$0xf]
  %v130 = vld [vmem:[%s2 + $0x28] sm:$0xf]
  %v131 = vld [vmem:[%s2 + $0x2c] sm:$0xf]
  %v132 = vld [vmem:[%s2 + $0x30] sm:$0xf]
  %v133 = vld [vmem:[%s2 + $0x34] sm:$0xf]
  %v134 = vld [vmem:[%s2 + $0x38] sm:$0xf]
  %v135 = vld [vmem:[%s2 + $0x3c] sm:$0xf]
  %v136 = vld [vmem:[%s4] sm:$0x7]
  %v137 = vld [vmem:[%s5] sm:$0x1]
  %v139 = vlaneseq
  %v140 = vshrl.u32 %v139, 7
  %v141 = vsub.s32 0, %v140
  %v142 = vrot.slane %v137, %v141
  %v160 = vunpack.c.l.b16 %v120
  %v161 = vunpack.c.l.b16 %v121
  %v162 = vunpack.c.l.b16 %v122
  %v163 = vunpack.c.l.b16 %v123
  %v164 = vunpack.c.l.b16 %v124
  %v165 = vunpack.c.l.b16 %v125
  %v166 = vunpack.c.l.b16 %v126
  %v167 = vunpack.c.l.b16 %v127
  %v168 = vunpack.c.l.b16 %v128
  %v169 = vunpack.c.l.b16 %v129
  %v170 = vunpack.c.l.b16 %v130
  %v171 = vunpack.c.l.b16 %v131
  %v172 = vunpack.c.l.b16 %v132
  %v173 = vunpack.c.l.b16 %v133
  %v174 = vunpack.c.l.b16 %v134
  %v175 = vunpack.c.l.b16 %v135
  %v176 = vpack.c.b16 %v161, %v160
  %v177 = vpack.c.b16 %v163, %v162
  %v178 = vpack.c.b16 %v165, %v164
  %v179 = vpack.c.b16 %v167, %v166
  %v180 = vpack.c.b16 %v169, %v168
  %v181 = vpack.c.b16 %v171, %v170
  %v182 = vpack.c.b16 %v173, %v172
  %v183 = vpack.c.b16 %v175, %v174
  %vm184 = vcmask 48128
  %v186 = vsel %vm184, %v176, 0
  %v189 = vsel %vm184, %v177, 0
  %v192 = vsel %vm184, %v178, 0
  %v195 = vsel %vm184, %v179, 0
  %v198 = vsel %vm184, %v180, 0
  %v201 = vsel %vm184, %v181, 0
  %v204 = vsel %vm184, %v182, 0
  %v207 = vsel %vm184, %v183, 0
  %vm209 = vcmask 1042432
  %v211 = vsel %vm209, %v136, 0
  %213 = vmatprep.subr.bf16.mxu0 0
  %214 = vmatpush1.bf16.msra.mxu0 %v211
  %215 = vmatprep.subr.bf16.mxu0 0
  %216 = vmatpush1.bf16.msra.mxu0 0
  %217 = vmatprep.subr.bf16.mxu0 0
  %218 = vmatpush1.bf16.msra.mxu0 0
  %219 = vmatprep.subr.bf16.mxu0 0
  %220 = vmatpush1.bf16.msra.mxu0 0
  %221 = vmatprep.subr.bf16.mxu0 0
  %222 = vmatpush1.bf16.msra.mxu0 0
  %223 = vmatprep.subr.bf16.mxu0 0
  %224 = vmatpush1.bf16.msra.mxu0 0
  %225 = vmatprep.subr.bf16.mxu0 0
  %226 = vmatpush1.bf16.msra.mxu0 0
  %227 = vmatprep.subr.bf16.mxu0 0
  %228 = vmatpush1.bf16.msra.mxu0 0
  %229 = vmatprep.subr.bf16.mxu0 0
  %230 = vmatpush1.bf16.msra.mxu0 0
  %231 = vmatprep.subr.bf16.mxu0 0
  %232 = vmatpush1.bf16.msra.mxu0 0
  %233 = vmatprep.subr.bf16.mxu0 0
  %234 = vmatpush1.bf16.msra.mxu0 0
  %235 = vmatprep.subr.bf16.mxu0 0
  %236 = vmatpush1.bf16.msra.mxu0 0
  %237 = vmatprep.subr.bf16.mxu0 0
  %238 = vmatpush1.bf16.msra.mxu0 0
  %239 = vmatprep.subr.bf16.mxu0 0
  %240 = vmatpush1.bf16.msra.mxu0 0
  %241 = vmatprep.subr.bf16.mxu0 0
  %242 = vmatpush1.bf16.msra.mxu0 0
  %243 = vmatprep.subr.bf16.mxu0 0
  %244 = vmatpush1.bf16.msra.mxu0 0
  %245 = vmatprep.mubr.bf16.mxu0 0
  %246 = vmatmul.mubr.bf16.gmra.mrb[0].mxu0 %v186
  %v247 = vpop.f32.mrb[0].mxu0
  %v248 = vadd.f32 %v142, %v247
  %v249 = vpop.f32.mrb[0].mxu0
  %v250 = vpop.f32.mrb[0].mxu0
  %v251 = vadd.f32 %v142, %v250
  %v252 = vpop.f32.mrb[0].mxu0
  %253 = vmatprep.mubr.bf16.mxu0 0
  %254 = vmatmul.mubr.bf16.gmra.mrb[0].mxu0 %v189
  %v255 = vpop.f32.mrb[0].mxu0
  %v256 = vadd.f32 %v142, %v255
  %v257 = vpop.f32.mrb[0].mxu0
  %v258 = vpop.f32.mrb[0].mxu0
  %v259 = vadd.f32 %v142, %v258
  %v260 = vpop.f32.mrb[0].mxu0
  %261 = vmatprep.mubr.bf16.mxu0 0
  %262 = vmatmul.mubr.bf16.gmra.mrb[0].mxu0 %v192
  %v263 = vpop.f32.mrb[0].mxu0
  %v264 = vadd.f32 %v142, %v263
  %v265 = vpop.f32.mrb[0].mxu0
  %v266 = vpop.f32.mrb[0].mxu0
  %v267 = vadd.f32 %v142, %v266
  %v268 = vpop.f32.mrb[0].mxu0
  %269 = vmatprep.mubr.bf16.mxu0 0
  %270 = vmatmul.mubr.bf16.gmra.mrb[0].mxu0 %v195
  %v271 = vpop.f32.mrb[0].mxu0
  %v272 = vadd.f32 %v142, %v271
  %v273 = vpop.f32.mrb[0].mxu0
  %v274 = vpop.f32.mrb[0].mxu0
  %v275 = vadd.f32 %v142, %v274
  %v276 = vpop.f32.mrb[0].mxu0
  %277 = vmatprep.mubr.bf16.mxu0 0
  %278 = vmatmul.mubr.bf16.gmra.mrb[0].mxu0 %v198
  %v279 = vpop.f32.mrb[0].mxu0
  %v280 = vadd.f32 %v142, %v279
  %v281 = vpop.f32.mrb[0].mxu0
  %v282 = vpop.f32.mrb[0].mxu0
  %v283 = vadd.f32 %v142, %v282
  %v284 = vpop.f32.mrb[0].mxu0
  %285 = vmatprep.mubr.bf16.mxu0 0
  %286 = vmatmul.mubr.bf16.gmra.mrb[0].mxu0 %v201
  %v287 = vpop.f32.mrb[0].mxu0
  %v288 = vadd.f32 %v142, %v287
  %v289 = vpop.f32.mrb[0].mxu0
  %v290 = vpop.f32.mrb[0].mxu0
  %v291 = vadd.f32 %v142, %v290
  %v292 = vpop.f32.mrb[0].mxu0
  %293 = vmatprep.mubr.bf16.mxu0 0
  %294 = vmatmul.mubr.bf16.gmra.mrb[0].mxu0 %v204
  %v295 = vpop.f32.mrb[0].mxu0
  %v296 = vadd.f32 %v142, %v295
  %v297 = vpop.f32.mrb[0].mxu0
  %v298 = vpop.f32.mrb[0].mxu0
  %v299 = vadd.f32 %v142, %v298
  %v300 = vpop.f32.mrb[0].mxu0
  %301 = vmatprep.mubr.bf16.mxu0 0
  %302 = vmatmul.mubr.bf16.gmra.mrb[0].mxu0 %v207
  %v303 = vpop.f32.mrb[0].mxu0
  %v304 = vadd.f32 %v142, %v303
  %v305 = vpop.f32.mrb[0].mxu0
  %v306 = vpop.f32.mrb[0].mxu0
  %v307 = vadd.f32 %v142, %v306
  %v308 = vpop.f32.mrb[0].mxu0
  %309 = vdwg.mxu0
  %v310 = vmax.f32 %v248, 0.0
  %v311 = vmax.f32 %v251, 0.0
  %v312 = vmax.f32 %v256, 0.0
  %v313 = vmax.f32 %v259, 0.0
  %v314 = vmax.f32 %v264, 0.0
  %v315 = vmax.f32 %v267, 0.0
  %v316 = vmax.f32 %v272, 0.0
  %v317 = vmax.f32 %v275, 0.0
  %v318 = vmax.f32 %v280, 0.0
  %v319 = vmax.f32 %v283, 0.0
  %v320 = vmax.f32 %v288, 0.0
  %v321 = vmax.f32 %v291, 0.0
  %v322 = vmax.f32 %v296, 0.0
  %v323 = vmax.f32 %v299, 0.0
  %v324 = vmax.f32 %v304, 0.0
  %v325 = vmax.f32 %v307, 0.0
  %v326 = vpack.c.bf16 %v311, %v310
  %v327 = vpack.c.bf16 %v313, %v312
  %v328 = vpack.c.bf16 %v315, %v314
  %v329 = vpack.c.bf16 %v317, %v316
  %v330 = vpack.c.bf16 %v319, %v318
  %v331 = vpack.c.bf16 %v321, %v320
  %v332 = vpack.c.bf16 %v323, %v322
  %v333 = vpack.c.bf16 %v325, %v324
  %v334 = vld [vmem:[%s6] sm:$0xff]
  %v335 = vld [vmem:[%s6 + $0x8] sm:$0xff]
  %v336 = vld [vmem:[%s6 + $0x10] sm:$0xff]
  %v337 = vld [vmem:[%s6 + $0x18] sm:$0xff]
  %v338 = vld [vmem:[%s6 + $0x20] sm:$0xff]
  %v339 = vld [vmem:[%s6 + $0x28] sm:$0xff]
  %v340 = vld [vmem:[%s6 + $0x30] sm:$0xff]
  %v341 = vld [vmem:[%s6 + $0x38] sm:$0xff]
  %v342 = vld [vmem:[%s7] sm:$0xff]
  %v344 = vlaneseq
  %v345 = vshrl.u32 %v344, 7
  %v346 = vsub.s32 0, %v345
  %v347 = vrot.slane %v342, %v346
  %v348 = vlaneseq
  %v349 = vshrl.u32 %v348, 7
  %v350 = vsub.s32 1, %v349
  %v351 = vrot.slane %v342, %v350
  %v352 = vlaneseq
  %v353 = vshrl.u32 %v352, 7
  %v354 = vsub.s32 2, %v353
  %v355 = vrot.slane %v342, %v354
  %v356 = vlaneseq
  %v357 = vshrl.u32 %v356, 7
  %v358 = vsub.s32 3, %v357
  %v359 = vrot.slane %v342, %v358
  %v360 = vlaneseq
  %v361 = vshrl.u32 %v360, 7
  %v362 = vsub.s32 4, %v361
  %v363 = vrot.slane %v342, %v362
  %v364 = vlaneseq
  %v365 = vshrl.u32 %v364, 7
  %v366 = vsub.s32 5, %v365
  %v367 = vrot.slane %v342, %v366
  %v368 = vlaneseq
  %v369 = vshrl.u32 %v368, 7
  %v370 = vsub.s32 6, %v369
  %v371 = vrot.slane %v342, %v370
  %v372 = vlaneseq
  %v373 = vshrl.u32 %v372, 7
  %v374 = vsub.s32 7, %v373
  %v375 = vrot.slane %v342, %v374
  %v392 = vunpack.c.l.b16 %v334
  %v393 = vunpack.c.h.b16 %v334
  %v394 = vunpack.c.l.b16 %v335
  %v395 = vunpack.c.h.b16 %v335
  %v396 = vunpack.c.l.b16 %v336
  %v397 = vunpack.c.h.b16 %v336
  %v398 = vunpack.c.l.b16 %v337
  %v399 = vunpack.c.h.b16 %v337
  %v400 = vunpack.c.l.b16 %v338
  %v401 = vunpack.c.h.b16 %v338
  %v402 = vunpack.c.l.b16 %v339
  %v403 = vunpack.c.h.b16 %v339
  %v404 = vunpack.c.l.b16 %v340
  %v405 = vunpack.c.h.b16 %v340
  %v406 = vunpack.c.l.b16 %v341
  %v407 = vunpack.c.h.b16 %v341
  %v408 = vpack.c.b16 %v400, %v392
  %v409 = vpack.c.b16 %v401, %v393
  %v410 = vpack.c.b16 %v402, %v394
  %v411 = vpack.c.b16 %v403, %v395
  %v412 = vpack.c.b16 %v404, %v396
  %v413 = vpack.c.b16 %v405, %v397
  %v414 = vpack.c.b16 %v406, %v398
  %v415 = vpack.c.b16 %v407, %v399
  %vm424 = vcmask 130048
  %v426 = vsel %vm424, %v326, 0
  %v429 = vsel %vm424, %v327, 0
  %v432 = vsel %vm424, %v328, 0
  %v435 = vsel %vm424, %v329, 0
  %v438 = vsel %vm424, %v330, 0
  %v441 = vsel %vm424, %v331, 0
  %v444 = vsel %vm424, %v332, 0
  %v447 = vsel %vm424, %v333, 0
  %449 = vmatprep.subr.bf16.mxu0 %v409
  %450 = vmatpush1.bf16.msra.mxu0 %v408
  %451 = vmatprep.subr.bf16.mxu0 0
  %452 = vmatpush1.bf16.msra.mxu0 0
  %453 = vmatprep.subr.bf16.mxu0 0
  %454 = vmatpush1.bf16.msra.mxu0 0
  %455 = vmatprep.subr.bf16.mxu0 0
  %456 = vmatpush1.bf16.msra.mxu0 0
  %457 = vmatprep.subr.bf16.mxu0 0
  %458 = vmatpush1.bf16.msra.mxu0 0
  %459 = vmatprep.subr.bf16.mxu0 0
  %460 = vmatpush1.bf16.msra.mxu0 0
  %461 = vmatprep.subr.bf16.mxu0 0
  %462 = vmatpush1.bf16.msra.mxu0 0
  %463 = vmatprep.subr.bf16.mxu0 0
  %464 = vmatpush1.bf16.msra.mxu0 0
  %465 = vmatprep.subr.bf16.mxu0 0
  %466 = vmatpush1.bf16.msra.mxu0 0
  %467 = vmatprep.subr.bf16.mxu0 0
  %468 = vmatpush1.bf16.msra.mxu0 0
  %469 = vmatprep.subr.bf16.mxu0 0
  %470 = vmatpush1.bf16.msra.mxu0 0
  %471 = vmatprep.subr.bf16.mxu0 0
  %472 = vmatpush1.bf16.msra.mxu0 0
  %473 = vmatprep.subr.bf16.mxu0 0
  %474 = vmatpush1.bf16.msra.mxu0 0
  %475 = vmatprep.subr.bf16.mxu0 0
  %476 = vmatpush1.bf16.msra.mxu0 0
  %477 = vmatprep.subr.bf16.mxu0 0
  %478 = vmatpush1.bf16.msra.mxu0 0
  %479 = vmatprep.subr.bf16.mxu0 0
  %480 = vmatpush1.bf16.msra.mxu0 0
  %481 = vmatprep.mubr.bf16.mxu0 0
  %482 = vmatmul.mubr.bf16.gmra.mrb[0].mxu0 %v426
  %v483 = vpop.f32.mrb[0].mxu0
  %v484 = vadd.f32 %v347, %v483
  %v485 = vpop.f32.mrb[0].mxu0
  %v486 = vadd.f32 %v351, %v485
  %v487 = vpop.f32.mrb[0].mxu0
  %v488 = vadd.f32 %v347, %v487
  %v489 = vpop.f32.mrb[0].mxu0
  %v490 = vadd.f32 %v351, %v489
  %491 = vmatprep.mubr.bf16.mxu0 0
  %492 = vmatmul.mubr.bf16.gmra.mrb[0].mxu0 %v429
  %v493 = vpop.f32.mrb[0].mxu0
  %v494 = vadd.f32 %v347, %v493
  %v495 = vpop.f32.mrb[0].mxu0
  %v496 = vadd.f32 %v351, %v495
  %v497 = vpop.f32.mrb[0].mxu0
  %v498 = vadd.f32 %v347, %v497
  %v499 = vpop.f32.mrb[0].mxu0
  %v500 = vadd.f32 %v351, %v499
  %501 = vmatprep.mubr.bf16.mxu0 0
  %502 = vmatmul.mubr.bf16.gmra.mrb[0].mxu0 %v432
  %v503 = vpop.f32.mrb[0].mxu0
  %v504 = vadd.f32 %v347, %v503
  %v505 = vpop.f32.mrb[0].mxu0
  %v506 = vadd.f32 %v351, %v505
  %v507 = vpop.f32.mrb[0].mxu0
  %v508 = vadd.f32 %v347, %v507
  %v509 = vpop.f32.mrb[0].mxu0
  %v510 = vadd.f32 %v351, %v509
  %511 = vmatprep.mubr.bf16.mxu0 0
  %512 = vmatmul.mubr.bf16.gmra.mrb[0].mxu0 %v435
  %v513 = vpop.f32.mrb[0].mxu0
  %v514 = vadd.f32 %v347, %v513
  %v515 = vpop.f32.mrb[0].mxu0
  %v516 = vadd.f32 %v351, %v515
  %v517 = vpop.f32.mrb[0].mxu0
  %v518 = vadd.f32 %v347, %v517
  %v519 = vpop.f32.mrb[0].mxu0
  %v520 = vadd.f32 %v351, %v519
  %521 = vmatprep.mubr.bf16.mxu0 0
  %522 = vmatmul.mubr.bf16.gmra.mrb[0].mxu0 %v438
  %v523 = vpop.f32.mrb[0].mxu0
  %v524 = vadd.f32 %v347, %v523
  %v525 = vpop.f32.mrb[0].mxu0
  %v526 = vadd.f32 %v351, %v525
  %v527 = vpop.f32.mrb[0].mxu0
  %v528 = vadd.f32 %v347, %v527
  %v529 = vpop.f32.mrb[0].mxu0
  %v530 = vadd.f32 %v351, %v529
  %531 = vmatprep.mubr.bf16.mxu0 0
  %532 = vmatmul.mubr.bf16.gmra.mrb[0].mxu0 %v441
  %v533 = vpop.f32.mrb[0].mxu0
  %v534 = vadd.f32 %v347, %v533
  %v535 = vpop.f32.mrb[0].mxu0
  %v536 = vadd.f32 %v351, %v535
  %v537 = vpop.f32.mrb[0].mxu0
  %v538 = vadd.f32 %v347, %v537
  %v539 = vpop.f32.mrb[0].mxu0
  %v540 = vadd.f32 %v351, %v539
  %541 = vmatprep.mubr.bf16.mxu0 0
  %542 = vmatmul.mubr.bf16.gmra.mrb[0].mxu0 %v444
  %v543 = vpop.f32.mrb[0].mxu0
  %v544 = vadd.f32 %v347, %v543
  %v545 = vpop.f32.mrb[0].mxu0
  %v546 = vadd.f32 %v351, %v545
  %v547 = vpop.f32.mrb[0].mxu0
  %v548 = vadd.f32 %v347, %v547
  %v549 = vpop.f32.mrb[0].mxu0
  %v550 = vadd.f32 %v351, %v549
  %551 = vmatprep.mubr.bf16.mxu0 0
  %552 = vmatmul.mubr.bf16.gmra.mrb[0].mxu0 %v447
  %v553 = vpop.f32.mrb[0].mxu0
  %v554 = vadd.f32 %v347, %v553
  %v555 = vpop.f32.mrb[0].mxu0
  %v556 = vadd.f32 %v351, %v555
  %v557 = vpop.f32.mrb[0].mxu0
  %v558 = vadd.f32 %v347, %v557
  %v559 = vpop.f32.mrb[0].mxu0
  %v560 = vadd.f32 %v351, %v559
  %561 = vdwg.mxu0
  %562 = vmatprep.subr.bf16.mxu0 %v411
  %563 = vmatpush1.bf16.msra.mxu0 %v410
  %564 = vmatprep.subr.bf16.mxu0 0
  %565 = vmatpush1.bf16.msra.mxu0 0
  %566 = vmatprep.subr.bf16.mxu0 0
  %567 = vmatpush1.bf16.msra.mxu0 0
  %568 = vmatprep.subr.bf16.mxu0 0
  %569 = vmatpush1.bf16.msra.mxu0 0
  %570 = vmatprep.subr.bf16.mxu0 0
  %571 = vmatpush1.bf16.msra.mxu0 0
  %572 = vmatprep.subr.bf16.mxu0 0
  %573 = vmatpush1.bf16.msra.mxu0 0
  %574 = vmatprep.subr.bf16.mxu0 0
  %575 = vmatpush1.bf16.msra.mxu0 0
  %576 = vmatprep.subr.bf16.mxu0 0
  %577 = vmatpush1.bf16.msra.mxu0 0
  %578 = vmatprep.subr.bf16.mxu0 0
  %579 = vmatpush1.bf16.msra.mxu0 0
  %580 = vmatprep.subr.bf16.mxu0 0
  %581 = vmatpush1.bf16.msra.mxu0 0
  %582 = vmatprep.subr.bf16.mxu0 0
  %583 = vmatpush1.bf16.msra.mxu0 0
  %584 = vmatprep.subr.bf16.mxu0 0
  %585 = vmatpush1.bf16.msra.mxu0 0
  %586 = vmatprep.subr.bf16.mxu0 0
  %587 = vmatpush1.bf16.msra.mxu0 0
  %588 = vmatprep.subr.bf16.mxu0 0
  %589 = vmatpush1.bf16.msra.mxu0 0
  %590 = vmatprep.subr.bf16.mxu0 0
  %591 = vmatpush1.bf16.msra.mxu0 0
  %592 = vmatprep.subr.bf16.mxu0 0
  %593 = vmatpush1.bf16.msra.mxu0 0
  %594 = vmatprep.mubr.bf16.mxu0 0
  %595 = vmatmul.mubr.bf16.gmra.mrb[0].mxu0 %v426
  %v596 = vpop.f32.mrb[0].mxu0
  %v597 = vadd.f32 %v355, %v596
  %v598 = vpop.f32.mrb[0].mxu0
  %v599 = vadd.f32 %v359, %v598
  %v600 = vpop.f32.mrb[0].mxu0
  %v601 = vadd.f32 %v355, %v600
  %v602 = vpop.f32.mrb[0].mxu0
  %v603 = vadd.f32 %v359, %v602
  %604 = vmatprep.mubr.bf16.mxu0 0
  %605 = vmatmul.mubr.bf16.gmra.mrb[0].mxu0 %v429
  %v606 = vpop.f32.mrb[0].mxu0
  %v607 = vadd.f32 %v355, %v606
  %v608 = vpop.f32.mrb[0].mxu0
  %v609 = vadd.f32 %v359, %v608
  %v610 = vpop.f32.mrb[0].mxu0
  %v611 = vadd.f32 %v355, %v610
  %v612 = vpop.f32.mrb[0].mxu0
  %v613 = vadd.f32 %v359, %v612
  %614 = vmatprep.mubr.bf16.mxu0 0
  %615 = vmatmul.mubr.bf16.gmra.mrb[0].mxu0 %v432
  %v616 = vpop.f32.mrb[0].mxu0
  %v617 = vadd.f32 %v355, %v616
  %v618 = vpop.f32.mrb[0].mxu0
  %v619 = vadd.f32 %v359, %v618
  %v620 = vpop.f32.mrb[0].mxu0
  %v621 = vadd.f32 %v355, %v620
  %v622 = vpop.f32.mrb[0].mxu0
  %v623 = vadd.f32 %v359, %v622
  %624 = vmatprep.mubr.bf16.mxu0 0
  %625 = vmatmul.mubr.bf16.gmra.mrb[0].mxu0 %v435
  %v626 = vpop.f32.mrb[0].mxu0
  %v627 = vadd.f32 %v355, %v626
  %v628 = vpop.f32.mrb[0].mxu0
  %v629 = vadd.f32 %v359, %v628
  %v630 = vpop.f32.mrb[0].mxu0
  %v631 = vadd.f32 %v355, %v630
  %v632 = vpop.f32.mrb[0].mxu0
  %v633 = vadd.f32 %v359, %v632
  %634 = vmatprep.mubr.bf16.mxu0 0
  %635 = vmatmul.mubr.bf16.gmra.mrb[0].mxu0 %v438
  %v636 = vpop.f32.mrb[0].mxu0
  %v637 = vadd.f32 %v355, %v636
  %v638 = vpop.f32.mrb[0].mxu0
  %v639 = vadd.f32 %v359, %v638
  %v640 = vpop.f32.mrb[0].mxu0
  %v641 = vadd.f32 %v355, %v640
  %v642 = vpop.f32.mrb[0].mxu0
  %v643 = vadd.f32 %v359, %v642
  %644 = vmatprep.mubr.bf16.mxu0 0
  %645 = vmatmul.mubr.bf16.gmra.mrb[0].mxu0 %v441
  %v646 = vpop.f32.mrb[0].mxu0
  %v647 = vadd.f32 %v355, %v646
  %v648 = vpop.f32.mrb[0].mxu0
  %v649 = vadd.f32 %v359, %v648
  %v650 = vpop.f32.mrb[0].mxu0
  %v651 = vadd.f32 %v355, %v650
  %v652 = vpop.f32.mrb[0].mxu0
  %v653 = vadd.f32 %v359, %v652
  %654 = vmatprep.mubr.bf16.mxu0 0
  %655 = vmatmul.mubr.bf16.gmra.mrb[0].mxu0 %v444
  %v656 = vpop.f32.mrb[0].mxu0
  %v657 = vadd.f32 %v355, %v656
  %v658 = vpop.f32.mrb[0].mxu0
  %v659 = vadd.f32 %v359, %v658
  %v660 = vpop.f32.mrb[0].mxu0
  %v661 = vadd.f32 %v355, %v660
  %v662 = vpop.f32.mrb[0].mxu0
  %v663 = vadd.f32 %v359, %v662
  %664 = vmatprep.mubr.bf16.mxu0 0
  %665 = vmatmul.mubr.bf16.gmra.mrb[0].mxu0 %v447
  %v666 = vpop.f32.mrb[0].mxu0
  %v667 = vadd.f32 %v355, %v666
  %v668 = vpop.f32.mrb[0].mxu0
  %v669 = vadd.f32 %v359, %v668
  %v670 = vpop.f32.mrb[0].mxu0
  %v671 = vadd.f32 %v355, %v670
  %v672 = vpop.f32.mrb[0].mxu0
  %v673 = vadd.f32 %v359, %v672
  %674 = vdwg.mxu0
  %675 = vmatprep.subr.bf16.mxu0 %v413
  %676 = vmatpush1.bf16.msra.mxu0 %v412
  %677 = vmatprep.subr.bf16.mxu0 0
  %678 = vmatpush1.bf16.msra.mxu0 0
  %679 = vmatprep.subr.bf16.mxu0 0
  %680 = vmatpush1.bf16.msra.mxu0 0
  %681 = vmatprep.subr.bf16.mxu0 0
  %682 = vmatpush1.bf16.msra.mxu0 0
  %683 = vmatprep.subr.bf16.mxu0 0
  %684 = vmatpush1.bf16.msra.mxu0 0
  %685 = vmatprep.subr.bf16.mxu0 0
  %686 = vmatpush1.bf16.msra.mxu0 0
  %687 = vmatprep.subr.bf16.mxu0 0
  %688 = vmatpush1.bf16.msra.mxu0 0
  %689 = vmatprep.subr.bf16.mxu0 0
  %690 = vmatpush1.bf16.msra.mxu0 0
  %691 = vmatprep.subr.bf16.mxu0 0
  %692 = vmatpush1.bf16.msra.mxu0 0
  %693 = vmatprep.subr.bf16.mxu0 0
  %694 = vmatpush1.bf16.msra.mxu0 0
  %695 = vmatprep.subr.bf16.mxu0 0
  %696 = vmatpush1.bf16.msra.mxu0 0
  %697 = vmatprep.subr.bf16.mxu0 0
  %698 = vmatpush1.bf16.msra.mxu0 0
  %699 = vmatprep.subr.bf16.mxu0 0
  %700 = vmatpush1.bf16.msra.mxu0 0
  %701 = vmatprep.subr.bf16.mxu0 0
  %702 = vmatpush1.bf16.msra.mxu0 0
  %703 = vmatprep.subr.bf16.mxu0 0
  %704 = vmatpush1.bf16.msra.mxu0 0
  %705 = vmatprep.subr.bf16.mxu0 0
  %706 = vmatpush1.bf16.msra.mxu0 0
  %707 = vmatprep.mubr.bf16.mxu0 0
  %708 = vmatmul.mubr.bf16.gmra.mrb[0].mxu0 %v426
  %v709 = vpop.f32.mrb[0].mxu0
  %v710 = vadd.f32 %v363, %v709
  %v711 = vpop.f32.mrb[0].mxu0
  %v712 = vadd.f32 %v367, %v711
  %v713 = vpop.f32.mrb[0].mxu0
  %v714 = vadd.f32 %v363, %v713
  %v715 = vpop.f32.mrb[0].mxu0
  %v716 = vadd.f32 %v367, %v715
  %717 = vmatprep.mubr.bf16.mxu0 0
  %718 = vmatmul.mubr.bf16.gmra.mrb[0].mxu0 %v429
  %v719 = vpop.f32.mrb[0].mxu0
  %v720 = vadd.f32 %v363, %v719
  %v721 = vpop.f32.mrb[0].mxu0
  %v722 = vadd.f32 %v367, %v721
  %v723 = vpop.f32.mrb[0].mxu0
  %v724 = vadd.f32 %v363, %v723
  %v725 = vpop.f32.mrb[0].mxu0
  %v726 = vadd.f32 %v367, %v725
  %727 = vmatprep.mubr.bf16.mxu0 0
  %728 = vmatmul.mubr.bf16.gmra.mrb[0].mxu0 %v432
  %v729 = vpop.f32.mrb[0].mxu0
  %v730 = vadd.f32 %v363, %v729
  %v731 = vpop.f32.mrb[0].mxu0
  %v732 = vadd.f32 %v367, %v731
  %v733 = vpop.f32.mrb[0].mxu0
  %v734 = vadd.f32 %v363, %v733
  %v735 = vpop.f32.mrb[0].mxu0
  %v736 = vadd.f32 %v367, %v735
  %737 = vmatprep.mubr.bf16.mxu0 0
  %738 = vmatmul.mubr.bf16.gmra.mrb[0].mxu0 %v435
  %v739 = vpop.f32.mrb[0].mxu0
  %v740 = vadd.f32 %v363, %v739
  %v741 = vpop.f32.mrb[0].mxu0
  %v742 = vadd.f32 %v367, %v741
  %v743 = vpop.f32.mrb[0].mxu0
  %v744 = vadd.f32 %v363, %v743
  %v745 = vpop.f32.mrb[0].mxu0
  %v746 = vadd.f32 %v367, %v745
  %747 = vmatprep.mubr.bf16.mxu0 0
  %748 = vmatmul.mubr.bf16.gmra.mrb[0].mxu0 %v438
  %v749 = vpop.f32.mrb[0].mxu0
  %v750 = vadd.f32 %v363, %v749
  %v751 = vpop.f32.mrb[0].mxu0
  %v752 = vadd.f32 %v367, %v751
  %v753 = vpop.f32.mrb[0].mxu0
  %v754 = vadd.f32 %v363, %v753
  %v755 = vpop.f32.mrb[0].mxu0
  %v756 = vadd.f32 %v367, %v755
  %757 = vmatprep.mubr.bf16.mxu0 0
  %758 = vmatmul.mubr.bf16.gmra.mrb[0].mxu0 %v441
  %v759 = vpop.f32.mrb[0].mxu0
  %v760 = vadd.f32 %v363, %v759
  %v761 = vpop.f32.mrb[0].mxu0
  %v762 = vadd.f32 %v367, %v761
  %v763 = vpop.f32.mrb[0].mxu0
  %v764 = vadd.f32 %v363, %v763
  %v765 = vpop.f32.mrb[0].mxu0
  %v766 = vadd.f32 %v367, %v765
  %767 = vmatprep.mubr.bf16.mxu0 0
  %768 = vmatmul.mubr.bf16.gmra.mrb[0].mxu0 %v444
  %v769 = vpop.f32.mrb[0].mxu0
  %v770 = vadd.f32 %v363, %v769
  %v771 = vpop.f32.mrb[0].mxu0
  %v772 = vadd.f32 %v367, %v771
  %v773 = vpop.f32.mrb[0].mxu0
  %v774 = vadd.f32 %v363, %v773
  %v775 = vpop.f32.mrb[0].mxu0
  %v776 = vadd.f32 %v367, %v775
  %777 = vmatprep.mubr.bf16.mxu0 0
  %778 = vmatmul.mubr.bf16.gmra.mrb[0].mxu0 %v447
  %v779 = vpop.f32.mrb[0].mxu0
  %v780 = vadd.f32 %v363, %v779
  %v781 = vpop.f32.mrb[0].mxu0
  %v782 = vadd.f32 %v367, %v781
  %v783 = vpop.f32.mrb[0].mxu0
  %v784 = vadd.f32 %v363, %v783
  %v785 = vpop.f32.mrb[0].mxu0
  %v786 = vadd.f32 %v367, %v785
  %787 = vdwg.mxu0
  %788 = vmatprep.subr.bf16.mxu0 %v415
  %789 = vmatpush1.bf16.msra.mxu0 %v414
  %790 = vmatprep.subr.bf16.mxu0 0
  %791 = vmatpush1.bf16.msra.mxu0 0
  %792 = vmatprep.subr.bf16.mxu0 0
  %793 = vmatpush1.bf16.msra.mxu0 0
  %794 = vmatprep.subr.bf16.mxu0 0
  %795 = vmatpush1.bf16.msra.mxu0 0
  %796 = vmatprep.subr.bf16.mxu0 0
  %797 = vmatpush1.bf16.msra.mxu0 0
  %798 = vmatprep.subr.bf16.mxu0 0
  %799 = vmatpush1.bf16.msra.mxu0 0
  %800 = vmatprep.subr.bf16.mxu0 0
  %801 = vmatpush1.bf16.msra.mxu0 0
  %802 = vmatprep.subr.bf16.mxu0 0
  %803 = vmatpush1.bf16.msra.mxu0 0
  %804 = vmatprep.subr.bf16.mxu0 0
  %805 = vmatpush1.bf16.msra.mxu0 0
  %806 = vmatprep.subr.bf16.mxu0 0
  %807 = vmatpush1.bf16.msra.mxu0 0
  %808 = vmatprep.subr.bf16.mxu0 0
  %809 = vmatpush1.bf16.msra.mxu0 0
  %810 = vmatprep.subr.bf16.mxu0 0
  %811 = vmatpush1.bf16.msra.mxu0 0
  %812 = vmatprep.subr.bf16.mxu0 0
  %813 = vmatpush1.bf16.msra.mxu0 0
  %814 = vmatprep.subr.bf16.mxu0 0
  %815 = vmatpush1.bf16.msra.mxu0 0
  %816 = vmatprep.subr.bf16.mxu0 0
  %817 = vmatpush1.bf16.msra.mxu0 0
  %818 = vmatprep.subr.bf16.mxu0 0
  %819 = vmatpush1.bf16.msra.mxu0 0
  %820 = vmatprep.mubr.bf16.mxu0 0
  %821 = vmatmul.mubr.bf16.gmra.mrb[0].mxu0 %v426
  %v822 = vpop.f32.mrb[0].mxu0
  %v823 = vadd.f32 %v371, %v822
  %v824 = vpop.f32.mrb[0].mxu0
  %v825 = vadd.f32 %v375, %v824
  %v826 = vpop.f32.mrb[0].mxu0
  %v827 = vadd.f32 %v371, %v826
  %v828 = vpop.f32.mrb[0].mxu0
  %v829 = vadd.f32 %v375, %v828
  %830 = vmatprep.mubr.bf16.mxu0 0
  %831 = vmatmul.mubr.bf16.gmra.mrb[0].mxu0 %v429
  %v832 = vpop.f32.mrb[0].mxu0
  %v833 = vadd.f32 %v371, %v832
  %v834 = vpop.f32.mrb[0].mxu0
  %v835 = vadd.f32 %v375, %v834
  %v836 = vpop.f32.mrb[0].mxu0
  %v837 = vadd.f32 %v371, %v836
  %v838 = vpop.f32.mrb[0].mxu0
  %v839 = vadd.f32 %v375, %v838
  %840 = vmatprep.mubr.bf16.mxu0 0
  %841 = vmatmul.mubr.bf16.gmra.mrb[0].mxu0 %v432
  %v842 = vpop.f32.mrb[0].mxu0
  %v843 = vadd.f32 %v371, %v842
  %v844 = vpop.f32.mrb[0].mxu0
  %v845 = vadd.f32 %v375, %v844
  %v846 = vpop.f32.mrb[0].mxu0
  %v847 = vadd.f32 %v371, %v846
  %v848 = vpop.f32.mrb[0].mxu0
  %v849 = vadd.f32 %v375, %v848
  %850 = vmatprep.mubr.bf16.mxu0 0
  %851 = vmatmul.mubr.bf16.gmra.mrb[0].mxu0 %v435
  %v852 = vpop.f32.mrb[0].mxu0
  %v853 = vadd.f32 %v371, %v852
  %v854 = vpop.f32.mrb[0].mxu0
  %v855 = vadd.f32 %v375, %v854
  %v856 = vpop.f32.mrb[0].mxu0
  %v857 = vadd.f32 %v371, %v856
  %v858 = vpop.f32.mrb[0].mxu0
  %v859 = vadd.f32 %v375, %v858
  %860 = vmatprep.mubr.bf16.mxu0 0
  %861 = vmatmul.mubr.bf16.gmra.mrb[0].mxu0 %v438
  %v862 = vpop.f32.mrb[0].mxu0
  %v863 = vadd.f32 %v371, %v862
  %v864 = vpop.f32.mrb[0].mxu0
  %v865 = vadd.f32 %v375, %v864
  %v866 = vpop.f32.mrb[0].mxu0
  %v867 = vadd.f32 %v371, %v866
  %v868 = vpop.f32.mrb[0].mxu0
  %v869 = vadd.f32 %v375, %v868
  %870 = vmatprep.mubr.bf16.mxu0 0
  %871 = vmatmul.mubr.bf16.gmra.mrb[0].mxu0 %v441
  %v872 = vpop.f32.mrb[0].mxu0
  %v873 = vadd.f32 %v371, %v872
  %v874 = vpop.f32.mrb[0].mxu0
  %v875 = vadd.f32 %v375, %v874
  %v876 = vpop.f32.mrb[0].mxu0
  %v877 = vadd.f32 %v371, %v876
  %v878 = vpop.f32.mrb[0].mxu0
  %v879 = vadd.f32 %v375, %v878
  %880 = vmatprep.mubr.bf16.mxu0 0
  %881 = vmatmul.mubr.bf16.gmra.mrb[0].mxu0 %v444
  %v882 = vpop.f32.mrb[0].mxu0
  %v883 = vadd.f32 %v371, %v882
  %v884 = vpop.f32.mrb[0].mxu0
  %v885 = vadd.f32 %v375, %v884
  %v886 = vpop.f32.mrb[0].mxu0
  %v887 = vadd.f32 %v371, %v886
  %v888 = vpop.f32.mrb[0].mxu0
  %v889 = vadd.f32 %v375, %v888
  %890 = vmatprep.mubr.bf16.mxu0 0
  %891 = vmatmul.mubr.bf16.gmra.mrb[0].mxu0 %v447
  %v892 = vpop.f32.mrb[0].mxu0
  %v893 = vadd.f32 %v371, %v892
  %v894 = vpop.f32.mrb[0].mxu0
  %v895 = vadd.f32 %v375, %v894
  %v896 = vpop.f32.mrb[0].mxu0
  %v897 = vadd.f32 %v371, %v896
  %v898 = vpop.f32.mrb[0].mxu0
  %v899 = vadd.f32 %v375, %v898
  %900 = vdwg.mxu0
  %v901 = vmax.f32 %v484, 0.0
  %v902 = vmax.f32 %v486, 0.0
  %v903 = vmax.f32 %v597, 0.0
  %v904 = vmax.f32 %v599, 0.0
  %v905 = vmax.f32 %v710, 0.0
  %v906 = vmax.f32 %v712, 0.0
  %v907 = vmax.f32 %v823, 0.0
  %v908 = vmax.f32 %v825, 0.0
  %v909 = vmax.f32 %v488, 0.0
  %v910 = vmax.f32 %v490, 0.0
  %v911 = vmax.f32 %v601, 0.0
  %v912 = vmax.f32 %v603, 0.0
  %v913 = vmax.f32 %v714, 0.0
  %v914 = vmax.f32 %v716, 0.0
  %v915 = vmax.f32 %v827, 0.0
  %v916 = vmax.f32 %v829, 0.0
  %v917 = vmax.f32 %v494, 0.0
  %v918 = vmax.f32 %v496, 0.0
  %v919 = vmax.f32 %v607, 0.0
  %v920 = vmax.f32 %v609, 0.0
  %v921 = vmax.f32 %v720, 0.0
  %v922 = vmax.f32 %v722, 0.0
  %v923 = vmax.f32 %v833, 0.0
  %v924 = vmax.f32 %v835, 0.0
  %v925 = vmax.f32 %v498, 0.0
  %v926 = vmax.f32 %v500, 0.0
  %v927 = vmax.f32 %v611, 0.0
  %v928 = vmax.f32 %v613, 0.0
  %v929 = vmax.f32 %v724, 0.0
  %v930 = vmax.f32 %v726, 0.0
  %v931 = vmax.f32 %v837, 0.0
  %v932 = vmax.f32 %v839, 0.0
  %v933 = vmax.f32 %v504, 0.0
  %v934 = vmax.f32 %v506, 0.0
  %v935 = vmax.f32 %v617, 0.0
  %v936 = vmax.f32 %v619, 0.0
  %v937 = vmax.f32 %v730, 0.0
  %v938 = vmax.f32 %v732, 0.0
  %v939 = vmax.f32 %v843, 0.0
  %v940 = vmax.f32 %v845, 0.0
  %v941 = vmax.f32 %v508, 0.0
  %v942 = vmax.f32 %v510, 0.0
  %v943 = vmax.f32 %v621, 0.0
  %v944 = vmax.f32 %v623, 0.0
  %v945 = vmax.f32 %v734, 0.0
  %v946 = vmax.f32 %v736, 0.0
  %v947 = vmax.f32 %v847, 0.0
  %v948 = vmax.f32 %v849, 0.0
  %v949 = vmax.f32 %v514, 0.0
  %v950 = vmax.f32 %v516, 0.0
  %v951 = vmax.f32 %v627, 0.0
  %v952 = vmax.f32 %v629, 0.0
  %v953 = vmax.f32 %v740, 0.0
  %v954 = vmax.f32 %v742, 0.0
  %v955 = vmax.f32 %v853, 0.0
  %v956 = vmax.f32 %v855, 0.0
  %v957 = vmax.f32 %v518, 0.0
  %v958 = vmax.f32 %v520, 0.0
  %v959 = vmax.f32 %v631, 0.0
  %v960 = vmax.f32 %v633, 0.0
  %v961 = vmax.f32 %v744, 0.0
  %v962 = vmax.f32 %v746, 0.0
  %v963 = vmax.f32 %v857, 0.0
  %v964 = vmax.f32 %v859, 0.0
  %v965 = vmax.f32 %v524, 0.0
  %v966 = vmax.f32 %v526, 0.0
  %v967 = vmax.f32 %v637, 0.0
  %v968 = vmax.f32 %v639, 0.0
  %v969 = vmax.f32 %v750, 0.0
  %v970 = vmax.f32 %v752, 0.0
  %v971 = vmax.f32 %v863, 0.0
  %v972 = vmax.f32 %v865, 0.0
  %v973 = vmax.f32 %v528, 0.0
  %v974 = vmax.f32 %v530, 0.0
  %v975 = vmax.f32 %v641, 0.0
  %v976 = vmax.f32 %v643, 0.0
  %v977 = vmax.f32 %v754, 0.0
  %v978 = vmax.f32 %v756, 0.0
  %v979 = vmax.f32 %v867, 0.0
  %v980 = vmax.f32 %v869, 0.0
  %v981 = vmax.f32 %v534, 0.0
  %v982 = vmax.f32 %v536, 0.0
  %v983 = vmax.f32 %v647, 0.0
  %v984 = vmax.f32 %v649, 0.0
  %v985 = vmax.f32 %v760, 0.0
  %v986 = vmax.f32 %v762, 0.0
  %v987 = vmax.f32 %v873, 0.0
  %v988 = vmax.f32 %v875, 0.0
  %v989 = vmax.f32 %v538, 0.0
  %v990 = vmax.f32 %v540, 0.0
  %v991 = vmax.f32 %v651, 0.0
  %v992 = vmax.f32 %v653, 0.0
  %v993 = vmax.f32 %v764, 0.0
  %v994 = vmax.f32 %v766, 0.0
  %v995 = vmax.f32 %v877, 0.0
  %v996 = vmax.f32 %v879, 0.0
  %v997 = vmax.f32 %v544, 0.0
  %v998 = vmax.f32 %v546, 0.0
  %v999 = vmax.f32 %v657, 0.0
  %v1000 = vmax.f32 %v659, 0.0
  %v1001 = vmax.f32 %v770, 0.0
  %v1002 = vmax.f32 %v772, 0.0
  %v1003 = vmax.f32 %v883, 0.0
  %v1004 = vmax.f32 %v885, 0.0
  %v1005 = vmax.f32 %v548, 0.0
  %v1006 = vmax.f32 %v550, 0.0
  %v1007 = vmax.f32 %v661, 0.0
  %v1008 = vmax.f32 %v663, 0.0
  %v1009 = vmax.f32 %v774, 0.0
  %v1010 = vmax.f32 %v776, 0.0
  %v1011 = vmax.f32 %v887, 0.0
  %v1012 = vmax.f32 %v889, 0.0
  %v1013 = vmax.f32 %v554, 0.0
  %v1014 = vmax.f32 %v556, 0.0
  %v1015 = vmax.f32 %v667, 0.0
  %v1016 = vmax.f32 %v669, 0.0
  %v1017 = vmax.f32 %v780, 0.0
  %v1018 = vmax.f32 %v782, 0.0
  %v1019 = vmax.f32 %v893, 0.0
  %v1020 = vmax.f32 %v895, 0.0
  %v1021 = vmax.f32 %v558, 0.0
  %v1022 = vmax.f32 %v560, 0.0
  %v1023 = vmax.f32 %v671, 0.0
  %v1024 = vmax.f32 %v673, 0.0
  %v1025 = vmax.f32 %v784, 0.0
  %v1026 = vmax.f32 %v786, 0.0
  %v1027 = vmax.f32 %v897, 0.0
  %v1028 = vmax.f32 %v899, 0.0
  %v1029 = vld [vmem:[%s1] sm:$0xf]
  %v1030 = vld [vmem:[%s1 + $0x4] sm:$0xf]
  %v1031 = vld [vmem:[%s1 + $0x8] sm:$0xf]
  %v1032 = vld [vmem:[%s1 + $0xc] sm:$0xf]
  %v1033 = vld [vmem:[%s1 + $0x10] sm:$0xf]
  %v1034 = vld [vmem:[%s1 + $0x14] sm:$0xf]
  %v1035 = vld [vmem:[%s1 + $0x18] sm:$0xf]
  %v1036 = vld [vmem:[%s1 + $0x1c] sm:$0xf]
  %v1037 = vld [vmem:[%s1 + $0x20] sm:$0xf]
  %v1038 = vld [vmem:[%s1 + $0x24] sm:$0xf]
  %v1039 = vld [vmem:[%s1 + $0x28] sm:$0xf]
  %v1040 = vld [vmem:[%s1 + $0x2c] sm:$0xf]
  %v1041 = vld [vmem:[%s1 + $0x30] sm:$0xf]
  %v1042 = vld [vmem:[%s1 + $0x34] sm:$0xf]
  %v1043 = vld [vmem:[%s1 + $0x38] sm:$0xf]
  %v1044 = vld [vmem:[%s1 + $0x3c] sm:$0xf]
  %v1045 = vld [vmem:[%s8] sm:$0xff]
  %v1046 = vld [vmem:[%s8 + $0x8] sm:$0xff]
  %v1047 = vld [vmem:[%s8 + $0x10] sm:$0xff]
  %v1048 = vld [vmem:[%s8 + $0x18] sm:$0xff]
  %v1049 = vld [vmem:[%s8 + $0x20] sm:$0xff]
  %v1050 = vld [vmem:[%s8 + $0x28] sm:$0xff]
  %v1051 = vld [vmem:[%s8 + $0x30] sm:$0xff]
  %v1052 = vld [vmem:[%s8 + $0x38] sm:$0xff]
  %v1053 = vld [vmem:[%s8 + $0x40] sm:$0xff]
  %v1054 = vld [vmem:[%s8 + $0x48] sm:$0xff]
  %v1055 = vld [vmem:[%s8 + $0x50] sm:$0xff]
  %v1056 = vld [vmem:[%s8 + $0x58] sm:$0xff]
  %v1057 = vld [vmem:[%s8 + $0x60] sm:$0xff]
  %v1058 = vld [vmem:[%s8 + $0x68] sm:$0xff]
  %v1059 = vld [vmem:[%s8 + $0x70] sm:$0xff]
  %v1060 = vld [vmem:[%s8 + $0x78] sm:$0xff]
  %v1077 = vunpack.c.l.b16 %v1029
  %v1078 = vunpack.c.l.b16 %v1030
  %v1079 = vunpack.c.l.b16 %v1031
  %v1080 = vunpack.c.l.b16 %v1032
  %v1081 = vunpack.c.l.b16 %v1033
  %v1082 = vunpack.c.l.b16 %v1034
  %v1083 = vunpack.c.l.b16 %v1035
  %v1084 = vunpack.c.l.b16 %v1036
  %v1085 = vunpack.c.l.b16 %v1037
  %v1086 = vunpack.c.l.b16 %v1038
  %v1087 = vunpack.c.l.b16 %v1039
  %v1088 = vunpack.c.l.b16 %v1040
  %v1089 = vunpack.c.l.b16 %v1041
  %v1090 = vunpack.c.l.b16 %v1042
  %v1091 = vunpack.c.l.b16 %v1043
  %v1092 = vunpack.c.l.b16 %v1044
  %v1093 = vpack.c.b16 %v1078, %v1077
  %v1094 = vpack.c.b16 %v1080, %v1079
  %v1095 = vpack.c.b16 %v1082, %v1081
  %v1096 = vpack.c.b16 %v1084, %v1083
  %v1097 = vpack.c.b16 %v1086, %v1085
  %v1098 = vpack.c.b16 %v1088, %v1087
  %v1099 = vpack.c.b16 %v1090, %v1089
  %v1100 = vpack.c.b16 %v1092, %v1091
  %v1117 = vunpack.c.l.b16 %v1045
  %v1118 = vunpack.c.h.b16 %v1045
  %v1119 = vunpack.c.l.b16 %v1046
  %v1120 = vunpack.c.h.b16 %v1046
  %v1121 = vunpack.c.l.b16 %v1047
  %v1122 = vunpack.c.h.b16 %v1047
  %v1123 = vunpack.c.l.b16 %v1048
  %v1124 = vunpack.c.h.b16 %v1048
  %v1125 = vunpack.c.l.b16 %v1049
  %v1126 = vunpack.c.h.b16 %v1049
  %v1127 = vunpack.c.l.b16 %v1050
  %v1128 = vunpack.c.h.b16 %v1050
  %v1129 = vunpack.c.l.b16 %v1051
  %v1130 = vunpack.c.h.b16 %v1051
  %v1131 = vunpack.c.l.b16 %v1052
  %v1132 = vunpack.c.h.b16 %v1052
  %v1133 = vunpack.c.l.b16 %v1053
  %v1134 = vunpack.c.h.b16 %v1053
  %v1135 = vunpack.c.l.b16 %v1054
  %v1136 = vunpack.c.h.b16 %v1054
  %v1137 = vunpack.c.l.b16 %v1055
  %v1138 = vunpack.c.h.b16 %v1055
  %v1139 = vunpack.c.l.b16 %v1056
  %v1140 = vunpack.c.h.b16 %v1056
  %v1141 = vunpack.c.l.b16 %v1057
  %v1142 = vunpack.c.h.b16 %v1057
  %v1143 = vunpack.c.l.b16 %v1058
  %v1144 = vunpack.c.h.b16 %v1058
  %v1145 = vunpack.c.l.b16 %v1059
  %v1146 = vunpack.c.h.b16 %v1059
  %v1147 = vunpack.c.l.b16 %v1060
  %v1148 = vunpack.c.h.b16 %v1060
  %v1149 = vpack.c.b16 %v1125, %v1117
  %v1150 = vpack.c.b16 %v1126, %v1118
  %v1151 = vpack.c.b16 %v1127, %v1119
  %v1152 = vpack.c.b16 %v1128, %v1120
  %v1153 = vpack.c.b16 %v1129, %v1121
  %v1154 = vpack.c.b16 %v1130, %v1122
  %v1155 = vpack.c.b16 %v1131, %v1123
  %v1156 = vpack.c.b16 %v1132, %v1124
  %v1157 = vpack.c.b16 %v1141, %v1133
  %v1158 = vpack.c.b16 %v1142, %v1134
  %v1159 = vpack.c.b16 %v1143, %v1135
  %v1160 = vpack.c.b16 %v1144, %v1136
  %v1161 = vpack.c.b16 %v1145, %v1137
  %v1162 = vpack.c.b16 %v1146, %v1138
  %v1163 = vpack.c.b16 %v1147, %v1139
  %v1164 = vpack.c.b16 %v1148, %v1140
  %vm1181 = vcmask 261120
  %v1183 = vsel %vm1181, %v1093, 0
  %v1186 = vsel %vm1181, %v1094, 0
  %v1189 = vsel %vm1181, %v1095, 0
  %v1192 = vsel %vm1181, %v1096, 0
  %v1195 = vsel %vm1181, %v1097, 0
  %v1198 = vsel %vm1181, %v1098, 0
  %v1201 = vsel %vm1181, %v1099, 0
  %v1204 = vsel %vm1181, %v1100, 0
  %1206 = vmatprep.subr.bf16.mxu0 %v1150
  %1207 = vmatpush1.bf16.msra.mxu0 %v1149
  %1208 = vmatprep.subr.bf16.mxu0 %v1158
  %1209 = vmatpush1.bf16.msra.mxu0 %v1157
  %1210 = vmatprep.subr.bf16.mxu0 0
  %1211 = vmatpush1.bf16.msra.mxu0 0
  %1212 = vmatprep.subr.bf16.mxu0 0
  %1213 = vmatpush1.bf16.msra.mxu0 0
  %1214 = vmatprep.subr.bf16.mxu0 0
  %1215 = vmatpush1.bf16.msra.mxu0 0
  %1216 = vmatprep.subr.bf16.mxu0 0
  %1217 = vmatpush1.bf16.msra.mxu0 0
  %1218 = vmatprep.subr.bf16.mxu0 0
  %1219 = vmatpush1.bf16.msra.mxu0 0
  %1220 = vmatprep.subr.bf16.mxu0 0
  %1221 = vmatpush1.bf16.msra.mxu0 0
  %1222 = vmatprep.subr.bf16.mxu0 0
  %1223 = vmatpush1.bf16.msra.mxu0 0
  %1224 = vmatprep.subr.bf16.mxu0 0
  %1225 = vmatpush1.bf16.msra.mxu0 0
  %1226 = vmatprep.subr.bf16.mxu0 0
  %1227 = vmatpush1.bf16.msra.mxu0 0
  %1228 = vmatprep.subr.bf16.mxu0 0
  %1229 = vmatpush1.bf16.msra.mxu0 0
  %1230 = vmatprep.subr.bf16.mxu0 0
  %1231 = vmatpush1.bf16.msra.mxu0 0
  %1232 = vmatprep.subr.bf16.mxu0 0
  %1233 = vmatpush1.bf16.msra.mxu0 0
  %1234 = vmatprep.subr.bf16.mxu0 0
  %1235 = vmatpush1.bf16.msra.mxu0 0
  %1236 = vmatprep.subr.bf16.mxu0 0
  %1237 = vmatpush1.bf16.msra.mxu0 0
  %1238 = vmatprep.mubr.bf16.mxu0 0
  %1239 = vmatmul.mubr.bf16.gmra.mrb[0].mxu0 %v1183
  %v1240 = vpop.f32.mrb[0].mxu0
  %v1241 = vadd.f32 0.0, %v1240
  %v1242 = vpop.f32.mrb[0].mxu0
  %v1243 = vadd.f32 0.0, %v1242
  %v1244 = vpop.f32.mrb[0].mxu0
  %v1245 = vadd.f32 0.0, %v1244
  %v1246 = vpop.f32.mrb[0].mxu0
  %v1247 = vadd.f32 0.0, %v1246
  %1248 = vmatprep.mubr.bf16.mxu0 0
  %1249 = vmatmul.mubr.bf16.gmra.mrb[0].mxu0 %v1186
  %v1250 = vpop.f32.mrb[0].mxu0
  %v1251 = vadd.f32 0.0, %v1250
  %v1252 = vpop.f32.mrb[0].mxu0
  %v1253 = vadd.f32 0.0, %v1252
  %v1254 = vpop.f32.mrb[0].mxu0
  %v1255 = vadd.f32 0.0, %v1254
  %v1256 = vpop.f32.mrb[0].mxu0
  %v1257 = vadd.f32 0.0, %v1256
  %1258 = vmatprep.mubr.bf16.mxu0 0
  %1259 = vmatmul.mubr.bf16.gmra.mrb[0].mxu0 %v1189
  %v1260 = vpop.f32.mrb[0].mxu0
  %v1261 = vadd.f32 0.0, %v1260
  %v1262 = vpop.f32.mrb[0].mxu0
  %v1263 = vadd.f32 0.0, %v1262
  %v1264 = vpop.f32.mrb[0].mxu0
  %v1265 = vadd.f32 0.0, %v1264
  %v1266 = vpop.f32.mrb[0].mxu0
  %v1267 = vadd.f32 0.0, %v1266
  %1268 = vmatprep.mubr.bf16.mxu0 0
  %1269 = vmatmul.mubr.bf16.gmra.mrb[0].mxu0 %v1192
  %v1270 = vpop.f32.mrb[0].mxu0
  %v1271 = vadd.f32 0.0, %v1270
  %v1272 = vpop.f32.mrb[0].mxu0
  %v1273 = vadd.f32 0.0, %v1272
  %v1274 = vpop.f32.mrb[0].mxu0
  %v1275 = vadd.f32 0.0, %v1274
  %v1276 = vpop.f32.mrb[0].mxu0
  %v1277 = vadd.f32 0.0, %v1276
  %1278 = vmatprep.mubr.bf16.mxu0 0
  %1279 = vmatmul.mubr.bf16.gmra.mrb[0].mxu0 %v1195
  %v1280 = vpop.f32.mrb[0].mxu0
  %v1281 = vadd.f32 0.0, %v1280
  %v1282 = vpop.f32.mrb[0].mxu0
  %v1283 = vadd.f32 0.0, %v1282
  %v1284 = vpop.f32.mrb[0].mxu0
  %v1285 = vadd.f32 0.0, %v1284
  %v1286 = vpop.f32.mrb[0].mxu0
  %v1287 = vadd.f32 0.0, %v1286
  %1288 = vmatprep.mubr.bf16.mxu0 0
  %1289 = vmatmul.mubr.bf16.gmra.mrb[0].mxu0 %v1198
  %v1290 = vpop.f32.mrb[0].mxu0
  %v1291 = vadd.f32 0.0, %v1290
  %v1292 = vpop.f32.mrb[0].mxu0
  %v1293 = vadd.f32 0.0, %v1292
  %v1294 = vpop.f32.mrb[0].mxu0
  %v1295 = vadd.f32 0.0, %v1294
  %v1296 = vpop.f32.mrb[0].mxu0
  %v1297 = vadd.f32 0.0, %v1296
  %1298 = vmatprep.mubr.bf16.mxu0 0
  %1299 = vmatmul.mubr.bf16.gmra.mrb[0].mxu0 %v1201
  %v1300 = vpop.f32.mrb[0].mxu0
  %v1301 = vadd.f32 0.0, %v1300
  %v1302 = vpop.f32.mrb[0].mxu0
  %v1303 = vadd.f32 0.0, %v1302
  %v1304 = vpop.f32.mrb[0].mxu0
  %v1305 = vadd.f32 0.0, %v1304
  %v1306 = vpop.f32.mrb[0].mxu0
  %v1307 = vadd.f32 0.0, %v1306
  %1308 = vmatprep.mubr.bf16.mxu0 0
  %1309 = vmatmul.mubr.bf16.gmra.mrb[0].mxu0 %v1204
  %v1310 = vpop.f32.mrb[0].mxu0
  %v1311 = vadd.f32 0.0, %v1310
  %v1312 = vpop.f32.mrb[0].mxu0
  %v1313 = vadd.f32 0.0, %v1312
  %v1314 = vpop.f32.mrb[0].mxu0
  %v1315 = vadd.f32 0.0, %v1314
  %v1316 = vpop.f32.mrb[0].mxu0
  %v1317 = vadd.f32 0.0, %v1316
  %1318 = vdwg.mxu0
  %1319 = vmatprep.subr.bf16.mxu0 %v1152
  %1320 = vmatpush1.bf16.msra.mxu0 %v1151
  %1321 = vmatprep.subr.bf16.mxu0 %v1160
  %1322 = vmatpush1.bf16.msra.mxu0 %v1159
  %1323 = vmatprep.subr.bf16.mxu0 0
  %1324 = vmatpush1.bf16.msra.mxu0 0
  %1325 = vmatprep.subr.bf16.mxu0 0
  %1326 = vmatpush1.bf16.msra.mxu0 0
  %1327 = vmatprep.subr.bf16.mxu0 0
  %1328 = vmatpush1.bf16.msra.mxu0 0
  %1329 = vmatprep.subr.bf16.mxu0 0
  %1330 = vmatpush1.bf16.msra.mxu0 0
  %1331 = vmatprep.subr.bf16.mxu0 0
  %1332 = vmatpush1.bf16.msra.mxu0 0
  %1333 = vmatprep.subr.bf16.mxu0 0
  %1334 = vmatpush1.bf16.msra.mxu0 0
  %1335 = vmatprep.subr.bf16.mxu0 0
  %1336 = vmatpush1.bf16.msra.mxu0 0
  %1337 = vmatprep.subr.bf16.mxu0 0
  %1338 = vmatpush1.bf16.msra.mxu0 0
  %1339 = vmatprep.subr.bf16.mxu0 0
  %1340 = vmatpush1.bf16.msra.mxu0 0
  %1341 = vmatprep.subr.bf16.mxu0 0
  %1342 = vmatpush1.bf16.msra.mxu0 0
  %1343 = vmatprep.subr.bf16.mxu0 0
  %1344 = vmatpush1.bf16.msra.mxu0 0
  %1345 = vmatprep.subr.bf16.mxu0 0
  %1346 = vmatpush1.bf16.msra.mxu0 0
  %1347 = vmatprep.subr.bf16.mxu0 0
  %1348 = vmatpush1.bf16.msra.mxu0 0
  %1349 = vmatprep.subr.bf16.mxu0 0
  %1350 = vmatpush1.bf16.msra.mxu0 0
  %1351 = vmatprep.mubr.bf16.mxu0 0
  %1352 = vmatmul.mubr.bf16.gmra.mrb[0].mxu0 %v1183
  %v1353 = vpop.f32.mrb[0].mxu0
  %v1354 = vadd.f32 0.0, %v1353
  %v1355 = vpop.f32.mrb[0].mxu0
  %v1356 = vadd.f32 0.0, %v1355
  %v1357 = vpop.f32.mrb[0].mxu0
  %v1358 = vadd.f32 0.0, %v1357
  %v1359 = vpop.f32.mrb[0].mxu0
  %v1360 = vadd.f32 0.0, %v1359
  %1361 = vmatprep.mubr.bf16.mxu0 0
  %1362 = vmatmul.mubr.bf16.gmra.mrb[0].mxu0 %v1186
  %v1363 = vpop.f32.mrb[0].mxu0
  %v1364 = vadd.f32 0.0, %v1363
  %v1365 = vpop.f32.mrb[0].mxu0
  %v1366 = vadd.f32 0.0, %v1365
  %v1367 = vpop.f32.mrb[0].mxu0
  %v1368 = vadd.f32 0.0, %v1367
  %v1369 = vpop.f32.mrb[0].mxu0
  %v1370 = vadd.f32 0.0, %v1369
  %1371 = vmatprep.mubr.bf16.mxu0 0
  %1372 = vmatmul.mubr.bf16.gmra.mrb[0].mxu0 %v1189
  %v1373 = vpop.f32.mrb[0].mxu0
  %v1374 = vadd.f32 0.0, %v1373
  %v1375 = vpop.f32.mrb[0].mxu0
  %v1376 = vadd.f32 0.0, %v1375
  %v1377 = vpop.f32.mrb[0].mxu0
  %v1378 = vadd.f32 0.0, %v1377
  %v1379 = vpop.f32.mrb[0].mxu0
  %v1380 = vadd.f32 0.0, %v1379
  %1381 = vmatprep.mubr.bf16.mxu0 0
  %1382 = vmatmul.mubr.bf16.gmra.mrb[0].mxu0 %v1192
  %v1383 = vpop.f32.mrb[0].mxu0
  %v1384 = vadd.f32 0.0, %v1383
  %v1385 = vpop.f32.mrb[0].mxu0
  %v1386 = vadd.f32 0.0, %v1385
  %v1387 = vpop.f32.mrb[0].mxu0
  %v1388 = vadd.f32 0.0, %v1387
  %v1389 = vpop.f32.mrb[0].mxu0
  %v1390 = vadd.f32 0.0, %v1389
  %1391 = vmatprep.mubr.bf16.mxu0 0
  %1392 = vmatmul.mubr.bf16.gmra.mrb[0].mxu0 %v1195
  %v1393 = vpop.f32.mrb[0].mxu0
  %v1394 = vadd.f32 0.0, %v1393
  %v1395 = vpop.f32.mrb[0].mxu0
  %v1396 = vadd.f32 0.0, %v1395
  %v1397 = vpop.f32.mrb[0].mxu0
  %v1398 = vadd.f32 0.0, %v1397
  %v1399 = vpop.f32.mrb[0].mxu0
  %v1400 = vadd.f32 0.0, %v1399
  %1401 = vmatprep.mubr.bf16.mxu0 0
  %1402 = vmatmul.mubr.bf16.gmra.mrb[0].mxu0 %v1198
  %v1403 = vpop.f32.mrb[0].mxu0
  %v1404 = vadd.f32 0.0, %v1403
  %v1405 = vpop.f32.mrb[0].mxu0
  %v1406 = vadd.f32 0.0, %v1405
  %v1407 = vpop.f32.mrb[0].mxu0
  %v1408 = vadd.f32 0.0, %v1407
  %v1409 = vpop.f32.mrb[0].mxu0
  %v1410 = vadd.f32 0.0, %v1409
  %1411 = vmatprep.mubr.bf16.mxu0 0
  %1412 = vmatmul.mubr.bf16.gmra.mrb[0].mxu0 %v1201
  %v1413 = vpop.f32.mrb[0].mxu0
  %v1414 = vadd.f32 0.0, %v1413
  %v1415 = vpop.f32.mrb[0].mxu0
  %v1416 = vadd.f32 0.0, %v1415
  %v1417 = vpop.f32.mrb[0].mxu0
  %v1418 = vadd.f32 0.0, %v1417
  %v1419 = vpop.f32.mrb[0].mxu0
  %v1420 = vadd.f32 0.0, %v1419
  %1421 = vmatprep.mubr.bf16.mxu0 0
  %1422 = vmatmul.mubr.bf16.gmra.mrb[0].mxu0 %v1204
  %v1423 = vpop.f32.mrb[0].mxu0
  %v1424 = vadd.f32 0.0, %v1423
  %v1425 = vpop.f32.mrb[0].mxu0
  %v1426 = vadd.f32 0.0, %v1425
  %v1427 = vpop.f32.mrb[0].mxu0
  %v1428 = vadd.f32 0.0, %v1427
  %v1429 = vpop.f32.mrb[0].mxu0
  %v1430 = vadd.f32 0.0, %v1429
  %1431 = vdwg.mxu0
  %1432 = vmatprep.subr.bf16.mxu0 %v1154
  %1433 = vmatpush1.bf16.msra.mxu0 %v1153
  %1434 = vmatprep.subr.bf16.mxu0 %v1162
  %1435 = vmatpush1.bf16.msra.mxu0 %v1161
  %1436 = vmatprep.subr.bf16.mxu0 0
  %1437 = vmatpush1.bf16.msra.mxu0 0
  %1438 = vmatprep.subr.bf16.mxu0 0
  %1439 = vmatpush1.bf16.msra.mxu0 0
  %1440 = vmatprep.subr.bf16.mxu0 0
  %1441 = vmatpush1.bf16.msra.mxu0 0
  %1442 = vmatprep.subr.bf16.mxu0 0
  %1443 = vmatpush1.bf16.msra.mxu0 0
  %1444 = vmatprep.subr.bf16.mxu0 0
  %1445 = vmatpush1.bf16.msra.mxu0 0
  %1446 = vmatprep.subr.bf16.mxu0 0
  %1447 = vmatpush1.bf16.msra.mxu0 0
  %1448 = vmatprep.subr.bf16.mxu0 0
  %1449 = vmatpush1.bf16.msra.mxu0 0
  %1450 = vmatprep.subr.bf16.mxu0 0
  %1451 = vmatpush1.bf16.msra.mxu0 0
  %1452 = vmatprep.subr.bf16.mxu0 0
  %1453 = vmatpush1.bf16.msra.mxu0 0
  %1454 = vmatprep.subr.bf16.mxu0 0
  %1455 = vmatpush1.bf16.msra.mxu0 0
  %1456 = vmatprep.subr.bf16.mxu0 0
  %1457 = vmatpush1.bf16.msra.mxu0 0
  %1458 = vmatprep.subr.bf16.mxu0 0
  %1459 = vmatpush1.bf16.msra.mxu0 0
  %1460 = vmatprep.subr.bf16.mxu0 0
  %1461 = vmatpush1.bf16.msra.mxu0 0
  %1462 = vmatprep.subr.bf16.mxu0 0
  %1463 = vmatpush1.bf16.msra.mxu0 0
  %1464 = vmatprep.mubr.bf16.mxu0 0
  %1465 = vmatmul.mubr.bf16.gmra.mrb[0].mxu0 %v1183
  %v1466 = vpop.f32.mrb[0].mxu0
  %v1467 = vadd.f32 0.0, %v1466
  %v1468 = vpop.f32.mrb[0].mxu0
  %v1469 = vadd.f32 0.0, %v1468
  %v1470 = vpop.f32.mrb[0].mxu0
  %v1471 = vadd.f32 0.0, %v1470
  %v1472 = vpop.f32.mrb[0].mxu0
  %v1473 = vadd.f32 0.0, %v1472
  %1474 = vmatprep.mubr.bf16.mxu0 0
  %1475 = vmatmul.mubr.bf16.gmra.mrb[0].mxu0 %v1186
  %v1476 = vpop.f32.mrb[0].mxu0
  %v1477 = vadd.f32 0.0, %v1476
  %v1478 = vpop.f32.mrb[0].mxu0
  %v1479 = vadd.f32 0.0, %v1478
  %v1480 = vpop.f32.mrb[0].mxu0
  %v1481 = vadd.f32 0.0, %v1480
  %v1482 = vpop.f32.mrb[0].mxu0
  %v1483 = vadd.f32 0.0, %v1482
  %1484 = vmatprep.mubr.bf16.mxu0 0
  %1485 = vmatmul.mubr.bf16.gmra.mrb[0].mxu0 %v1189
  %v1486 = vpop.f32.mrb[0].mxu0
  %v1487 = vadd.f32 0.0, %v1486
  %v1488 = vpop.f32.mrb[0].mxu0
  %v1489 = vadd.f32 0.0, %v1488
  %v1490 = vpop.f32.mrb[0].mxu0
  %v1491 = vadd.f32 0.0, %v1490
  %v1492 = vpop.f32.mrb[0].mxu0
  %v1493 = vadd.f32 0.0, %v1492
  %1494 = vmatprep.mubr.bf16.mxu0 0
  %1495 = vmatmul.mubr.bf16.gmra.mrb[0].mxu0 %v1192
  %v1496 = vpop.f32.mrb[0].mxu0
  %v1497 = vadd.f32 0.0, %v1496
  %v1498 = vpop.f32.mrb[0].mxu0
  %v1499 = vadd.f32 0.0, %v1498
  %v1500 = vpop.f32.mrb[0].mxu0
  %v1501 = vadd.f32 0.0, %v1500
  %v1502 = vpop.f32.mrb[0].mxu0
  %v1503 = vadd.f32 0.0, %v1502
  %1504 = vmatprep.mubr.bf16.mxu0 0
  %1505 = vmatmul.mubr.bf16.gmra.mrb[0].mxu0 %v1195
  %v1506 = vpop.f32.mrb[0].mxu0
  %v1507 = vadd.f32 0.0, %v1506
  %v1508 = vpop.f32.mrb[0].mxu0
  %v1509 = vadd.f32 0.0, %v1508
  %v1510 = vpop.f32.mrb[0].mxu0
  %v1511 = vadd.f32 0.0, %v1510
  %v1512 = vpop.f32.mrb[0].mxu0
  %v1513 = vadd.f32 0.0, %v1512
  %1514 = vmatprep.mubr.bf16.mxu0 0
  %1515 = vmatmul.mubr.bf16.gmra.mrb[0].mxu0 %v1198
  %v1516 = vpop.f32.mrb[0].mxu0
  %v1517 = vadd.f32 0.0, %v1516
  %v1518 = vpop.f32.mrb[0].mxu0
  %v1519 = vadd.f32 0.0, %v1518
  %v1520 = vpop.f32.mrb[0].mxu0
  %v1521 = vadd.f32 0.0, %v1520
  %v1522 = vpop.f32.mrb[0].mxu0
  %v1523 = vadd.f32 0.0, %v1522
  %1524 = vmatprep.mubr.bf16.mxu0 0
  %1525 = vmatmul.mubr.bf16.gmra.mrb[0].mxu0 %v1201
  %v1526 = vpop.f32.mrb[0].mxu0
  %v1527 = vadd.f32 0.0, %v1526
  %v1528 = vpop.f32.mrb[0].mxu0
  %v1529 = vadd.f32 0.0, %v1528
  %v1530 = vpop.f32.mrb[0].mxu0
  %v1531 = vadd.f32 0.0, %v1530
  %v1532 = vpop.f32.mrb[0].mxu0
  %v1533 = vadd.f32 0.0, %v1532
  %1534 = vmatprep.mubr.bf16.mxu0 0
  %1535 = vmatmul.mubr.bf16.gmra.mrb[0].mxu0 %v1204
  %v1536 = vpop.f32.mrb[0].mxu0
  %v1537 = vadd.f32 0.0, %v1536
  %v1538 = vpop.f32.mrb[0].mxu0
  %v1539 = vadd.f32 0.0, %v1538
  %v1540 = vpop.f32.mrb[0].mxu0
  %v1541 = vadd.f32 0.0, %v1540
  %v1542 = vpop.f32.mrb[0].mxu0
  %v1543 = vadd.f32 0.0, %v1542
  %1544 = vdwg.mxu0
  %1545 = vmatprep.subr.bf16.mxu0 %v1156
  %1546 = vmatpush1.bf16.msra.mxu0 %v1155
  %1547 = vmatprep.subr.bf16.mxu0 %v1164
  %1548 = vmatpush1.bf16.msra.mxu0 %v1163
  %1549 = vmatprep.subr.bf16.mxu0 0
  %1550 = vmatpush1.bf16.msra.mxu0 0
  %1551 = vmatprep.subr.bf16.mxu0 0
  %1552 = vmatpush1.bf16.msra.mxu0 0
  %1553 = vmatprep.subr.bf16.mxu0 0
  %1554 = vmatpush1.bf16.msra.mxu0 0
  %1555 = vmatprep.subr.bf16.mxu0 0
  %1556 = vmatpush1.bf16.msra.mxu0 0
  %1557 = vmatprep.subr.bf16.mxu0 0
  %1558 = vmatpush1.bf16.msra.mxu0 0
  %1559 = vmatprep.subr.bf16.mxu0 0
  %1560 = vmatpush1.bf16.msra.mxu0 0
  %1561 = vmatprep.subr.bf16.mxu0 0
  %1562 = vmatpush1.bf16.msra.mxu0 0
  %1563 = vmatprep.subr.bf16.mxu0 0
  %1564 = vmatpush1.bf16.msra.mxu0 0
  %1565 = vmatprep.subr.bf16.mxu0 0
  %1566 = vmatpush1.bf16.msra.mxu0 0
  %1567 = vmatprep.subr.bf16.mxu0 0
  %1568 = vmatpush1.bf16.msra.mxu0 0
  %1569 = vmatprep.subr.bf16.mxu0 0
  %1570 = vmatpush1.bf16.msra.mxu0 0
  %1571 = vmatprep.subr.bf16.mxu0 0
  %1572 = vmatpush1.bf16.msra.mxu0 0
  %1573 = vmatprep.subr.bf16.mxu0 0
  %1574 = vmatpush1.bf16.msra.mxu0 0
  %1575 = vmatprep.subr.bf16.mxu0 0
  %1576 = vmatpush1.bf16.msra.mxu0 0
  %1577 = vmatprep.mubr.bf16.mxu0 0
  %1578 = vmatmul.mubr.bf16.gmra.mrb[0].mxu0 %v1183
  %v1579 = vpop.f32.mrb[0].mxu0
  %v1580 = vadd.f32 0.0, %v1579
  %v1581 = vpop.f32.mrb[0].mxu0
  %v1582 = vadd.f32 0.0, %v1581
  %v1583 = vpop.f32.mrb[0].mxu0
  %v1584 = vadd.f32 0.0, %v1583
  %v1585 = vpop.f32.mrb[0].mxu0
  %v1586 = vadd.f32 0.0, %v1585
  %1587 = vmatprep.mubr.bf16.mxu0 0
  %1588 = vmatmul.mubr.bf16.gmra.mrb[0].mxu0 %v1186
  %v1589 = vpop.f32.mrb[0].mxu0
  %v1590 = vadd.f32 0.0, %v1589
  %v1591 = vpop.f32.mrb[0].mxu0
  %v1592 = vadd.f32 0.0, %v1591
  %v1593 = vpop.f32.mrb[0].mxu0
  %v1594 = vadd.f32 0.0, %v1593
  %v1595 = vpop.f32.mrb[0].mxu0
  %v1596 = vadd.f32 0.0, %v1595
  %1597 = vmatprep.mubr.bf16.mxu0 0
  %1598 = vmatmul.mubr.bf16.gmra.mrb[0].mxu0 %v1189
  %v1599 = vpop.f32.mrb[0].mxu0
  %v1600 = vadd.f32 0.0, %v1599
  %v1601 = vpop.f32.mrb[0].mxu0
  %v1602 = vadd.f32 0.0, %v1601
  %v1603 = vpop.f32.mrb[0].mxu0
  %v1604 = vadd.f32 0.0, %v1603
  %v1605 = vpop.f32.mrb[0].mxu0
  %v1606 = vadd.f32 0.0, %v1605
  %1607 = vmatprep.mubr.bf16.mxu0 0
  %1608 = vmatmul.mubr.bf16.gmra.mrb[0].mxu0 %v1192
  %v1609 = vpop.f32.mrb[0].mxu0
  %v1610 = vadd.f32 0.0, %v1609
  %v1611 = vpop.f32.mrb[0].mxu0
  %v1612 = vadd.f32 0.0, %v1611
  %v1613 = vpop.f32.mrb[0].mxu0
  %v1614 = vadd.f32 0.0, %v1613
  %v1615 = vpop.f32.mrb[0].mxu0
  %v1616 = vadd.f32 0.0, %v1615
  %1617 = vmatprep.mubr.bf16.mxu0 0
  %1618 = vmatmul.mubr.bf16.gmra.mrb[0].mxu0 %v1195
  %v1619 = vpop.f32.mrb[0].mxu0
  %v1620 = vadd.f32 0.0, %v1619
  %v1621 = vpop.f32.mrb[0].mxu0
  %v1622 = vadd.f32 0.0, %v1621
  %v1623 = vpop.f32.mrb[0].mxu0
  %v1624 = vadd.f32 0.0, %v1623
  %v1625 = vpop.f32.mrb[0].mxu0
  %v1626 = vadd.f32 0.0, %v1625
  %1627 = vmatprep.mubr.bf16.mxu0 0
  %1628 = vmatmul.mubr.bf16.gmra.mrb[0].mxu0 %v1198
  %v1629 = vpop.f32.mrb[0].mxu0
  %v1630 = vadd.f32 0.0, %v1629
  %v1631 = vpop.f32.mrb[0].mxu0
  %v1632 = vadd.f32 0.0, %v1631
  %v1633 = vpop.f32.mrb[0].mxu0
  %v1634 = vadd.f32 0.0, %v1633
  %v1635 = vpop.f32.mrb[0].mxu0
  %v1636 = vadd.f32 0.0, %v1635
  %1637 = vmatprep.mubr.bf16.mxu0 0
  %1638 = vmatmul.mubr.bf16.gmra.mrb[0].mxu0 %v1201
  %v1639 = vpop.f32.mrb[0].mxu0
  %v1640 = vadd.f32 0.0, %v1639
  %v1641 = vpop.f32.mrb[0].mxu0
  %v1642 = vadd.f32 0.0, %v1641
  %v1643 = vpop.f32.mrb[0].mxu0
  %v1644 = vadd.f32 0.0, %v1643
  %v1645 = vpop.f32.mrb[0].mxu0
  %v1646 = vadd.f32 0.0, %v1645
  %1647 = vmatprep.mubr.bf16.mxu0 0
  %1648 = vmatmul.mubr.bf16.gmra.mrb[0].mxu0 %v1204
  %v1649 = vpop.f32.mrb[0].mxu0
  %v1650 = vadd.f32 0.0, %v1649
  %v1651 = vpop.f32.mrb[0].mxu0
  %v1652 = vadd.f32 0.0, %v1651
  %v1653 = vpop.f32.mrb[0].mxu0
  %v1654 = vadd.f32 0.0, %v1653
  %v1655 = vpop.f32.mrb[0].mxu0
  %v1656 = vadd.f32 0.0, %v1655
  %1657 = vdwg.mxu0
  %v1658 = vmul.f32 %v1241, %v901
  %v1659 = vmul.f32 %v1243, %v902
  %v1660 = vmul.f32 %v1354, %v903
  %v1661 = vmul.f32 %v1356, %v904
  %v1662 = vmul.f32 %v1467, %v905
  %v1663 = vmul.f32 %v1469, %v906
  %v1664 = vmul.f32 %v1580, %v907
  %v1665 = vmul.f32 %v1582, %v908
  %v1666 = vmul.f32 %v1245, %v909
  %v1667 = vmul.f32 %v1247, %v910
  %v1668 = vmul.f32 %v1358, %v911
  %v1669 = vmul.f32 %v1360, %v912
  %v1670 = vmul.f32 %v1471, %v913
  %v1671 = vmul.f32 %v1473, %v914
  %v1672 = vmul.f32 %v1584, %v915
  %v1673 = vmul.f32 %v1586, %v916
  %v1674 = vmul.f32 %v1251, %v917
  %v1675 = vmul.f32 %v1253, %v918
  %v1676 = vmul.f32 %v1364, %v919
  %v1677 = vmul.f32 %v1366, %v920
  %v1678 = vmul.f32 %v1477, %v921
  %v1679 = vmul.f32 %v1479, %v922
  %v1680 = vmul.f32 %v1590, %v923
  %v1681 = vmul.f32 %v1592, %v924
  %v1682 = vmul.f32 %v1255, %v925
  %v1683 = vmul.f32 %v1257, %v926
  %v1684 = vmul.f32 %v1368, %v927
  %v1685 = vmul.f32 %v1370, %v928
  %v1686 = vmul.f32 %v1481, %v929
  %v1687 = vmul.f32 %v1483, %v930
  %v1688 = vmul.f32 %v1594, %v931
  %v1689 = vmul.f32 %v1596, %v932
  %v1690 = vmul.f32 %v1261, %v933
  %v1691 = vmul.f32 %v1263, %v934
  %v1692 = vmul.f32 %v1374, %v935
  %v1693 = vmul.f32 %v1376, %v936
  %v1694 = vmul.f32 %v1487, %v937
  %v1695 = vmul.f32 %v1489, %v938
  %v1696 = vmul.f32 %v1600, %v939
  %v1697 = vmul.f32 %v1602, %v940
  %v1698 = vmul.f32 %v1265, %v941
  %v1699 = vmul.f32 %v1267, %v942
  %v1700 = vmul.f32 %v1378, %v943
  %v1701 = vmul.f32 %v1380, %v944
  %v1702 = vmul.f32 %v1491, %v945
  %v1703 = vmul.f32 %v1493, %v946
  %v1704 = vmul.f32 %v1604, %v947
  %v1705 = vmul.f32 %v1606, %v948
  %v1706 = vmul.f32 %v1271, %v949
  %v1707 = vmul.f32 %v1273, %v950
  %v1708 = vmul.f32 %v1384, %v951
  %v1709 = vmul.f32 %v1386, %v952
  %v1710 = vmul.f32 %v1497, %v953
  %v1711 = vmul.f32 %v1499, %v954
  %v1712 = vmul.f32 %v1610, %v955
  %v1713 = vmul.f32 %v1612, %v956
  %v1714 = vmul.f32 %v1275, %v957
  %v1715 = vmul.f32 %v1277, %v958
  %v1716 = vmul.f32 %v1388, %v959
  %v1717 = vmul.f32 %v1390, %v960
  %v1718 = vmul.f32 %v1501, %v961
  %v1719 = vmul.f32 %v1503, %v962
  %v1720 = vmul.f32 %v1614, %v963
  %v1721 = vmul.f32 %v1616, %v964
  %v1722 = vmul.f32 %v1281, %v965
  %v1723 = vmul.f32 %v1283, %v966
  %v1724 = vmul.f32 %v1394, %v967
  %v1725 = vmul.f32 %v1396, %v968
  %v1726 = vmul.f32 %v1507, %v969
  %v1727 = vmul.f32 %v1509, %v970
  %v1728 = vmul.f32 %v1620, %v971
  %v1729 = vmul.f32 %v1622, %v972
  %v1730 = vmul.f32 %v1285, %v973
  %v1731 = vmul.f32 %v1287, %v974
  %v1732 = vmul.f32 %v1398, %v975
  %v1733 = vmul.f32 %v1400, %v976
  %v1734 = vmul.f32 %v1511, %v977
  %v1735 = vmul.f32 %v1513, %v978
  %v1736 = vmul.f32 %v1624, %v979
  %v1737 = vmul.f32 %v1626, %v980
  %v1738 = vmul.f32 %v1291, %v981
  %v1739 = vmul.f32 %v1293, %v982
  %v1740 = vmul.f32 %v1404, %v983
  %v1741 = vmul.f32 %v1406, %v984
  %v1742 = vmul.f32 %v1517, %v985
  %v1743 = vmul.f32 %v1519, %v986
  %v1744 = vmul.f32 %v1630, %v987
  %v1745 = vmul.f32 %v1632, %v988
  %v1746 = vmul.f32 %v1295, %v989
  %v1747 = vmul.f32 %v1297, %v990
  %v1748 = vmul.f32 %v1408, %v991
  %v1749 = vmul.f32 %v1410, %v992
  %v1750 = vmul.f32 %v1521, %v993
  %v1751 = vmul.f32 %v1523, %v994
  %v1752 = vmul.f32 %v1634, %v995
  %v1753 = vmul.f32 %v1636, %v996
  %v1754 = vmul.f32 %v1301, %v997
  %v1755 = vmul.f32 %v1303, %v998
  %v1756 = vmul.f32 %v1414, %v999
  %v1757 = vmul.f32 %v1416, %v1000
  %v1758 = vmul.f32 %v1527, %v1001
  %v1759 = vmul.f32 %v1529, %v1002
  %v1760 = vmul.f32 %v1640, %v1003
  %v1761 = vmul.f32 %v1642, %v1004
  %v1762 = vmul.f32 %v1305, %v1005
  %v1763 = vmul.f32 %v1307, %v1006
  %v1764 = vmul.f32 %v1418, %v1007
  %v1765 = vmul.f32 %v1420, %v1008
  %v1766 = vmul.f32 %v1531, %v1009
  %v1767 = vmul.f32 %v1533, %v1010
  %v1768 = vmul.f32 %v1644, %v1011
  %v1769 = vmul.f32 %v1646, %v1012
  %v1770 = vmul.f32 %v1311, %v1013
  %v1771 = vmul.f32 %v1313, %v1014
  %v1772 = vmul.f32 %v1424, %v1015
  %v1773 = vmul.f32 %v1426, %v1016
  %v1774 = vmul.f32 %v1537, %v1017
  %v1775 = vmul.f32 %v1539, %v1018
  %v1776 = vmul.f32 %v1650, %v1019
  %v1777 = vmul.f32 %v1652, %v1020
  %v1778 = vmul.f32 %v1315, %v1021
  %v1779 = vmul.f32 %v1317, %v1022
  %v1780 = vmul.f32 %v1428, %v1023
  %v1781 = vmul.f32 %v1430, %v1024
  %v1782 = vmul.f32 %v1541, %v1025
  %v1783 = vmul.f32 %v1543, %v1026
  %v1784 = vmul.f32 %v1654, %v1027
  %v1785 = vmul.f32 %v1656, %v1028
  %1802 = vrot.lane.b32.xlu0 %v1658, 96
  %v1803 = vpop.permute.xlu0 %1802
  %1804 = vrot.lane.b32.xlu0 %v1666, 96
  %v1805 = vpop.permute.xlu0 %1804
  %1806 = vrot.lane.b32.xlu0 %v1674, 96
  %v1807 = vpop.permute.xlu0 %1806
  %1808 = vrot.lane.b32.xlu0 %v1682, 96
  %v1809 = vpop.permute.xlu0 %1808
  %1810 = vrot.lane.b32.xlu0 %v1690, 96
  %v1811 = vpop.permute.xlu0 %1810
  %1812 = vrot.lane.b32.xlu0 %v1698, 96
  %v1813 = vpop.permute.xlu0 %1812
  %1814 = vrot.lane.b32.xlu0 %v1706, 96
  %v1815 = vpop.permute.xlu0 %1814
  %1816 = vrot.lane.b32.xlu0 %v1714, 96
  %v1817 = vpop.permute.xlu0 %1816
  %1818 = vrot.lane.b32.xlu0 %v1722, 96
  %v1819 = vpop.permute.xlu0 %1818
  %1820 = vrot.lane.b32.xlu0 %v1730, 96
  %v1821 = vpop.permute.xlu0 %1820
  %1822 = vrot.lane.b32.xlu0 %v1738, 96
  %v1823 = vpop.permute.xlu0 %1822
  %1824 = vrot.lane.b32.xlu0 %v1746, 96
  %v1825 = vpop.permute.xlu0 %1824
  %1826 = vrot.lane.b32.xlu0 %v1754, 96
  %v1827 = vpop.permute.xlu0 %1826
  %1828 = vrot.lane.b32.xlu0 %v1762, 96
  %v1829 = vpop.permute.xlu0 %1828
  %1830 = vrot.lane.b32.xlu0 %v1770, 96
  %v1831 = vpop.permute.xlu0 %1830
  %1832 = vrot.lane.b32.xlu0 %v1778, 96
  %v1833 = vpop.permute.xlu0 %1832
  %v1850 = vadd.f32 %v1658, %v1803
  %v1851 = vadd.f32 %v1666, %v1805
  %v1852 = vadd.f32 %v1674, %v1807
  %v1853 = vadd.f32 %v1682, %v1809
  %v1854 = vadd.f32 %v1690, %v1811
  %v1855 = vadd.f32 %v1698, %v1813
  %v1856 = vadd.f32 %v1706, %v1815
  %v1857 = vadd.f32 %v1714, %v1817
  %v1858 = vadd.f32 %v1722, %v1819
  %v1859 = vadd.f32 %v1730, %v1821
  %v1860 = vadd.f32 %v1738, %v1823
  %v1861 = vadd.f32 %v1746, %v1825
  %v1862 = vadd.f32 %v1754, %v1827
  %v1863 = vadd.f32 %v1762, %v1829
  %v1864 = vadd.f32 %v1770, %v1831
  %v1865 = vadd.f32 %v1778, %v1833
  %1866 = vrot.lane.b32.xlu0 %v1658, 64
  %v1867 = vpop.permute.xlu0 %1866
  %1868 = vrot.lane.b32.xlu0 %v1666, 64
  %v1869 = vpop.permute.xlu0 %1868
  %1870 = vrot.lane.b32.xlu0 %v1674, 64
  %v1871 = vpop.permute.xlu0 %1870
  %1872 = vrot.lane.b32.xlu0 %v1682, 64
  %v1873 = vpop.permute.xlu0 %1872
  %1874 = vrot.lane.b32.xlu0 %v1690, 64
  %v1875 = vpop.permute.xlu0 %1874
  %1876 = vrot.lane.b32.xlu0 %v1698, 64
  %v1877 = vpop.permute.xlu0 %1876
  %1878 = vrot.lane.b32.xlu0 %v1706, 64
  %v1879 = vpop.permute.xlu0 %1878
  %1880 = vrot.lane.b32.xlu0 %v1714, 64
  %v1881 = vpop.permute.xlu0 %1880
  %1882 = vrot.lane.b32.xlu0 %v1722, 64
  %v1883 = vpop.permute.xlu0 %1882
  %1884 = vrot.lane.b32.xlu0 %v1730, 64
  %v1885 = vpop.permute.xlu0 %1884
  %1886 = vrot.lane.b32.xlu0 %v1738, 64
  %v1887 = vpop.permute.xlu0 %1886
  %1888 = vrot.lane.b32.xlu0 %v1746, 64
  %v1889 = vpop.permute.xlu0 %1888
  %1890 = vrot.lane.b32.xlu0 %v1754, 64
  %v1891 = vpop.permute.xlu0 %1890
  %1892 = vrot.lane.b32.xlu0 %v1762, 64
  %v1893 = vpop.permute.xlu0 %1892
  %1894 = vrot.lane.b32.xlu0 %v1770, 64
  %v1895 = vpop.permute.xlu0 %1894
  %1896 = vrot.lane.b32.xlu0 %v1778, 64
  %v1897 = vpop.permute.xlu0 %1896
  %v1914 = vadd.f32 %v1850, %v1867
  %v1915 = vadd.f32 %v1851, %v1869
  %v1916 = vadd.f32 %v1852, %v1871
  %v1917 = vadd.f32 %v1853, %v1873
  %v1918 = vadd.f32 %v1854, %v1875
  %v1919 = vadd.f32 %v1855, %v1877
  %v1920 = vadd.f32 %v1856, %v1879
  %v1921 = vadd.f32 %v1857, %v1881
  %v1922 = vadd.f32 %v1858, %v1883
  %v1923 = vadd.f32 %v1859, %v1885
  %v1924 = vadd.f32 %v1860, %v1887
  %v1925 = vadd.f32 %v1861, %v1889
  %v1926 = vadd.f32 %v1862, %v1891
  %v1927 = vadd.f32 %v1863, %v1893
  %v1928 = vadd.f32 %v1864, %v1895
  %v1929 = vadd.f32 %v1865, %v1897
  %1930 = vrot.lane.b32.xlu0 %v1658, 32
  %v1931 = vpop.permute.xlu0 %1930
  %1932 = vrot.lane.b32.xlu0 %v1666, 32
  %v1933 = vpop.permute.xlu0 %1932
  %1934 = vrot.lane.b32.xlu0 %v1674, 32
  %v1935 = vpop.permute.xlu0 %1934
  %1936 = vrot.lane.b32.xlu0 %v1682, 32
  %v1937 = vpop.permute.xlu0 %1936
  %1938 = vrot.lane.b32.xlu0 %v1690, 32
  %v1939 = vpop.permute.xlu0 %1938
  %1940 = vrot.lane.b32.xlu0 %v1698, 32
  %v1941 = vpop.permute.xlu0 %1940
  %1942 = vrot.lane.b32.xlu0 %v1706, 32
  %v1943 = vpop.permute.xlu0 %1942
  %1944 = vrot.lane.b32.xlu0 %v1714, 32
  %v1945 = vpop.permute.xlu0 %1944
  %1946 = vrot.lane.b32.xlu0 %v1722, 32
  %v1947 = vpop.permute.xlu0 %1946
  %1948 = vrot.lane.b32.xlu0 %v1730, 32
  %v1949 = vpop.permute.xlu0 %1948
  %1950 = vrot.lane.b32.xlu0 %v1738, 32
  %v1951 = vpop.permute.xlu0 %1950
  %1952 = vrot.lane.b32.xlu0 %v1746, 32
  %v1953 = vpop.permute.xlu0 %1952
  %1954 = vrot.lane.b32.xlu0 %v1754, 32
  %v1955 = vpop.permute.xlu0 %1954
  %1956 = vrot.lane.b32.xlu0 %v1762, 32
  %v1957 = vpop.permute.xlu0 %1956
  %1958 = vrot.lane.b32.xlu0 %v1770, 32
  %v1959 = vpop.permute.xlu0 %1958
  %1960 = vrot.lane.b32.xlu0 %v1778, 32
  %v1961 = vpop.permute.xlu0 %1960
  %v1978 = vadd.f32 %v1914, %v1931
  %v1979 = vadd.f32 %v1915, %v1933
  %v1980 = vadd.f32 %v1916, %v1935
  %v1981 = vadd.f32 %v1917, %v1937
  %v1982 = vadd.f32 %v1918, %v1939
  %v1983 = vadd.f32 %v1919, %v1941
  %v1984 = vadd.f32 %v1920, %v1943
  %v1985 = vadd.f32 %v1921, %v1945
  %v1986 = vadd.f32 %v1922, %v1947
  %v1987 = vadd.f32 %v1923, %v1949
  %v1988 = vadd.f32 %v1924, %v1951
  %v1989 = vadd.f32 %v1925, %v1953
  %v1990 = vadd.f32 %v1926, %v1955
  %v1991 = vadd.f32 %v1927, %v1957
  %v1992 = vadd.f32 %v1928, %v1959
  %v1993 = vadd.f32 %v1929, %v1961
  %v1994 = vadd.f32 %v1978, %v1659
  %v1995 = vadd.f32 %v1979, %v1667
  %v1996 = vadd.f32 %v1980, %v1675
  %v1997 = vadd.f32 %v1981, %v1683
  %v1998 = vadd.f32 %v1982, %v1691
  %v1999 = vadd.f32 %v1983, %v1699
  %v2000 = vadd.f32 %v1984, %v1707
  %v2001 = vadd.f32 %v1985, %v1715
  %v2002 = vadd.f32 %v1986, %v1723
  %v2003 = vadd.f32 %v1987, %v1731
  %v2004 = vadd.f32 %v1988, %v1739
  %v2005 = vadd.f32 %v1989, %v1747
  %v2006 = vadd.f32 %v1990, %v1755
  %v2007 = vadd.f32 %v1991, %v1763
  %v2008 = vadd.f32 %v1992, %v1771
  %v2009 = vadd.f32 %v1993, %v1779
  %2026 = vrot.lane.b32.xlu0 %v1659, 96
  %v2027 = vpop.permute.xlu0 %2026
  %2028 = vrot.lane.b32.xlu0 %v1667, 96
  %v2029 = vpop.permute.xlu0 %2028
  %2030 = vrot.lane.b32.xlu0 %v1675, 96
  %v2031 = vpop.permute.xlu0 %2030
  %2032 = vrot.lane.b32.xlu0 %v1683, 96
  %v2033 = vpop.permute.xlu0 %2032
  %2034 = vrot.lane.b32.xlu0 %v1691, 96
  %v2035 = vpop.permute.xlu0 %2034
  %2036 = vrot.lane.b32.xlu0 %v1699, 96
  %v2037 = vpop.permute.xlu0 %2036
  %2038 = vrot.lane.b32.xlu0 %v1707, 96
  %v2039 = vpop.permute.xlu0 %2038
  %2040 = vrot.lane.b32.xlu0 %v1715, 96
  %v2041 = vpop.permute.xlu0 %2040
  %2042 = vrot.lane.b32.xlu0 %v1723, 96
  %v2043 = vpop.permute.xlu0 %2042
  %2044 = vrot.lane.b32.xlu0 %v1731, 96
  %v2045 = vpop.permute.xlu0 %2044
  %2046 = vrot.lane.b32.xlu0 %v1739, 96
  %v2047 = vpop.permute.xlu0 %2046
  %2048 = vrot.lane.b32.xlu0 %v1747, 96
  %v2049 = vpop.permute.xlu0 %2048
  %2050 = vrot.lane.b32.xlu0 %v1755, 96
  %v2051 = vpop.permute.xlu0 %2050
  %2052 = vrot.lane.b32.xlu0 %v1763, 96
  %v2053 = vpop.permute.xlu0 %2052
  %2054 = vrot.lane.b32.xlu0 %v1771, 96
  %v2055 = vpop.permute.xlu0 %2054
  %2056 = vrot.lane.b32.xlu0 %v1779, 96
  %v2057 = vpop.permute.xlu0 %2056
  %v2074 = vadd.f32 %v1994, %v2027
  %v2075 = vadd.f32 %v1995, %v2029
  %v2076 = vadd.f32 %v1996, %v2031
  %v2077 = vadd.f32 %v1997, %v2033
  %v2078 = vadd.f32 %v1998, %v2035
  %v2079 = vadd.f32 %v1999, %v2037
  %v2080 = vadd.f32 %v2000, %v2039
  %v2081 = vadd.f32 %v2001, %v2041
  %v2082 = vadd.f32 %v2002, %v2043
  %v2083 = vadd.f32 %v2003, %v2045
  %v2084 = vadd.f32 %v2004, %v2047
  %v2085 = vadd.f32 %v2005, %v2049
  %v2086 = vadd.f32 %v2006, %v2051
  %v2087 = vadd.f32 %v2007, %v2053
  %v2088 = vadd.f32 %v2008, %v2055
  %v2089 = vadd.f32 %v2009, %v2057
  %2090 = vrot.lane.b32.xlu0 %v1659, 64
  %v2091 = vpop.permute.xlu0 %2090
  %2092 = vrot.lane.b32.xlu0 %v1667, 64
  %v2093 = vpop.permute.xlu0 %2092
  %2094 = vrot.lane.b32.xlu0 %v1675, 64
  %v2095 = vpop.permute.xlu0 %2094
  %2096 = vrot.lane.b32.xlu0 %v1683, 64
  %v2097 = vpop.permute.xlu0 %2096
  %2098 = vrot.lane.b32.xlu0 %v1691, 64
  %v2099 = vpop.permute.xlu0 %2098
  %2100 = vrot.lane.b32.xlu0 %v1699, 64
  %v2101 = vpop.permute.xlu0 %2100
  %2102 = vrot.lane.b32.xlu0 %v1707, 64
  %v2103 = vpop.permute.xlu0 %2102
  %2104 = vrot.lane.b32.xlu0 %v1715, 64
  %v2105 = vpop.permute.xlu0 %2104
  %2106 = vrot.lane.b32.xlu0 %v1723, 64
  %v2107 = vpop.permute.xlu0 %2106
  %2108 = vrot.lane.b32.xlu0 %v1731, 64
  %v2109 = vpop.permute.xlu0 %2108
  %2110 = vrot.lane.b32.xlu0 %v1739, 64
  %v2111 = vpop.permute.xlu0 %2110
  %2112 = vrot.lane.b32.xlu0 %v1747, 64
  %v2113 = vpop.permute.xlu0 %2112
  %2114 = vrot.lane.b32.xlu0 %v1755, 64
  %v2115 = vpop.permute.xlu0 %2114
  %2116 = vrot.lane.b32.xlu0 %v1763, 64
  %v2117 = vpop.permute.xlu0 %2116
  %2118 = vrot.lane.b32.xlu0 %v1771, 64
  %v2119 = vpop.permute.xlu0 %2118
  %2120 = vrot.lane.b32.xlu0 %v1779, 64
  %v2121 = vpop.permute.xlu0 %2120
  %v2138 = vadd.f32 %v2074, %v2091
  %v2139 = vadd.f32 %v2075, %v2093
  %v2140 = vadd.f32 %v2076, %v2095
  %v2141 = vadd.f32 %v2077, %v2097
  %v2142 = vadd.f32 %v2078, %v2099
  %v2143 = vadd.f32 %v2079, %v2101
  %v2144 = vadd.f32 %v2080, %v2103
  %v2145 = vadd.f32 %v2081, %v2105
  %v2146 = vadd.f32 %v2082, %v2107
  %v2147 = vadd.f32 %v2083, %v2109
  %v2148 = vadd.f32 %v2084, %v2111
  %v2149 = vadd.f32 %v2085, %v2113
  %v2150 = vadd.f32 %v2086, %v2115
  %v2151 = vadd.f32 %v2087, %v2117
  %v2152 = vadd.f32 %v2088, %v2119
  %v2153 = vadd.f32 %v2089, %v2121
  %2154 = vrot.lane.b32.xlu0 %v1659, 32
  %v2155 = vpop.permute.xlu0 %2154
  %2156 = vrot.lane.b32.xlu0 %v1667, 32
  %v2157 = vpop.permute.xlu0 %2156
  %2158 = vrot.lane.b32.xlu0 %v1675, 32
  %v2159 = vpop.permute.xlu0 %2158
  %2160 = vrot.lane.b32.xlu0 %v1683, 32
  %v2161 = vpop.permute.xlu0 %2160
  %2162 = vrot.lane.b32.xlu0 %v1691, 32
  %v2163 = vpop.permute.xlu0 %2162
  %2164 = vrot.lane.b32.xlu0 %v1699, 32
  %v2165 = vpop.permute.xlu0 %2164
  %2166 = vrot.lane.b32.xlu0 %v1707, 32
  %v2167 = vpop.permute.xlu0 %2166
  %2168 = vrot.lane.b32.xlu0 %v1715, 32
  %v2169 = vpop.permute.xlu0 %2168
  %2170 = vrot.lane.b32.xlu0 %v1723, 32
  %v2171 = vpop.permute.xlu0 %2170
  %2172 = vrot.lane.b32.xlu0 %v1731, 32
  %v2173 = vpop.permute.xlu0 %2172
  %2174 = vrot.lane.b32.xlu0 %v1739, 32
  %v2175 = vpop.permute.xlu0 %2174
  %2176 = vrot.lane.b32.xlu0 %v1747, 32
  %v2177 = vpop.permute.xlu0 %2176
  %2178 = vrot.lane.b32.xlu0 %v1755, 32
  %v2179 = vpop.permute.xlu0 %2178
  %2180 = vrot.lane.b32.xlu0 %v1763, 32
  %v2181 = vpop.permute.xlu0 %2180
  %2182 = vrot.lane.b32.xlu0 %v1771, 32
  %v2183 = vpop.permute.xlu0 %2182
  %2184 = vrot.lane.b32.xlu0 %v1779, 32
  %v2185 = vpop.permute.xlu0 %2184
  %v2202 = vadd.f32 %v2138, %v2155
  %v2203 = vadd.f32 %v2139, %v2157
  %v2204 = vadd.f32 %v2140, %v2159
  %v2205 = vadd.f32 %v2141, %v2161
  %v2206 = vadd.f32 %v2142, %v2163
  %v2207 = vadd.f32 %v2143, %v2165
  %v2208 = vadd.f32 %v2144, %v2167
  %v2209 = vadd.f32 %v2145, %v2169
  %v2210 = vadd.f32 %v2146, %v2171
  %v2211 = vadd.f32 %v2147, %v2173
  %v2212 = vadd.f32 %v2148, %v2175
  %v2213 = vadd.f32 %v2149, %v2177
  %v2214 = vadd.f32 %v2150, %v2179
  %v2215 = vadd.f32 %v2151, %v2181
  %v2216 = vadd.f32 %v2152, %v2183
  %v2217 = vadd.f32 %v2153, %v2185
  %v2218 = vadd.f32 %v2202, %v1660
  %v2219 = vadd.f32 %v2203, %v1668
  %v2220 = vadd.f32 %v2204, %v1676
  %v2221 = vadd.f32 %v2205, %v1684
  %v2222 = vadd.f32 %v2206, %v1692
  %v2223 = vadd.f32 %v2207, %v1700
  %v2224 = vadd.f32 %v2208, %v1708
  %v2225 = vadd.f32 %v2209, %v1716
  %v2226 = vadd.f32 %v2210, %v1724
  %v2227 = vadd.f32 %v2211, %v1732
  %v2228 = vadd.f32 %v2212, %v1740
  %v2229 = vadd.f32 %v2213, %v1748
  %v2230 = vadd.f32 %v2214, %v1756
  %v2231 = vadd.f32 %v2215, %v1764
  %v2232 = vadd.f32 %v2216, %v1772
  %v2233 = vadd.f32 %v2217, %v1780
  %2250 = vrot.lane.b32.xlu0 %v1660, 96
  %v2251 = vpop.permute.xlu0 %2250
  %2252 = vrot.lane.b32.xlu0 %v1668, 96
  %v2253 = vpop.permute.xlu0 %2252
  %2254 = vrot.lane.b32.xlu0 %v1676, 96
  %v2255 = vpop.permute.xlu0 %2254
  %2256 = vrot.lane.b32.xlu0 %v1684, 96
  %v2257 = vpop.permute.xlu0 %2256
  %2258 = vrot.lane.b32.xlu0 %v1692, 96
  %v2259 = vpop.permute.xlu0 %2258
  %2260 = vrot.lane.b32.xlu0 %v1700, 96
  %v2261 = vpop.permute.xlu0 %2260
  %2262 = vrot.lane.b32.xlu0 %v1708, 96
  %v2263 = vpop.permute.xlu0 %2262
  %2264 = vrot.lane.b32.xlu0 %v1716, 96
  %v2265 = vpop.permute.xlu0 %2264
  %2266 = vrot.lane.b32.xlu0 %v1724, 96
  %v2267 = vpop.permute.xlu0 %2266
  %2268 = vrot.lane.b32.xlu0 %v1732, 96
  %v2269 = vpop.permute.xlu0 %2268
  %2270 = vrot.lane.b32.xlu0 %v1740, 96
  %v2271 = vpop.permute.xlu0 %2270
  %2272 = vrot.lane.b32.xlu0 %v1748, 96
  %v2273 = vpop.permute.xlu0 %2272
  %2274 = vrot.lane.b32.xlu0 %v1756, 96
  %v2275 = vpop.permute.xlu0 %2274
  %2276 = vrot.lane.b32.xlu0 %v1764, 96
  %v2277 = vpop.permute.xlu0 %2276
  %2278 = vrot.lane.b32.xlu0 %v1772, 96
  %v2279 = vpop.permute.xlu0 %2278
  %2280 = vrot.lane.b32.xlu0 %v1780, 96
  %v2281 = vpop.permute.xlu0 %2280
  %v2298 = vadd.f32 %v2218, %v2251
  %v2299 = vadd.f32 %v2219, %v2253
  %v2300 = vadd.f32 %v2220, %v2255
  %v2301 = vadd.f32 %v2221, %v2257
  %v2302 = vadd.f32 %v2222, %v2259
  %v2303 = vadd.f32 %v2223, %v2261
  %v2304 = vadd.f32 %v2224, %v2263
  %v2305 = vadd.f32 %v2225, %v2265
  %v2306 = vadd.f32 %v2226, %v2267
  %v2307 = vadd.f32 %v2227, %v2269
  %v2308 = vadd.f32 %v2228, %v2271
  %v2309 = vadd.f32 %v2229, %v2273
  %v2310 = vadd.f32 %v2230, %v2275
  %v2311 = vadd.f32 %v2231, %v2277
  %v2312 = vadd.f32 %v2232, %v2279
  %v2313 = vadd.f32 %v2233, %v2281
  %2314 = vrot.lane.b32.xlu0 %v1660, 64
  %v2315 = vpop.permute.xlu0 %2314
  %2316 = vrot.lane.b32.xlu0 %v1668, 64
  %v2317 = vpop.permute.xlu0 %2316
  %2318 = vrot.lane.b32.xlu0 %v1676, 64
  %v2319 = vpop.permute.xlu0 %2318
  %2320 = vrot.lane.b32.xlu0 %v1684, 64
  %v2321 = vpop.permute.xlu0 %2320
  %2322 = vrot.lane.b32.xlu0 %v1692, 64
  %v2323 = vpop.permute.xlu0 %2322
  %2324 = vrot.lane.b32.xlu0 %v1700, 64
  %v2325 = vpop.permute.xlu0 %2324
  %2326 = vrot.lane.b32.xlu0 %v1708, 64
  %v2327 = vpop.permute.xlu0 %2326
  %2328 = vrot.lane.b32.xlu0 %v1716, 64
  %v2329 = vpop.permute.xlu0 %2328
  %2330 = vrot.lane.b32.xlu0 %v1724, 64
  %v2331 = vpop.permute.xlu0 %2330
  %2332 = vrot.lane.b32.xlu0 %v1732, 64
  %v2333 = vpop.permute.xlu0 %2332
  %2334 = vrot.lane.b32.xlu0 %v1740, 64
  %v2335 = vpop.permute.xlu0 %2334
  %2336 = vrot.lane.b32.xlu0 %v1748, 64
  %v2337 = vpop.permute.xlu0 %2336
  %2338 = vrot.lane.b32.xlu0 %v1756, 64
  %v2339 = vpop.permute.xlu0 %2338
  %2340 = vrot.lane.b32.xlu0 %v1764, 64
  %v2341 = vpop.permute.xlu0 %2340
  %2342 = vrot.lane.b32.xlu0 %v1772, 64
  %v2343 = vpop.permute.xlu0 %2342
  %2344 = vrot.lane.b32.xlu0 %v1780, 64
  %v2345 = vpop.permute.xlu0 %2344
  %v2362 = vadd.f32 %v2298, %v2315
  %v2363 = vadd.f32 %v2299, %v2317
  %v2364 = vadd.f32 %v2300, %v2319
  %v2365 = vadd.f32 %v2301, %v2321
  %v2366 = vadd.f32 %v2302, %v2323
  %v2367 = vadd.f32 %v2303, %v2325
  %v2368 = vadd.f32 %v2304, %v2327
  %v2369 = vadd.f32 %v2305, %v2329
  %v2370 = vadd.f32 %v2306, %v2331
  %v2371 = vadd.f32 %v2307, %v2333
  %v2372 = vadd.f32 %v2308, %v2335
  %v2373 = vadd.f32 %v2309, %v2337
  %v2374 = vadd.f32 %v2310, %v2339
  %v2375 = vadd.f32 %v2311, %v2341
  %v2376 = vadd.f32 %v2312, %v2343
  %v2377 = vadd.f32 %v2313, %v2345
  %2378 = vrot.lane.b32.xlu0 %v1660, 32
  %v2379 = vpop.permute.xlu0 %2378
  %2380 = vrot.lane.b32.xlu0 %v1668, 32
  %v2381 = vpop.permute.xlu0 %2380
  %2382 = vrot.lane.b32.xlu0 %v1676, 32
  %v2383 = vpop.permute.xlu0 %2382
  %2384 = vrot.lane.b32.xlu0 %v1684, 32
  %v2385 = vpop.permute.xlu0 %2384
  %2386 = vrot.lane.b32.xlu0 %v1692, 32
  %v2387 = vpop.permute.xlu0 %2386
  %2388 = vrot.lane.b32.xlu0 %v1700, 32
  %v2389 = vpop.permute.xlu0 %2388
  %2390 = vrot.lane.b32.xlu0 %v1708, 32
  %v2391 = vpop.permute.xlu0 %2390
  %2392 = vrot.lane.b32.xlu0 %v1716, 32
  %v2393 = vpop.permute.xlu0 %2392
  %2394 = vrot.lane.b32.xlu0 %v1724, 32
  %v2395 = vpop.permute.xlu0 %2394
  %2396 = vrot.lane.b32.xlu0 %v1732, 32
  %v2397 = vpop.permute.xlu0 %2396
  %2398 = vrot.lane.b32.xlu0 %v1740, 32
  %v2399 = vpop.permute.xlu0 %2398
  %2400 = vrot.lane.b32.xlu0 %v1748, 32
  %v2401 = vpop.permute.xlu0 %2400
  %2402 = vrot.lane.b32.xlu0 %v1756, 32
  %v2403 = vpop.permute.xlu0 %2402
  %2404 = vrot.lane.b32.xlu0 %v1764, 32
  %v2405 = vpop.permute.xlu0 %2404
  %2406 = vrot.lane.b32.xlu0 %v1772, 32
  %v2407 = vpop.permute.xlu0 %2406
  %2408 = vrot.lane.b32.xlu0 %v1780, 32
  %v2409 = vpop.permute.xlu0 %2408
  %v2426 = vadd.f32 %v2362, %v2379
  %v2427 = vadd.f32 %v2363, %v2381
  %v2428 = vadd.f32 %v2364, %v2383
  %v2429 = vadd.f32 %v2365, %v2385
  %v2430 = vadd.f32 %v2366, %v2387
  %v2431 = vadd.f32 %v2367, %v2389
  %v2432 = vadd.f32 %v2368, %v2391
  %v2433 = vadd.f32 %v2369, %v2393
  %v2434 = vadd.f32 %v2370, %v2395
  %v2435 = vadd.f32 %v2371, %v2397
  %v2436 = vadd.f32 %v2372, %v2399
  %v2437 = vadd.f32 %v2373, %v2401
  %v2438 = vadd.f32 %v2374, %v2403
  %v2439 = vadd.f32 %v2375, %v2405
  %v2440 = vadd.f32 %v2376, %v2407
  %v2441 = vadd.f32 %v2377, %v2409
  %v2442 = vadd.f32 %v2426, %v1661
  %v2443 = vadd.f32 %v2427, %v1669
  %v2444 = vadd.f32 %v2428, %v1677
  %v2445 = vadd.f32 %v2429, %v1685
  %v2446 = vadd.f32 %v2430, %v1693
  %v2447 = vadd.f32 %v2431, %v1701
  %v2448 = vadd.f32 %v2432, %v1709
  %v2449 = vadd.f32 %v2433, %v1717
  %v2450 = vadd.f32 %v2434, %v1725
  %v2451 = vadd.f32 %v2435, %v1733
  %v2452 = vadd.f32 %v2436, %v1741
  %v2453 = vadd.f32 %v2437, %v1749
  %v2454 = vadd.f32 %v2438, %v1757
  %v2455 = vadd.f32 %v2439, %v1765
  %v2456 = vadd.f32 %v2440, %v1773
  %v2457 = vadd.f32 %v2441, %v1781
  %2474 = vrot.lane.b32.xlu0 %v1661, 96
  %v2475 = vpop.permute.xlu0 %2474
  %2476 = vrot.lane.b32.xlu0 %v1669, 96
  %v2477 = vpop.permute.xlu0 %2476
  %2478 = vrot.lane.b32.xlu0 %v1677, 96
  %v2479 = vpop.permute.xlu0 %2478
  %2480 = vrot.lane.b32.xlu0 %v1685, 96
  %v2481 = vpop.permute.xlu0 %2480
  %2482 = vrot.lane.b32.xlu0 %v1693, 96
  %v2483 = vpop.permute.xlu0 %2482
  %2484 = vrot.lane.b32.xlu0 %v1701, 96
  %v2485 = vpop.permute.xlu0 %2484
  %2486 = vrot.lane.b32.xlu0 %v1709, 96
  %v2487 = vpop.permute.xlu0 %2486
  %2488 = vrot.lane.b32.xlu0 %v1717, 96
  %v2489 = vpop.permute.xlu0 %2488
  %2490 = vrot.lane.b32.xlu0 %v1725, 96
  %v2491 = vpop.permute.xlu0 %2490
  %2492 = vrot.lane.b32.xlu0 %v1733, 96
  %v2493 = vpop.permute.xlu0 %2492
  %2494 = vrot.lane.b32.xlu0 %v1741, 96
  %v2495 = vpop.permute.xlu0 %2494
  %2496 = vrot.lane.b32.xlu0 %v1749, 96
  %v2497 = vpop.permute.xlu0 %2496
  %2498 = vrot.lane.b32.xlu0 %v1757, 96
  %v2499 = vpop.permute.xlu0 %2498
  %2500 = vrot.lane.b32.xlu0 %v1765, 96
  %v2501 = vpop.permute.xlu0 %2500
  %2502 = vrot.lane.b32.xlu0 %v1773, 96
  %v2503 = vpop.permute.xlu0 %2502
  %2504 = vrot.lane.b32.xlu0 %v1781, 96
  %v2505 = vpop.permute.xlu0 %2504
  %v2522 = vadd.f32 %v2442, %v2475
  %v2523 = vadd.f32 %v2443, %v2477
  %v2524 = vadd.f32 %v2444, %v2479
  %v2525 = vadd.f32 %v2445, %v2481
  %v2526 = vadd.f32 %v2446, %v2483
  %v2527 = vadd.f32 %v2447, %v2485
  %v2528 = vadd.f32 %v2448, %v2487
  %v2529 = vadd.f32 %v2449, %v2489
  %v2530 = vadd.f32 %v2450, %v2491
  %v2531 = vadd.f32 %v2451, %v2493
  %v2532 = vadd.f32 %v2452, %v2495
  %v2533 = vadd.f32 %v2453, %v2497
  %v2534 = vadd.f32 %v2454, %v2499
  %v2535 = vadd.f32 %v2455, %v2501
  %v2536 = vadd.f32 %v2456, %v2503
  %v2537 = vadd.f32 %v2457, %v2505
  %2538 = vrot.lane.b32.xlu0 %v1661, 64
  %v2539 = vpop.permute.xlu0 %2538
  %2540 = vrot.lane.b32.xlu0 %v1669, 64
  %v2541 = vpop.permute.xlu0 %2540
  %2542 = vrot.lane.b32.xlu0 %v1677, 64
  %v2543 = vpop.permute.xlu0 %2542
  %2544 = vrot.lane.b32.xlu0 %v1685, 64
  %v2545 = vpop.permute.xlu0 %2544
  %2546 = vrot.lane.b32.xlu0 %v1693, 64
  %v2547 = vpop.permute.xlu0 %2546
  %2548 = vrot.lane.b32.xlu0 %v1701, 64
  %v2549 = vpop.permute.xlu0 %2548
  %2550 = vrot.lane.b32.xlu0 %v1709, 64
  %v2551 = vpop.permute.xlu0 %2550
  %2552 = vrot.lane.b32.xlu0 %v1717, 64
  %v2553 = vpop.permute.xlu0 %2552
  %2554 = vrot.lane.b32.xlu0 %v1725, 64
  %v2555 = vpop.permute.xlu0 %2554
  %2556 = vrot.lane.b32.xlu0 %v1733, 64
  %v2557 = vpop.permute.xlu0 %2556
  %2558 = vrot.lane.b32.xlu0 %v1741, 64
  %v2559 = vpop.permute.xlu0 %2558
  %2560 = vrot.lane.b32.xlu0 %v1749, 64
  %v2561 = vpop.permute.xlu0 %2560
  %2562 = vrot.lane.b32.xlu0 %v1757, 64
  %v2563 = vpop.permute.xlu0 %2562
  %2564 = vrot.lane.b32.xlu0 %v1765, 64
  %v2565 = vpop.permute.xlu0 %2564
  %2566 = vrot.lane.b32.xlu0 %v1773, 64
  %v2567 = vpop.permute.xlu0 %2566
  %2568 = vrot.lane.b32.xlu0 %v1781, 64
  %v2569 = vpop.permute.xlu0 %2568
  %v2586 = vadd.f32 %v2522, %v2539
  %v2587 = vadd.f32 %v2523, %v2541
  %v2588 = vadd.f32 %v2524, %v2543
  %v2589 = vadd.f32 %v2525, %v2545
  %v2590 = vadd.f32 %v2526, %v2547
  %v2591 = vadd.f32 %v2527, %v2549
  %v2592 = vadd.f32 %v2528, %v2551
  %v2593 = vadd.f32 %v2529, %v2553
  %v2594 = vadd.f32 %v2530, %v2555
  %v2595 = vadd.f32 %v2531, %v2557
  %v2596 = vadd.f32 %v2532, %v2559
  %v2597 = vadd.f32 %v2533, %v2561
  %v2598 = vadd.f32 %v2534, %v2563
  %v2599 = vadd.f32 %v2535, %v2565
  %v2600 = vadd.f32 %v2536, %v2567
  %v2601 = vadd.f32 %v2537, %v2569
  %2602 = vrot.lane.b32.xlu0 %v1661, 32
  %v2603 = vpop.permute.xlu0 %2602
  %2604 = vrot.lane.b32.xlu0 %v1669, 32
  %v2605 = vpop.permute.xlu0 %2604
  %2606 = vrot.lane.b32.xlu0 %v1677, 32
  %v2607 = vpop.permute.xlu0 %2606
  %2608 = vrot.lane.b32.xlu0 %v1685, 32
  %v2609 = vpop.permute.xlu0 %2608
  %2610 = vrot.lane.b32.xlu0 %v1693, 32
  %v2611 = vpop.permute.xlu0 %2610
  %2612 = vrot.lane.b32.xlu0 %v1701, 32
  %v2613 = vpop.permute.xlu0 %2612
  %2614 = vrot.lane.b32.xlu0 %v1709, 32
  %v2615 = vpop.permute.xlu0 %2614
  %2616 = vrot.lane.b32.xlu0 %v1717, 32
  %v2617 = vpop.permute.xlu0 %2616
  %2618 = vrot.lane.b32.xlu0 %v1725, 32
  %v2619 = vpop.permute.xlu0 %2618
  %2620 = vrot.lane.b32.xlu0 %v1733, 32
  %v2621 = vpop.permute.xlu0 %2620
  %2622 = vrot.lane.b32.xlu0 %v1741, 32
  %v2623 = vpop.permute.xlu0 %2622
  %2624 = vrot.lane.b32.xlu0 %v1749, 32
  %v2625 = vpop.permute.xlu0 %2624
  %2626 = vrot.lane.b32.xlu0 %v1757, 32
  %v2627 = vpop.permute.xlu0 %2626
  %2628 = vrot.lane.b32.xlu0 %v1765, 32
  %v2629 = vpop.permute.xlu0 %2628
  %2630 = vrot.lane.b32.xlu0 %v1773, 32
  %v2631 = vpop.permute.xlu0 %2630
  %2632 = vrot.lane.b32.xlu0 %v1781, 32
  %v2633 = vpop.permute.xlu0 %2632
  %v2650 = vadd.f32 %v2586, %v2603
  %v2651 = vadd.f32 %v2587, %v2605
  %v2652 = vadd.f32 %v2588, %v2607
  %v2653 = vadd.f32 %v2589, %v2609
  %v2654 = vadd.f32 %v2590, %v2611
  %v2655 = vadd.f32 %v2591, %v2613
  %v2656 = vadd.f32 %v2592, %v2615
  %v2657 = vadd.f32 %v2593, %v2617
  %v2658 = vadd.f32 %v2594, %v2619
  %v2659 = vadd.f32 %v2595, %v2621
  %v2660 = vadd.f32 %v2596, %v2623
  %v2661 = vadd.f32 %v2597, %v2625
  %v2662 = vadd.f32 %v2598, %v2627
  %v2663 = vadd.f32 %v2599, %v2629
  %v2664 = vadd.f32 %v2600, %v2631
  %v2665 = vadd.f32 %v2601, %v2633
  %v2666 = vadd.f32 %v2650, %v1662
  %v2667 = vadd.f32 %v2651, %v1670
  %v2668 = vadd.f32 %v2652, %v1678
  %v2669 = vadd.f32 %v2653, %v1686
  %v2670 = vadd.f32 %v2654, %v1694
  %v2671 = vadd.f32 %v2655, %v1702
  %v2672 = vadd.f32 %v2656, %v1710
  %v2673 = vadd.f32 %v2657, %v1718
  %v2674 = vadd.f32 %v2658, %v1726
  %v2675 = vadd.f32 %v2659, %v1734
  %v2676 = vadd.f32 %v2660, %v1742
  %v2677 = vadd.f32 %v2661, %v1750
  %v2678 = vadd.f32 %v2662, %v1758
  %v2679 = vadd.f32 %v2663, %v1766
  %v2680 = vadd.f32 %v2664, %v1774
  %v2681 = vadd.f32 %v2665, %v1782
  %2698 = vrot.lane.b32.xlu0 %v1662, 96
  %v2699 = vpop.permute.xlu0 %2698
  %2700 = vrot.lane.b32.xlu0 %v1670, 96
  %v2701 = vpop.permute.xlu0 %2700
  %2702 = vrot.lane.b32.xlu0 %v1678, 96
  %v2703 = vpop.permute.xlu0 %2702
  %2704 = vrot.lane.b32.xlu0 %v1686, 96
  %v2705 = vpop.permute.xlu0 %2704
  %2706 = vrot.lane.b32.xlu0 %v1694, 96
  %v2707 = vpop.permute.xlu0 %2706
  %2708 = vrot.lane.b32.xlu0 %v1702, 96
  %v2709 = vpop.permute.xlu0 %2708
  %2710 = vrot.lane.b32.xlu0 %v1710, 96
  %v2711 = vpop.permute.xlu0 %2710
  %2712 = vrot.lane.b32.xlu0 %v1718, 96
  %v2713 = vpop.permute.xlu0 %2712
  %2714 = vrot.lane.b32.xlu0 %v1726, 96
  %v2715 = vpop.permute.xlu0 %2714
  %2716 = vrot.lane.b32.xlu0 %v1734, 96
  %v2717 = vpop.permute.xlu0 %2716
  %2718 = vrot.lane.b32.xlu0 %v1742, 96
  %v2719 = vpop.permute.xlu0 %2718
  %2720 = vrot.lane.b32.xlu0 %v1750, 96
  %v2721 = vpop.permute.xlu0 %2720
  %2722 = vrot.lane.b32.xlu0 %v1758, 96
  %v2723 = vpop.permute.xlu0 %2722
  %2724 = vrot.lane.b32.xlu0 %v1766, 96
  %v2725 = vpop.permute.xlu0 %2724
  %2726 = vrot.lane.b32.xlu0 %v1774, 96
  %v2727 = vpop.permute.xlu0 %2726
  %2728 = vrot.lane.b32.xlu0 %v1782, 96
  %v2729 = vpop.permute.xlu0 %2728
  %v2746 = vadd.f32 %v2666, %v2699
  %v2747 = vadd.f32 %v2667, %v2701
  %v2748 = vadd.f32 %v2668, %v2703
  %v2749 = vadd.f32 %v2669, %v2705
  %v2750 = vadd.f32 %v2670, %v2707
  %v2751 = vadd.f32 %v2671, %v2709
  %v2752 = vadd.f32 %v2672, %v2711
  %v2753 = vadd.f32 %v2673, %v2713
  %v2754 = vadd.f32 %v2674, %v2715
  %v2755 = vadd.f32 %v2675, %v2717
  %v2756 = vadd.f32 %v2676, %v2719
  %v2757 = vadd.f32 %v2677, %v2721
  %v2758 = vadd.f32 %v2678, %v2723
  %v2759 = vadd.f32 %v2679, %v2725
  %v2760 = vadd.f32 %v2680, %v2727
  %v2761 = vadd.f32 %v2681, %v2729
  %2762 = vrot.lane.b32.xlu0 %v1662, 64
  %v2763 = vpop.permute.xlu0 %2762
  %2764 = vrot.lane.b32.xlu0 %v1670, 64
  %v2765 = vpop.permute.xlu0 %2764
  %2766 = vrot.lane.b32.xlu0 %v1678, 64
  %v2767 = vpop.permute.xlu0 %2766
  %2768 = vrot.lane.b32.xlu0 %v1686, 64
  %v2769 = vpop.permute.xlu0 %2768
  %2770 = vrot.lane.b32.xlu0 %v1694, 64
  %v2771 = vpop.permute.xlu0 %2770
  %2772 = vrot.lane.b32.xlu0 %v1702, 64
  %v2773 = vpop.permute.xlu0 %2772
  %2774 = vrot.lane.b32.xlu0 %v1710, 64
  %v2775 = vpop.permute.xlu0 %2774
  %2776 = vrot.lane.b32.xlu0 %v1718, 64
  %v2777 = vpop.permute.xlu0 %2776
  %2778 = vrot.lane.b32.xlu0 %v1726, 64
  %v2779 = vpop.permute.xlu0 %2778
  %2780 = vrot.lane.b32.xlu0 %v1734, 64
  %v2781 = vpop.permute.xlu0 %2780
  %2782 = vrot.lane.b32.xlu0 %v1742, 64
  %v2783 = vpop.permute.xlu0 %2782
  %2784 = vrot.lane.b32.xlu0 %v1750, 64
  %v2785 = vpop.permute.xlu0 %2784
  %2786 = vrot.lane.b32.xlu0 %v1758, 64
  %v2787 = vpop.permute.xlu0 %2786
  %2788 = vrot.lane.b32.xlu0 %v1766, 64
  %v2789 = vpop.permute.xlu0 %2788
  %2790 = vrot.lane.b32.xlu0 %v1774, 64
  %v2791 = vpop.permute.xlu0 %2790
  %2792 = vrot.lane.b32.xlu0 %v1782, 64
  %v2793 = vpop.permute.xlu0 %2792
  %v2810 = vadd.f32 %v2746, %v2763
  %v2811 = vadd.f32 %v2747, %v2765
  %v2812 = vadd.f32 %v2748, %v2767
  %v2813 = vadd.f32 %v2749, %v2769
  %v2814 = vadd.f32 %v2750, %v2771
  %v2815 = vadd.f32 %v2751, %v2773
  %v2816 = vadd.f32 %v2752, %v2775
  %v2817 = vadd.f32 %v2753, %v2777
  %v2818 = vadd.f32 %v2754, %v2779
  %v2819 = vadd.f32 %v2755, %v2781
  %v2820 = vadd.f32 %v2756, %v2783
  %v2821 = vadd.f32 %v2757, %v2785
  %v2822 = vadd.f32 %v2758, %v2787
  %v2823 = vadd.f32 %v2759, %v2789
  %v2824 = vadd.f32 %v2760, %v2791
  %v2825 = vadd.f32 %v2761, %v2793
  %2826 = vrot.lane.b32.xlu0 %v1662, 32
  %v2827 = vpop.permute.xlu0 %2826
  %2828 = vrot.lane.b32.xlu0 %v1670, 32
  %v2829 = vpop.permute.xlu0 %2828
  %2830 = vrot.lane.b32.xlu0 %v1678, 32
  %v2831 = vpop.permute.xlu0 %2830
  %2832 = vrot.lane.b32.xlu0 %v1686, 32
  %v2833 = vpop.permute.xlu0 %2832
  %2834 = vrot.lane.b32.xlu0 %v1694, 32
  %v2835 = vpop.permute.xlu0 %2834
  %2836 = vrot.lane.b32.xlu0 %v1702, 32
  %v2837 = vpop.permute.xlu0 %2836
  %2838 = vrot.lane.b32.xlu0 %v1710, 32
  %v2839 = vpop.permute.xlu0 %2838
  %2840 = vrot.lane.b32.xlu0 %v1718, 32
  %v2841 = vpop.permute.xlu0 %2840
  %2842 = vrot.lane.b32.xlu0 %v1726, 32
  %v2843 = vpop.permute.xlu0 %2842
  %2844 = vrot.lane.b32.xlu0 %v1734, 32
  %v2845 = vpop.permute.xlu0 %2844
  %2846 = vrot.lane.b32.xlu0 %v1742, 32
  %v2847 = vpop.permute.xlu0 %2846
  %2848 = vrot.lane.b32.xlu0 %v1750, 32
  %v2849 = vpop.permute.xlu0 %2848
  %2850 = vrot.lane.b32.xlu0 %v1758, 32
  %v2851 = vpop.permute.xlu0 %2850
  %2852 = vrot.lane.b32.xlu0 %v1766, 32
  %v2853 = vpop.permute.xlu0 %2852
  %2854 = vrot.lane.b32.xlu0 %v1774, 32
  %v2855 = vpop.permute.xlu0 %2854
  %2856 = vrot.lane.b32.xlu0 %v1782, 32
  %v2857 = vpop.permute.xlu0 %2856
  %v2874 = vadd.f32 %v2810, %v2827
  %v2875 = vadd.f32 %v2811, %v2829
  %v2876 = vadd.f32 %v2812, %v2831
  %v2877 = vadd.f32 %v2813, %v2833
  %v2878 = vadd.f32 %v2814, %v2835
  %v2879 = vadd.f32 %v2815, %v2837
  %v2880 = vadd.f32 %v2816, %v2839
  %v2881 = vadd.f32 %v2817, %v2841
  %v2882 = vadd.f32 %v2818, %v2843
  %v2883 = vadd.f32 %v2819, %v2845
  %v2884 = vadd.f32 %v2820, %v2847
  %v2885 = vadd.f32 %v2821, %v2849
  %v2886 = vadd.f32 %v2822, %v2851
  %v2887 = vadd.f32 %v2823, %v2853
  %v2888 = vadd.f32 %v2824, %v2855
  %v2889 = vadd.f32 %v2825, %v2857
  %v2890 = vadd.f32 %v2874, %v1663
  %v2891 = vadd.f32 %v2875, %v1671
  %v2892 = vadd.f32 %v2876, %v1679
  %v2893 = vadd.f32 %v2877, %v1687
  %v2894 = vadd.f32 %v2878, %v1695
  %v2895 = vadd.f32 %v2879, %v1703
  %v2896 = vadd.f32 %v2880, %v1711
  %v2897 = vadd.f32 %v2881, %v1719
  %v2898 = vadd.f32 %v2882, %v1727
  %v2899 = vadd.f32 %v2883, %v1735
  %v2900 = vadd.f32 %v2884, %v1743
  %v2901 = vadd.f32 %v2885, %v1751
  %v2902 = vadd.f32 %v2886, %v1759
  %v2903 = vadd.f32 %v2887, %v1767
  %v2904 = vadd.f32 %v2888, %v1775
  %v2905 = vadd.f32 %v2889, %v1783
  %2922 = vrot.lane.b32.xlu0 %v1663, 96
  %v2923 = vpop.permute.xlu0 %2922
  %2924 = vrot.lane.b32.xlu0 %v1671, 96
  %v2925 = vpop.permute.xlu0 %2924
  %2926 = vrot.lane.b32.xlu0 %v1679, 96
  %v2927 = vpop.permute.xlu0 %2926
  %2928 = vrot.lane.b32.xlu0 %v1687, 96
  %v2929 = vpop.permute.xlu0 %2928
  %2930 = vrot.lane.b32.xlu0 %v1695, 96
  %v2931 = vpop.permute.xlu0 %2930
  %2932 = vrot.lane.b32.xlu0 %v1703, 96
  %v2933 = vpop.permute.xlu0 %2932
  %2934 = vrot.lane.b32.xlu0 %v1711, 96
  %v2935 = vpop.permute.xlu0 %2934
  %2936 = vrot.lane.b32.xlu0 %v1719, 96
  %v2937 = vpop.permute.xlu0 %2936
  %2938 = vrot.lane.b32.xlu0 %v1727, 96
  %v2939 = vpop.permute.xlu0 %2938
  %2940 = vrot.lane.b32.xlu0 %v1735, 96
  %v2941 = vpop.permute.xlu0 %2940
  %2942 = vrot.lane.b32.xlu0 %v1743, 96
  %v2943 = vpop.permute.xlu0 %2942
  %2944 = vrot.lane.b32.xlu0 %v1751, 96
  %v2945 = vpop.permute.xlu0 %2944
  %2946 = vrot.lane.b32.xlu0 %v1759, 96
  %v2947 = vpop.permute.xlu0 %2946
  %2948 = vrot.lane.b32.xlu0 %v1767, 96
  %v2949 = vpop.permute.xlu0 %2948
  %2950 = vrot.lane.b32.xlu0 %v1775, 96
  %v2951 = vpop.permute.xlu0 %2950
  %2952 = vrot.lane.b32.xlu0 %v1783, 96
  %v2953 = vpop.permute.xlu0 %2952
  %v2970 = vadd.f32 %v2890, %v2923
  %v2971 = vadd.f32 %v2891, %v2925
  %v2972 = vadd.f32 %v2892, %v2927
  %v2973 = vadd.f32 %v2893, %v2929
  %v2974 = vadd.f32 %v2894, %v2931
  %v2975 = vadd.f32 %v2895, %v2933
  %v2976 = vadd.f32 %v2896, %v2935
  %v2977 = vadd.f32 %v2897, %v2937
  %v2978 = vadd.f32 %v2898, %v2939
  %v2979 = vadd.f32 %v2899, %v2941
  %v2980 = vadd.f32 %v2900, %v2943
  %v2981 = vadd.f32 %v2901, %v2945
  %v2982 = vadd.f32 %v2902, %v2947
  %v2983 = vadd.f32 %v2903, %v2949
  %v2984 = vadd.f32 %v2904, %v2951
  %v2985 = vadd.f32 %v2905, %v2953
  %2986 = vrot.lane.b32.xlu0 %v1663, 64
  %v2987 = vpop.permute.xlu0 %2986
  %2988 = vrot.lane.b32.xlu0 %v1671, 64
  %v2989 = vpop.permute.xlu0 %2988
  %2990 = vrot.lane.b32.xlu0 %v1679, 64
  %v2991 = vpop.permute.xlu0 %2990
  %2992 = vrot.lane.b32.xlu0 %v1687, 64
  %v2993 = vpop.permute.xlu0 %2992
  %2994 = vrot.lane.b32.xlu0 %v1695, 64
  %v2995 = vpop.permute.xlu0 %2994
  %2996 = vrot.lane.b32.xlu0 %v1703, 64
  %v2997 = vpop.permute.xlu0 %2996
  %2998 = vrot.lane.b32.xlu0 %v1711, 64
  %v2999 = vpop.permute.xlu0 %2998
  %3000 = vrot.lane.b32.xlu0 %v1719, 64
  %v3001 = vpop.permute.xlu0 %3000
  %3002 = vrot.lane.b32.xlu0 %v1727, 64
  %v3003 = vpop.permute.xlu0 %3002
  %3004 = vrot.lane.b32.xlu0 %v1735, 64
  %v3005 = vpop.permute.xlu0 %3004
  %3006 = vrot.lane.b32.xlu0 %v1743, 64
  %v3007 = vpop.permute.xlu0 %3006
  %3008 = vrot.lane.b32.xlu0 %v1751, 64
  %v3009 = vpop.permute.xlu0 %3008
  %3010 = vrot.lane.b32.xlu0 %v1759, 64
  %v3011 = vpop.permute.xlu0 %3010
  %3012 = vrot.lane.b32.xlu0 %v1767, 64
  %v3013 = vpop.permute.xlu0 %3012
  %3014 = vrot.lane.b32.xlu0 %v1775, 64
  %v3015 = vpop.permute.xlu0 %3014
  %3016 = vrot.lane.b32.xlu0 %v1783, 64
  %v3017 = vpop.permute.xlu0 %3016
  %v3034 = vadd.f32 %v2970, %v2987
  %v3035 = vadd.f32 %v2971, %v2989
  %v3036 = vadd.f32 %v2972, %v2991
  %v3037 = vadd.f32 %v2973, %v2993
  %v3038 = vadd.f32 %v2974, %v2995
  %v3039 = vadd.f32 %v2975, %v2997
  %v3040 = vadd.f32 %v2976, %v2999
  %v3041 = vadd.f32 %v2977, %v3001
  %v3042 = vadd.f32 %v2978, %v3003
  %v3043 = vadd.f32 %v2979, %v3005
  %v3044 = vadd.f32 %v2980, %v3007
  %v3045 = vadd.f32 %v2981, %v3009
  %v3046 = vadd.f32 %v2982, %v3011
  %v3047 = vadd.f32 %v2983, %v3013
  %v3048 = vadd.f32 %v2984, %v3015
  %v3049 = vadd.f32 %v2985, %v3017
  %3050 = vrot.lane.b32.xlu0 %v1663, 32
  %v3051 = vpop.permute.xlu0 %3050
  %3052 = vrot.lane.b32.xlu0 %v1671, 32
  %v3053 = vpop.permute.xlu0 %3052
  %3054 = vrot.lane.b32.xlu0 %v1679, 32
  %v3055 = vpop.permute.xlu0 %3054
  %3056 = vrot.lane.b32.xlu0 %v1687, 32
  %v3057 = vpop.permute.xlu0 %3056
  %3058 = vrot.lane.b32.xlu0 %v1695, 32
  %v3059 = vpop.permute.xlu0 %3058
  %3060 = vrot.lane.b32.xlu0 %v1703, 32
  %v3061 = vpop.permute.xlu0 %3060
  %3062 = vrot.lane.b32.xlu0 %v1711, 32
  %v3063 = vpop.permute.xlu0 %3062
  %3064 = vrot.lane.b32.xlu0 %v1719, 32
  %v3065 = vpop.permute.xlu0 %3064
  %3066 = vrot.lane.b32.xlu0 %v1727, 32
  %v3067 = vpop.permute.xlu0 %3066
  %3068 = vrot.lane.b32.xlu0 %v1735, 32
  %v3069 = vpop.permute.xlu0 %3068
  %3070 = vrot.lane.b32.xlu0 %v1743, 32
  %v3071 = vpop.permute.xlu0 %3070
  %3072 = vrot.lane.b32.xlu0 %v1751, 32
  %v3073 = vpop.permute.xlu0 %3072
  %3074 = vrot.lane.b32.xlu0 %v1759, 32
  %v3075 = vpop.permute.xlu0 %3074
  %3076 = vrot.lane.b32.xlu0 %v1767, 32
  %v3077 = vpop.permute.xlu0 %3076
  %3078 = vrot.lane.b32.xlu0 %v1775, 32
  %v3079 = vpop.permute.xlu0 %3078
  %3080 = vrot.lane.b32.xlu0 %v1783, 32
  %v3081 = vpop.permute.xlu0 %3080
  %v3098 = vadd.f32 %v3034, %v3051
  %v3099 = vadd.f32 %v3035, %v3053
  %v3100 = vadd.f32 %v3036, %v3055
  %v3101 = vadd.f32 %v3037, %v3057
  %v3102 = vadd.f32 %v3038, %v3059
  %v3103 = vadd.f32 %v3039, %v3061
  %v3104 = vadd.f32 %v3040, %v3063
  %v3105 = vadd.f32 %v3041, %v3065
  %v3106 = vadd.f32 %v3042, %v3067
  %v3107 = vadd.f32 %v3043, %v3069
  %v3108 = vadd.f32 %v3044, %v3071
  %v3109 = vadd.f32 %v3045, %v3073
  %v3110 = vadd.f32 %v3046, %v3075
  %v3111 = vadd.f32 %v3047, %v3077
  %v3112 = vadd.f32 %v3048, %v3079
  %v3113 = vadd.f32 %v3049, %v3081
  %v3114 = vadd.f32 %v3098, %v1664
  %v3115 = vadd.f32 %v3099, %v1672
  %v3116 = vadd.f32 %v3100, %v1680
  %v3117 = vadd.f32 %v3101, %v1688
  %v3118 = vadd.f32 %v3102, %v1696
  %v3119 = vadd.f32 %v3103, %v1704
  %v3120 = vadd.f32 %v3104, %v1712
  %v3121 = vadd.f32 %v3105, %v1720
  %v3122 = vadd.f32 %v3106, %v1728
  %v3123 = vadd.f32 %v3107, %v1736
  %v3124 = vadd.f32 %v3108, %v1744
  %v3125 = vadd.f32 %v3109, %v1752
  %v3126 = vadd.f32 %v3110, %v1760
  %v3127 = vadd.f32 %v3111, %v1768
  %v3128 = vadd.f32 %v3112, %v1776
  %v3129 = vadd.f32 %v3113, %v1784
  %3146 = vrot.lane.b32.xlu0 %v1664, 96
  %v3147 = vpop.permute.xlu0 %3146
  %3148 = vrot.lane.b32.xlu0 %v1672, 96
  %v3149 = vpop.permute.xlu0 %3148
  %3150 = vrot.lane.b32.xlu0 %v1680, 96
  %v3151 = vpop.permute.xlu0 %3150
  %3152 = vrot.lane.b32.xlu0 %v1688, 96
  %v3153 = vpop.permute.xlu0 %3152
  %3154 = vrot.lane.b32.xlu0 %v1696, 96
  %v3155 = vpop.permute.xlu0 %3154
  %3156 = vrot.lane.b32.xlu0 %v1704, 96
  %v3157 = vpop.permute.xlu0 %3156
  %3158 = vrot.lane.b32.xlu0 %v1712, 96
  %v3159 = vpop.permute.xlu0 %3158
  %3160 = vrot.lane.b32.xlu0 %v1720, 96
  %v3161 = vpop.permute.xlu0 %3160
  %3162 = vrot.lane.b32.xlu0 %v1728, 96
  %v3163 = vpop.permute.xlu0 %3162
  %3164 = vrot.lane.b32.xlu0 %v1736, 96
  %v3165 = vpop.permute.xlu0 %3164
  %3166 = vrot.lane.b32.xlu0 %v1744, 96
  %v3167 = vpop.permute.xlu0 %3166
  %3168 = vrot.lane.b32.xlu0 %v1752, 96
  %v3169 = vpop.permute.xlu0 %3168
  %3170 = vrot.lane.b32.xlu0 %v1760, 96
  %v3171 = vpop.permute.xlu0 %3170
  %3172 = vrot.lane.b32.xlu0 %v1768, 96
  %v3173 = vpop.permute.xlu0 %3172
  %3174 = vrot.lane.b32.xlu0 %v1776, 96
  %v3175 = vpop.permute.xlu0 %3174
  %3176 = vrot.lane.b32.xlu0 %v1784, 96
  %v3177 = vpop.permute.xlu0 %3176
  %v3194 = vadd.f32 %v3114, %v3147
  %v3195 = vadd.f32 %v3115, %v3149
  %v3196 = vadd.f32 %v3116, %v3151
  %v3197 = vadd.f32 %v3117, %v3153
  %v3198 = vadd.f32 %v3118, %v3155
  %v3199 = vadd.f32 %v3119, %v3157
  %v3200 = vadd.f32 %v3120, %v3159
  %v3201 = vadd.f32 %v3121, %v3161
  %v3202 = vadd.f32 %v3122, %v3163
  %v3203 = vadd.f32 %v3123, %v3165
  %v3204 = vadd.f32 %v3124, %v3167
  %v3205 = vadd.f32 %v3125, %v3169
  %v3206 = vadd.f32 %v3126, %v3171
  %v3207 = vadd.f32 %v3127, %v3173
  %v3208 = vadd.f32 %v3128, %v3175
  %v3209 = vadd.f32 %v3129, %v3177
  %3210 = vrot.lane.b32.xlu0 %v1664, 64
  %v3211 = vpop.permute.xlu0 %3210
  %3212 = vrot.lane.b32.xlu0 %v1672, 64
  %v3213 = vpop.permute.xlu0 %3212
  %3214 = vrot.lane.b32.xlu0 %v1680, 64
  %v3215 = vpop.permute.xlu0 %3214
  %3216 = vrot.lane.b32.xlu0 %v1688, 64
  %v3217 = vpop.permute.xlu0 %3216
  %3218 = vrot.lane.b32.xlu0 %v1696, 64
  %v3219 = vpop.permute.xlu0 %3218
  %3220 = vrot.lane.b32.xlu0 %v1704, 64
  %v3221 = vpop.permute.xlu0 %3220
  %3222 = vrot.lane.b32.xlu0 %v1712, 64
  %v3223 = vpop.permute.xlu0 %3222
  %3224 = vrot.lane.b32.xlu0 %v1720, 64
  %v3225 = vpop.permute.xlu0 %3224
  %3226 = vrot.lane.b32.xlu0 %v1728, 64
  %v3227 = vpop.permute.xlu0 %3226
  %3228 = vrot.lane.b32.xlu0 %v1736, 64
  %v3229 = vpop.permute.xlu0 %3228
  %3230 = vrot.lane.b32.xlu0 %v1744, 64
  %v3231 = vpop.permute.xlu0 %3230
  %3232 = vrot.lane.b32.xlu0 %v1752, 64
  %v3233 = vpop.permute.xlu0 %3232
  %3234 = vrot.lane.b32.xlu0 %v1760, 64
  %v3235 = vpop.permute.xlu0 %3234
  %3236 = vrot.lane.b32.xlu0 %v1768, 64
  %v3237 = vpop.permute.xlu0 %3236
  %3238 = vrot.lane.b32.xlu0 %v1776, 64
  %v3239 = vpop.permute.xlu0 %3238
  %3240 = vrot.lane.b32.xlu0 %v1784, 64
  %v3241 = vpop.permute.xlu0 %3240
  %v3258 = vadd.f32 %v3194, %v3211
  %v3259 = vadd.f32 %v3195, %v3213
  %v3260 = vadd.f32 %v3196, %v3215
  %v3261 = vadd.f32 %v3197, %v3217
  %v3262 = vadd.f32 %v3198, %v3219
  %v3263 = vadd.f32 %v3199, %v3221
  %v3264 = vadd.f32 %v3200, %v3223
  %v3265 = vadd.f32 %v3201, %v3225
  %v3266 = vadd.f32 %v3202, %v3227
  %v3267 = vadd.f32 %v3203, %v3229
  %v3268 = vadd.f32 %v3204, %v3231
  %v3269 = vadd.f32 %v3205, %v3233
  %v3270 = vadd.f32 %v3206, %v3235
  %v3271 = vadd.f32 %v3207, %v3237
  %v3272 = vadd.f32 %v3208, %v3239
  %v3273 = vadd.f32 %v3209, %v3241
  %3274 = vrot.lane.b32.xlu0 %v1664, 32
  %v3275 = vpop.permute.xlu0 %3274
  %3276 = vrot.lane.b32.xlu0 %v1672, 32
  %v3277 = vpop.permute.xlu0 %3276
  %3278 = vrot.lane.b32.xlu0 %v1680, 32
  %v3279 = vpop.permute.xlu0 %3278
  %3280 = vrot.lane.b32.xlu0 %v1688, 32
  %v3281 = vpop.permute.xlu0 %3280
  %3282 = vrot.lane.b32.xlu0 %v1696, 32
  %v3283 = vpop.permute.xlu0 %3282
  %3284 = vrot.lane.b32.xlu0 %v1704, 32
  %v3285 = vpop.permute.xlu0 %3284
  %3286 = vrot.lane.b32.xlu0 %v1712, 32
  %v3287 = vpop.permute.xlu0 %3286
  %3288 = vrot.lane.b32.xlu0 %v1720, 32
  %v3289 = vpop.permute.xlu0 %3288
  %3290 = vrot.lane.b32.xlu0 %v1728, 32
  %v3291 = vpop.permute.xlu0 %3290
  %3292 = vrot.lane.b32.xlu0 %v1736, 32
  %v3293 = vpop.permute.xlu0 %3292
  %3294 = vrot.lane.b32.xlu0 %v1744, 32
  %v3295 = vpop.permute.xlu0 %3294
  %3296 = vrot.lane.b32.xlu0 %v1752, 32
  %v3297 = vpop.permute.xlu0 %3296
  %3298 = vrot.lane.b32.xlu0 %v1760, 32
  %v3299 = vpop.permute.xlu0 %3298
  %3300 = vrot.lane.b32.xlu0 %v1768, 32
  %v3301 = vpop.permute.xlu0 %3300
  %3302 = vrot.lane.b32.xlu0 %v1776, 32
  %v3303 = vpop.permute.xlu0 %3302
  %3304 = vrot.lane.b32.xlu0 %v1784, 32
  %v3305 = vpop.permute.xlu0 %3304
  %v3322 = vadd.f32 %v3258, %v3275
  %v3323 = vadd.f32 %v3259, %v3277
  %v3324 = vadd.f32 %v3260, %v3279
  %v3325 = vadd.f32 %v3261, %v3281
  %v3326 = vadd.f32 %v3262, %v3283
  %v3327 = vadd.f32 %v3263, %v3285
  %v3328 = vadd.f32 %v3264, %v3287
  %v3329 = vadd.f32 %v3265, %v3289
  %v3330 = vadd.f32 %v3266, %v3291
  %v3331 = vadd.f32 %v3267, %v3293
  %v3332 = vadd.f32 %v3268, %v3295
  %v3333 = vadd.f32 %v3269, %v3297
  %v3334 = vadd.f32 %v3270, %v3299
  %v3335 = vadd.f32 %v3271, %v3301
  %v3336 = vadd.f32 %v3272, %v3303
  %v3337 = vadd.f32 %v3273, %v3305
  %v3338 = vadd.f32 %v3322, %v1665
  %v3339 = vadd.f32 %v3323, %v1673
  %v3340 = vadd.f32 %v3324, %v1681
  %v3341 = vadd.f32 %v3325, %v1689
  %v3342 = vadd.f32 %v3326, %v1697
  %v3343 = vadd.f32 %v3327, %v1705
  %v3344 = vadd.f32 %v3328, %v1713
  %v3345 = vadd.f32 %v3329, %v1721
  %v3346 = vadd.f32 %v3330, %v1729
  %v3347 = vadd.f32 %v3331, %v1737
  %v3348 = vadd.f32 %v3332, %v1745
  %v3349 = vadd.f32 %v3333, %v1753
  %v3350 = vadd.f32 %v3334, %v1761
  %v3351 = vadd.f32 %v3335, %v1769
  %v3352 = vadd.f32 %v3336, %v1777
  %v3353 = vadd.f32 %v3337, %v1785
  %3370 = vrot.lane.b32.xlu0 %v1665, 96
  %v3371 = vpop.permute.xlu0 %3370
  %3372 = vrot.lane.b32.xlu0 %v1673, 96
  %v3373 = vpop.permute.xlu0 %3372
  %3374 = vrot.lane.b32.xlu0 %v1681, 96
  %v3375 = vpop.permute.xlu0 %3374
  %3376 = vrot.lane.b32.xlu0 %v1689, 96
  %v3377 = vpop.permute.xlu0 %3376
  %3378 = vrot.lane.b32.xlu0 %v1697, 96
  %v3379 = vpop.permute.xlu0 %3378
  %3380 = vrot.lane.b32.xlu0 %v1705, 96
  %v3381 = vpop.permute.xlu0 %3380
  %3382 = vrot.lane.b32.xlu0 %v1713, 96
  %v3383 = vpop.permute.xlu0 %3382
  %3384 = vrot.lane.b32.xlu0 %v1721, 96
  %v3385 = vpop.permute.xlu0 %3384
  %3386 = vrot.lane.b32.xlu0 %v1729, 96
  %v3387 = vpop.permute.xlu0 %3386
  %3388 = vrot.lane.b32.xlu0 %v1737, 96
  %v3389 = vpop.permute.xlu0 %3388
  %3390 = vrot.lane.b32.xlu0 %v1745, 96
  %v3391 = vpop.permute.xlu0 %3390
  %3392 = vrot.lane.b32.xlu0 %v1753, 96
  %v3393 = vpop.permute.xlu0 %3392
  %3394 = vrot.lane.b32.xlu0 %v1761, 96
  %v3395 = vpop.permute.xlu0 %3394
  %3396 = vrot.lane.b32.xlu0 %v1769, 96
  %v3397 = vpop.permute.xlu0 %3396
  %3398 = vrot.lane.b32.xlu0 %v1777, 96
  %v3399 = vpop.permute.xlu0 %3398
  %3400 = vrot.lane.b32.xlu0 %v1785, 96
  %v3401 = vpop.permute.xlu0 %3400
  %v3418 = vadd.f32 %v3338, %v3371
  %v3419 = vadd.f32 %v3339, %v3373
  %v3420 = vadd.f32 %v3340, %v3375
  %v3421 = vadd.f32 %v3341, %v3377
  %v3422 = vadd.f32 %v3342, %v3379
  %v3423 = vadd.f32 %v3343, %v3381
  %v3424 = vadd.f32 %v3344, %v3383
  %v3425 = vadd.f32 %v3345, %v3385
  %v3426 = vadd.f32 %v3346, %v3387
  %v3427 = vadd.f32 %v3347, %v3389
  %v3428 = vadd.f32 %v3348, %v3391
  %v3429 = vadd.f32 %v3349, %v3393
  %v3430 = vadd.f32 %v3350, %v3395
  %v3431 = vadd.f32 %v3351, %v3397
  %v3432 = vadd.f32 %v3352, %v3399
  %v3433 = vadd.f32 %v3353, %v3401
  %3434 = vrot.lane.b32.xlu0 %v1665, 64
  %v3435 = vpop.permute.xlu0 %3434
  %3436 = vrot.lane.b32.xlu0 %v1673, 64
  %v3437 = vpop.permute.xlu0 %3436
  %3438 = vrot.lane.b32.xlu0 %v1681, 64
  %v3439 = vpop.permute.xlu0 %3438
  %3440 = vrot.lane.b32.xlu0 %v1689, 64
  %v3441 = vpop.permute.xlu0 %3440
  %3442 = vrot.lane.b32.xlu0 %v1697, 64
  %v3443 = vpop.permute.xlu0 %3442
  %3444 = vrot.lane.b32.xlu0 %v1705, 64
  %v3445 = vpop.permute.xlu0 %3444
  %3446 = vrot.lane.b32.xlu0 %v1713, 64
  %v3447 = vpop.permute.xlu0 %3446
  %3448 = vrot.lane.b32.xlu0 %v1721, 64
  %v3449 = vpop.permute.xlu0 %3448
  %3450 = vrot.lane.b32.xlu0 %v1729, 64
  %v3451 = vpop.permute.xlu0 %3450
  %3452 = vrot.lane.b32.xlu0 %v1737, 64
  %v3453 = vpop.permute.xlu0 %3452
  %3454 = vrot.lane.b32.xlu0 %v1745, 64
  %v3455 = vpop.permute.xlu0 %3454
  %3456 = vrot.lane.b32.xlu0 %v1753, 64
  %v3457 = vpop.permute.xlu0 %3456
  %3458 = vrot.lane.b32.xlu0 %v1761, 64
  %v3459 = vpop.permute.xlu0 %3458
  %3460 = vrot.lane.b32.xlu0 %v1769, 64
  %v3461 = vpop.permute.xlu0 %3460
  %3462 = vrot.lane.b32.xlu0 %v1777, 64
  %v3463 = vpop.permute.xlu0 %3462
  %3464 = vrot.lane.b32.xlu0 %v1785, 64
  %v3465 = vpop.permute.xlu0 %3464
  %v3482 = vadd.f32 %v3418, %v3435
  %v3483 = vadd.f32 %v3419, %v3437
  %v3484 = vadd.f32 %v3420, %v3439
  %v3485 = vadd.f32 %v3421, %v3441
  %v3486 = vadd.f32 %v3422, %v3443
  %v3487 = vadd.f32 %v3423, %v3445
  %v3488 = vadd.f32 %v3424, %v3447
  %v3489 = vadd.f32 %v3425, %v3449
  %v3490 = vadd.f32 %v3426, %v3451
  %v3491 = vadd.f32 %v3427, %v3453
  %v3492 = vadd.f32 %v3428, %v3455
  %v3493 = vadd.f32 %v3429, %v3457
  %v3494 = vadd.f32 %v3430, %v3459
  %v3495 = vadd.f32 %v3431, %v3461
  %v3496 = vadd.f32 %v3432, %v3463
  %v3497 = vadd.f32 %v3433, %v3465
  %3498 = vrot.lane.b32.xlu0 %v1665, 32
  %v3499 = vpop.permute.xlu0 %3498
  %3500 = vrot.lane.b32.xlu0 %v1673, 32
  %v3501 = vpop.permute.xlu0 %3500
  %3502 = vrot.lane.b32.xlu0 %v1681, 32
  %v3503 = vpop.permute.xlu0 %3502
  %3504 = vrot.lane.b32.xlu0 %v1689, 32
  %v3505 = vpop.permute.xlu0 %3504
  %3506 = vrot.lane.b32.xlu0 %v1697, 32
  %v3507 = vpop.permute.xlu0 %3506
  %3508 = vrot.lane.b32.xlu0 %v1705, 32
  %v3509 = vpop.permute.xlu0 %3508
  %3510 = vrot.lane.b32.xlu0 %v1713, 32
  %v3511 = vpop.permute.xlu0 %3510
  %3512 = vrot.lane.b32.xlu0 %v1721, 32
  %v3513 = vpop.permute.xlu0 %3512
  %3514 = vrot.lane.b32.xlu0 %v1729, 32
  %v3515 = vpop.permute.xlu0 %3514
  %3516 = vrot.lane.b32.xlu0 %v1737, 32
  %v3517 = vpop.permute.xlu0 %3516
  %3518 = vrot.lane.b32.xlu0 %v1745, 32
  %v3519 = vpop.permute.xlu0 %3518
  %3520 = vrot.lane.b32.xlu0 %v1753, 32
  %v3521 = vpop.permute.xlu0 %3520
  %3522 = vrot.lane.b32.xlu0 %v1761, 32
  %v3523 = vpop.permute.xlu0 %3522
  %3524 = vrot.lane.b32.xlu0 %v1769, 32
  %v3525 = vpop.permute.xlu0 %3524
  %3526 = vrot.lane.b32.xlu0 %v1777, 32
  %v3527 = vpop.permute.xlu0 %3526
  %3528 = vrot.lane.b32.xlu0 %v1785, 32
  %v3529 = vpop.permute.xlu0 %3528
  %v3546 = vadd.f32 %v3482, %v3499
  %v3547 = vadd.f32 %v3483, %v3501
  %v3548 = vadd.f32 %v3484, %v3503
  %v3549 = vadd.f32 %v3485, %v3505
  %v3550 = vadd.f32 %v3486, %v3507
  %v3551 = vadd.f32 %v3487, %v3509
  %v3552 = vadd.f32 %v3488, %v3511
  %v3553 = vadd.f32 %v3489, %v3513
  %v3554 = vadd.f32 %v3490, %v3515
  %v3555 = vadd.f32 %v3491, %v3517
  %v3556 = vadd.f32 %v3492, %v3519
  %v3557 = vadd.f32 %v3493, %v3521
  %v3558 = vadd.f32 %v3494, %v3523
  %v3559 = vadd.f32 %v3495, %v3525
  %v3560 = vadd.f32 %v3496, %v3527
  %v3561 = vadd.f32 %v3497, %v3529
  %s3562 = smul.u32 0, 16
  %v3563 = vlaneseq
  %v3564 = vshrl.u32 %v3563, 7
  %v3565 = vadd.s32 %v3564, 8
  %v3566 = vstv %s3562
  %v3567 = vadd.s32 %v3566, %v3564
  %v3568 = vadd.s32 %v3566, %v3565
  %v3569 = vld [vmem:[%s0] sm:$0x1]
  %v3570 = vlaneseq
  %v3571 = vshrl.u32 %v3570, 7
  %v3572 = vsub.s32 0, %v3571
  %v3573 = vrot.slane %v3569, %v3572
  %vm3574 = vcmp.eq.s32.totalorder %v3573, %v3567
  %vm3575 = vcmp.eq.s32.totalorder %v3573, %v3568
  %v3576 = vld [vmem:[#allocation2] sm:$0xff]
  %v3577 = vld [vmem:[#allocation2 + $0x8] sm:$0xff]
  %v3578 = vsel %vm3574, 1, 0
  %v3579 = vsel %vm3575, 1, 0
  %v3580 = vcvt.s32.f32 %v3578
  %v3581 = vcvt.s32.f32 %v3579
  %v3582 = vpack.c.bf16 %v3581, %v3580
  %v3583 = vpack.c.bf16 %v3547, %v3546
  %v3584 = vpack.c.bf16 %v3549, %v3548
  %v3585 = vpack.c.bf16 %v3551, %v3550
  %v3586 = vpack.c.bf16 %v3553, %v3552
  %v3587 = vpack.c.bf16 %v3555, %v3554
  %v3588 = vpack.c.bf16 %v3557, %v3556
  %v3589 = vpack.c.bf16 %v3559, %v3558
  %v3590 = vpack.c.bf16 %v3561, %v3560
  %3591 = vmatprep.subr.bf16.mxu0 0
  %3592 = vmatpush1.bf16.msra.mxu0 %v3583
  %3593 = vmatprep.subr.bf16.mxu0 0
  %3594 = vmatpush1.bf16.msra.mxu0 %v3584
  %3595 = vmatprep.subr.bf16.mxu0 0
  %3596 = vmatpush1.bf16.msra.mxu0 %v3585
  %3597 = vmatprep.subr.bf16.mxu0 0
  %3598 = vmatpush1.bf16.msra.mxu0 %v3586
  %3599 = vmatprep.subr.bf16.mxu0 0
  %3600 = vmatpush1.bf16.msra.mxu0 %v3587
  %3601 = vmatprep.subr.bf16.mxu0 0
  %3602 = vmatpush1.bf16.msra.mxu0 %v3588
  %3603 = vmatprep.subr.bf16.mxu0 0
  %3604 = vmatpush1.bf16.msra.mxu0 %v3589
  %3605 = vmatprep.subr.bf16.mxu0 0
  %3606 = vmatpush1.bf16.msra.mxu0 %v3590
  %3607 = vmatprep.subr.bf16.mxu0 0
  %3608 = vmatpush1.bf16.msra.mxu0 0
  %3609 = vmatprep.subr.bf16.mxu0 0
  %3610 = vmatpush1.bf16.msra.mxu0 0
  %3611 = vmatprep.subr.bf16.mxu0 0
  %3612 = vmatpush1.bf16.msra.mxu0 0
  %3613 = vmatprep.subr.bf16.mxu0 0
  %3614 = vmatpush1.bf16.msra.mxu0 0
  %3615 = vmatprep.subr.bf16.mxu0 0
  %3616 = vmatpush1.bf16.msra.mxu0 0
  %3617 = vmatprep.subr.bf16.mxu0 0
  %3618 = vmatpush1.bf16.msra.mxu0 0
  %3619 = vmatprep.subr.bf16.mxu0 0
  %3620 = vmatpush1.bf16.msra.mxu0 0
  %3621 = vmatprep.subr.bf16.mxu0 0
  %3622 = vmatpush1.bf16.msra.mxu0 0
  %3623 = vmatprep.mubr.bf16.mxu0 0
  %3624 = vmatmul.mubr.bf16.gmra.mrb[0].mxu0 %v3582
  %v3625 = vpop.f32.mrb[0].mxu0
  %v3626 = vadd.f32 0.0, %v3625
  %v3627 = vpop.f32.mrb[0].mxu0
  %v3628 = vpop.f32.mrb[0].mxu0
  %v3629 = vadd.f32 0.0, %v3628
  %v3630 = vpop.f32.mrb[0].mxu0
  %3631 = vdwg.mxu0
  %v3632 = vadd.f32 %v3576, %v3626
  %v3633 = vadd.f32 %v3577, %v3629
  %3634 = vst.msk [vmem:[#allocation2] sm:$0xff] %vm1181, %v3632
  %3635 = vst.msk [vmem:[#allocation2 + $0x8] sm:$0xff] %vm1181, %v3633
  // Predicated region
  $region50: #{graph_gnn_model_forward.4} parent=0 // pred_check
    %p3636 = pneg %p39
  $region51: #{graph_gnn_model_forward.4} parent=0 // pred_check_branch
    %3638 = sbr.rel (%p3636) target = $region53
  $region52: #{graph_gnn_model_forward.4} parent=0 // pred_region
    %v3639 = vld [vmem:[#allocation2] sm:$0xff]
    %v3640 = vld [vmem:[#allocation2 + $0x8] sm:$0xff]
    %3641 = vst.msk [vmem:[%s11] sm:$0xff] %vm1181, %v3639
    %3642 = vst.msk [vmem:[%s11 + $0x8] sm:$0xff] %vm1181, %v3640
  $region53: #{graph_gnn_model_forward.4} parent=0 // pred_fallthru
    _
  // Predicated region
  $region54: #{graph_gnn_model_forward.4} parent=0 // pred_check
    _
  $region55: #{graph_gnn_model_forward.4} parent=0 // pred_check_branch
    %3644 = sbr.rel (0) target = $region57
  $region56: #{graph_gnn_model_forward.4} parent=0 // pred_region
    _
  $region57: #{graph_gnn_model_forward.4} parent=0 // pred_fallthru
    _
  // Predicated region
  $region58: #{graph_gnn_model_forward.4} parent=0 // pred_check
    _
  $region59: #{graph_gnn_model_forward.4} parent=0 // pred_check_branch
    %3646 = sbr.rel (0) target = $region61
  $region60: #{graph_gnn_model_forward.4} parent=0 // pred_region
    _
  $region61: #{graph_gnn_model_forward.4} parent=0 // pred_fallthru
    _

</llo_original>
